<compile_context>
chip_gen: v5e
topology: v5e:2x2
jax: 0.10.0
libtpu: 0.0.40
codegen_flags: <defaults>
</compile_context>

<pallas_src>
import functools

import jax
import jax.numpy as jnp
from jax.experimental import pallas as pl
from jax.experimental.pallas import tpu as pltpu

LN_EPS = 1e-5


def _layernorm(x, gamma, beta):
    mu = jnp.mean(x, axis=-1, keepdims=True)
    var = jnp.mean((x - mu) ** 2, axis=-1, keepdims=True)
    return (x - mu) * jax.lax.rsqrt(var + LN_EPS) * gamma + beta


def _attn_block_kernel(x_ref, mask_ref, pos_ref, ln_g_ref, ln_b_ref,
                       wqkv_ref, wout_ref, out_ref, kv_ref, *,
                       n_heads, head_dim, compute_dtype):
    """One batch element per grid step.

    x_ref:   (N, C)        mask_ref: (N, N) float32 (1.0 = masked)
    pos_ref: (H, N, N)     wqkv_ref: (C, 3*H*D) (columns already [q | k | v])
    wout_ref:(H*D, C)      out_ref:  (N, C)     kv_ref: (2, H, N, D)
    """
    x = x_ref[...]                                           # (N, C)
    xn = _layernorm(x, ln_g_ref[...], ln_b_ref[...])

    qkv = jnp.dot(xn.astype(compute_dtype),
                  wqkv_ref[...].astype(compute_dtype),
                  preferred_element_type=jnp.float32)        # (N, 3*H*D)

    scale = head_dim ** -0.5
    neg_big = -jnp.finfo(jnp.float32).max
    mask = mask_ref[...]                                     # (N, N)
    hd = n_heads * head_dim

    outs = []
    for h in range(n_heads):                                 # H is small & static
        q_h = qkv[:, h * head_dim:(h + 1) * head_dim]
        k_h = qkv[:, hd + h * head_dim:hd + (h + 1) * head_dim]
        v_h = qkv[:, 2 * hd + h * head_dim:2 * hd + (h + 1) * head_dim]
        kv_ref[0, h] = k_h
        kv_ref[1, h] = v_h

        dots = jnp.dot(q_h.astype(compute_dtype),
                       k_h.astype(compute_dtype).T,
                       preferred_element_type=jnp.float32) * scale
        dots = dots + pos_ref[h]
        dots = jnp.where(mask > 0.5, neg_big, dots)          # masked_fill_
        dots = dots - jnp.max(dots, axis=-1, keepdims=True)  # softmax
        e = jnp.exp(dots)
        attn = e / jnp.sum(e, axis=-1, keepdims=True)
        # TODO(synk): attention dropout omitted (AttentionFF default p=0.0).
        outs.append(jnp.dot(attn.astype(compute_dtype),
                            v_h.astype(compute_dtype),
                            preferred_element_type=jnp.float32))

    o = jnp.concatenate(outs, axis=-1)                       # (N, H*D)
    proj = jnp.dot(o.astype(compute_dtype),
                   wout_ref[...].astype(compute_dtype),
                   preferred_element_type=jnp.float32)
    out_ref[...] = (proj + x).astype(out_ref.dtype)          # residual


def _ff_block_kernel(y_ref, ln_g_ref, ln_b_ref, wg_ref, bg_ref, w2_ref, b2_ref,
                     out_ref, *, ff_dim, compute_dtype):
    """PreNorm(GLU(SiLU) -> Linear) + residual on a (TN, C) row tile."""
    y = y_ref[...]                                           # (TN, C)
    yn = _layernorm(y, ln_g_ref[...], ln_b_ref[...])

    hidden = jnp.dot(yn.astype(compute_dtype),
                     wg_ref[...].astype(compute_dtype),
                     preferred_element_type=jnp.float32) + bg_ref[...]  # (TN, 2F)
    val = hidden[:, :ff_dim]
    gate = hidden[:, ff_dim:]
    g = val * (gate * jax.nn.sigmoid(gate))                  # GLU with SiLU
    # TODO(synk): nn.Dropout(0.1) in ff() omitted (eval-mode forward).
    o = jnp.dot(g.astype(compute_dtype),
                w2_ref[...].astype(compute_dtype),
                preferred_element_type=jnp.float32) + b2_ref[...]
    out_ref[...] = (o + y).astype(out_ref.dtype)             # residual


def attention_ff_pallas(x, pos_bias, attn_mask, params, *, n_heads, head_dim,
                        ff_mult=4, use_bf16_matmul=False, n_tile=128):
    B, N, C = x.shape
    H, D = n_heads, head_dim
    HD = H * D
    F = C * ff_mult
    compute_dtype = jnp.bfloat16 if use_bf16_matmul else jnp.float32

    # De-interleave the torch '(h d qkv)' column layout into [q | k | v] blocks
    # once, so the kernel slices the QKV output at lane-aligned offsets.
    w_qkv_perm = jnp.transpose(
        params["w_qkv"].reshape(C, H, D, 3), (0, 3, 1, 2)).reshape(C, 3 * HD)

    mask_f = attn_mask.astype(jnp.float32)                   # (B, N, N)
    ln1_g = params["ln1_g"].reshape(1, C)
    ln1_b = params["ln1_b"].reshape(1, C)

    attn_kernel = functools.partial(_attn_block_kernel, n_heads=H,
                                    head_dim=D, compute_dtype=compute_dtype)

    x_attn, kv = pl.pallas_call(
        attn_kernel,
        out_shape=(jax.ShapeDtypeStruct((B, N, C), jnp.float32),
                   jax.ShapeDtypeStruct((B, 2, H, N, D), jnp.float32)),
        grid=(B,),
        in_specs=[
            pl.BlockSpec((None, N, C), lambda b: (b, 0, 0)),     # x
            pl.BlockSpec((None, N, N), lambda b: (b, 0, 0)),     # attn_mask
            pl.BlockSpec((H, N, N),    lambda b: (0, 0, 0)),     # pos_bias
            pl.BlockSpec((1, C),       lambda b: (0, 0)),        # ln1 gamma
            pl.BlockSpec((1, C),       lambda b: (0, 0)),        # ln1 beta
            pl.BlockSpec((C, 3 * HD),  lambda b: (0, 0)),        # w_qkv (perm)
            pl.BlockSpec((HD, C),      lambda b: (0, 0)),        # w_out
        ],
        out_specs=(
            pl.BlockSpec((None, N, C), lambda b: (b, 0, 0)),
            pl.BlockSpec((None, 2, H, N, D), lambda b: (b, 0, 0, 0, 0)),
        ),
        compiler_params=pltpu.CompilerParams(
            dimension_semantics=("parallel",)),
    )(x, mask_f, pos_bias, ln1_g, ln1_b, w_qkv_perm, params["w_out"])

    # --- feed-forward branch, tiled over (batch, seq tiles) ---
    tn = min(n_tile, N)
    num_n = pl.cdiv(N, tn)
    ln2_g = params["ln2_g"].reshape(1, C)
    ln2_b = params["ln2_b"].reshape(1, C)
    b_glu = params["b_glu"].reshape(1, 2 * F)
    b_ff2 = params["b_ff2"].reshape(1, C)

    ff_kernel = functools.partial(_ff_block_kernel, ff_dim=F,
                                  compute_dtype=compute_dtype)

    out = pl.pallas_call(
        ff_kernel,
        out_shape=jax.ShapeDtypeStruct((B, N, C), jnp.float32),
        grid=(B, num_n),
        in_specs=[
            pl.BlockSpec((None, tn, C), lambda b, n: (b, n, 0)),  # x_attn
            pl.BlockSpec((1, C),        lambda b, n: (0, 0)),     # ln2 gamma
            pl.BlockSpec((1, C),        lambda b, n: (0, 0)),     # ln2 beta
            pl.BlockSpec((C, 2 * F),    lambda b, n: (0, 0)),     # GLU proj W
            pl.BlockSpec((1, 2 * F),    lambda b, n: (0, 0)),     # GLU proj b
            pl.BlockSpec((F, C),        lambda b, n: (0, 0)),     # ff out W
            pl.BlockSpec((1, C),        lambda b, n: (0, 0)),     # ff out b
        ],
        out_specs=pl.BlockSpec((None, tn, C), lambda b, n: (b, n, 0)),
        compiler_params=pltpu.CompilerParams(
            dimension_semantics=("parallel", "parallel")),
    )(x_attn, ln2_g, ln2_b, params["w_glu"], b_glu,
      params["w_ff2"], b_ff2)

    # match the torch return layout: kv is (2, B, H, N, D)
    kv = jnp.transpose(kv, (1, 0, 2, 3, 4))
    return out, kv


def attention_ff_ref(x, pos_bias, attn_mask, params, *, n_heads, head_dim,
                     ff_mult=4):
    """Pure-JAX reference mirroring the PyTorch forward (eval mode)."""
    B, N, C = x.shape
    H, D = n_heads, head_dim
    F = C * ff_mult

    def ln(z, g, b):
        mu = jnp.mean(z, -1, keepdims=True)
        var = jnp.mean((z - mu) ** 2, -1, keepdims=True)
        return (z - mu) / jnp.sqrt(var + LN_EPS) * g + b

    xn = ln(x, params["ln1_g"], params["ln1_b"])
    y = (xn @ params["w_qkv"]).reshape(B, N, H, D, 3)     # 'b n (h d qkv)'
    q = jnp.transpose(y[..., 0], (0, 2, 1, 3))
    k = jnp.transpose(y[..., 1], (0, 2, 1, 3))
    v = jnp.transpose(y[..., 2], (0, 2, 1, 3))
    kv = jnp.stack([k, v], axis=0)                        # (2, B, H, N, D)

    dots = jnp.einsum('bhid,bhjd->bhij', q, k) * (D ** -0.5)
    dots = dots + pos_bias[None]
    dots = jnp.where(attn_mask[:, None], -jnp.finfo(jnp.float32).max, dots)
    attn = jax.nn.softmax(dots, axis=-1)
    o = jnp.einsum('bhij,bhjd->bhid', attn, v)
    o = jnp.transpose(o, (0, 2, 1, 3)).reshape(B, N, H * D)
    x1 = o @ params["w_out"] + x

    x1n = ln(x1, params["ln2_g"], params["ln2_b"])
    hidden = x1n @ params["w_glu"] + params["b_glu"]
    val, gate = hidden[..., :F], hidden[..., F:]
    g = val * (gate * jax.nn.sigmoid(gate))
    x2 = g @ params["w_ff2"] + params["b_ff2"] + x1
    return x2, kv


if __name__ == "__main__":
    # Small but lane-dense shapes (all matmul dims multiples of 128).
    B, N, C = 2, 128, 128
    H, Dh = 2, 128
    ff_mult = 4
    F = C * ff_mult

    key = jax.random.PRNGKey(0)
    ks = jax.random.split(key, 12)
    x = jax.random.normal(ks[0], (B, N, C), dtype=jnp.float32)
    pos_bias = 0.02 * jax.random.normal(ks[1], (H, N, N), dtype=jnp.float32)
    idx = jnp.arange(N)
    attn_mask = jnp.broadcast_to(idx[None, :] > idx[:, None], (B, N, N))  # causal

    params = dict(
        ln1_g=1.0 + 0.1 * jax.random.normal(ks[2], (C,), jnp.float32),
        ln1_b=0.1 * jax.random.normal(ks[3], (C,), jnp.float32),
        w_qkv=0.05 * jax.random.normal(ks[4], (C, 3 * H * Dh), jnp.float32),
        w_out=0.05 * jax.random.normal(ks[5], (H * Dh, C), jnp.float32),
        ln2_g=1.0 + 0.1 * jax.random.normal(ks[6], (C,), jnp.float32),
        ln2_b=0.1 * jax.random.normal(ks[7], (C,), jnp.float32),
        w_glu=0.05 * jax.random.normal(ks[8], (C, 2 * F), jnp.float32),
        b_glu=0.05 * jax.random.normal(ks[9], (2 * F,), jnp.float32),
        w_ff2=0.05 * jax.random.normal(ks[10], (F, C), jnp.float32),
        b_ff2=0.05 * jax.random.normal(ks[11], (C,), jnp.float32),
    )

    # use_bf16_matmul=True is recommended on v6e/v7x for MXU throughput
    # (relax the tolerances below if enabled).
    out, kv = attention_ff_pallas(x, pos_bias, attn_mask, params,
                                  n_heads=H, head_dim=Dh, ff_mult=ff_mult,
                                  use_bf16_matmul=False)
    out, kv = jax.block_until_ready((out, kv))

    out_ref, kv_ref = attention_ff_ref(x, pos_bias, attn_mask, params,
                                       n_heads=H, head_dim=Dh, ff_mult=ff_mult)
    assert out.shape == (B, N, C) and kv.shape == (2, B, H, N, Dh)
    assert jnp.allclose(out, out_ref, atol=2e-4, rtol=2e-4), \
        f"out max err {jnp.max(jnp.abs(out - out_ref))}"
    assert jnp.allclose(kv, kv_ref, atol=2e-4, rtol=2e-4), \
        f"kv max err {jnp.max(jnp.abs(kv - kv_ref))}"

    print("KERNEL_OK")
</pallas_src>

<mosaic_0001>
module attributes {stable_mosaic.version = 11 : i64} {
  func.func @_attn_block_kernel(%arg0: i32, %arg1: memref<1x128x128xf32, #tpu.memory_space<vmem>>, %arg2: memref<1x128x128xf32, #tpu.memory_space<vmem>>, %arg3: memref<2x128x128xf32, #tpu.memory_space<vmem>>, %arg4: memref<1x128xf32, #tpu.memory_space<vmem>>, %arg5: memref<1x128xf32, #tpu.memory_space<vmem>>, %arg6: memref<128x768xf32, #tpu.memory_space<vmem>>, %arg7: memref<256x128xf32, #tpu.memory_space<vmem>>, %arg8: memref<1x128x128xf32, #tpu.memory_space<vmem>>, %arg9: memref<1x2x2x128x128xf32, #tpu.memory_space<vmem>>) attributes {dimension_semantics = [#tpu.dimension_semantics<parallel>], iteration_bounds = array<i64: 2>, scalar_prefetch = 0 : i64, scratch_operands = 0 : i64, tpu.core_type = #tpu.core_type<tc>, window_params = [{transform_indices = @transform_0, window_bounds = array<i64: 1, 128, 128>}, {transform_indices = @transform_1, window_bounds = array<i64: 1, 128, 128>}, {pipeline_mode = #tpu.pipeline_mode<synchronous>, transform_indices = @transform_2, window_bounds = array<i64: 2, 128, 128>}, {pipeline_mode = #tpu.pipeline_mode<synchronous>, transform_indices = @transform_3, window_bounds = array<i64: 1, 128>}, {pipeline_mode = #tpu.pipeline_mode<synchronous>, transform_indices = @transform_4, window_bounds = array<i64: 1, 128>}, {pipeline_mode = #tpu.pipeline_mode<synchronous>, transform_indices = @transform_5, window_bounds = array<i64: 128, 768>}, {pipeline_mode = #tpu.pipeline_mode<synchronous>, transform_indices = @transform_6, window_bounds = array<i64: 256, 128>}, {transform_indices = @transform_7, window_bounds = array<i64: 1, 128, 128>}, {transform_indices = @transform_8, window_bounds = array<i64: 1, 2, 2, 128, 128>}]} {
    %c0 = arith.constant 0 : index
    %c0_0 = arith.constant 0 : index
    %c0_1 = arith.constant 0 : index
    %0 = vector.load %arg1[%c0, %c0_0, %c0_1] : memref<1x128x128xf32, #tpu.memory_space<vmem>>, vector<1x128x128xf32>
    %1 = vector.shape_cast %0 : vector<1x128x128xf32> to vector<128x128xf32>
    %c0_2 = arith.constant 0 : index
    %c0_3 = arith.constant 0 : index
    %2 = vector.load %arg4[%c0_2, %c0_3] : memref<1x128xf32, #tpu.memory_space<vmem>>, vector<1x128xf32>
    %c0_4 = arith.constant 0 : index
    %c0_5 = arith.constant 0 : index
    %3 = vector.load %arg5[%c0_4, %c0_5] : memref<1x128xf32, #tpu.memory_space<vmem>>, vector<1x128xf32>
    %cst = arith.constant dense<0.000000e+00> : vector<128xf32>
    %4 = vector.multi_reduction <add>, %1, %cst [1] : vector<128x128xf32> to vector<128xf32>
    %5 = vector.shape_cast %4 : vector<128xf32> to vector<128x1xf32>
    %cst_6 = arith.constant 1.280000e+02 : f32
    %6 = vector.broadcast %cst_6 : f32 to vector<128x1xf32>
    %7 = arith.divf %5, %6 : vector<128x1xf32>
    %8 = vector.broadcast %7 : vector<128x1xf32> to vector<128x128xf32>
    %9 = arith.subf %1, %8 : vector<128x128xf32>
    %10 = arith.mulf %9, %9 : vector<128x128xf32>
    %cst_7 = arith.constant dense<0.000000e+00> : vector<128xf32>
    %11 = vector.multi_reduction <add>, %10, %cst_7 [1] : vector<128x128xf32> to vector<128xf32>
    %12 = vector.shape_cast %11 : vector<128xf32> to vector<128x1xf32>
    %cst_8 = arith.constant 1.280000e+02 : f32
    %13 = vector.broadcast %cst_8 : f32 to vector<128x1xf32>
    %14 = arith.divf %12, %13 : vector<128x1xf32>
    %15 = vector.broadcast %7 : vector<128x1xf32> to vector<128x128xf32>
    %16 = arith.subf %1, %15 : vector<128x128xf32>
    %cst_9 = arith.constant 9.99999974E-6 : f32
    %17 = vector.broadcast %cst_9 : f32 to vector<128x1xf32>
    %18 = arith.addf %14, %17 : vector<128x1xf32>
    %19 = math.rsqrt %18 : vector<128x1xf32>
    %20 = vector.broadcast %19 : vector<128x1xf32> to vector<128x128xf32>
    %21 = arith.mulf %16, %20 : vector<128x128xf32>
    %22 = vector.broadcast %2 : vector<1x128xf32> to vector<128x128xf32>
    %23 = arith.mulf %21, %22 : vector<128x128xf32>
    %24 = vector.broadcast %3 : vector<1x128xf32> to vector<128x128xf32>
    %25 = arith.addf %23, %24 : vector<128x128xf32>
    %c0_10 = arith.constant 0 : index
    %c0_11 = arith.constant 0 : index
    %26 = vector.load %arg6[%c0_10, %c0_11] : memref<128x768xf32, #tpu.memory_space<vmem>>, vector<128x768xf32>
    %cst_12 = arith.constant dense<0.000000e+00> : vector<128x768xf32>
    %27 = tpu.matmul %25, %26, %cst_12 {dimension_numbers = #tpu.dot_dimension_numbers<[1], [0], [0], [1], [0, 0, 1, 1], [], []>} : vector<128x128xf32>, vector<128x768xf32>, vector<128x768xf32> -> vector<128x768xf32>
    %c0_13 = arith.constant 0 : index
    %c0_14 = arith.constant 0 : index
    %c0_15 = arith.constant 0 : index
    %28 = vector.load %arg2[%c0_13, %c0_14, %c0_15] : memref<1x128x128xf32, #tpu.memory_space<vmem>>, vector<1x128x128xf32>
    %29 = vector.shape_cast %28 : vector<1x128x128xf32> to vector<128x128xf32>
    %30 = vector.extract_strided_slice %27 {offsets = [0, 0], sizes = [128, 128], strides = [1, 1]} : vector<128x768xf32> to vector<128x128xf32>
    %31 = vector.extract_strided_slice %27 {offsets = [0, 256], sizes = [128, 128], strides = [1, 1]} : vector<128x768xf32> to vector<128x128xf32>
    %32 = vector.extract_strided_slice %27 {offsets = [0, 512], sizes = [128, 128], strides = [1, 1]} : vector<128x768xf32> to vector<128x128xf32>
    %c0_16 = arith.constant 0 : index
    %c0_17 = arith.constant 0 : index
    %c0_18 = arith.constant 0 : index
    %c0_19 = arith.constant 0 : index
    %c0_20 = arith.constant 0 : index
    %33 = vector.load %arg9[%c0_16, %c0_17, %c0_18, %c0_19, %c0_20] : memref<1x2x2x128x128xf32, #tpu.memory_space<vmem>>, vector<1x1x1x128x128xf32>
    %34 = vector.shape_cast %33 : vector<1x1x1x128x128xf32> to vector<128x128xf32>
    %35 = vector.shape_cast %31 : vector<128x128xf32> to vector<1x1x1x128x128xf32>
    tpu.vector_store %arg9[%c0_16, %c0_17, %c0_18, %c0_19, %c0_20], %35 {strides = array<i32>} : memref<1x2x2x128x128xf32, #tpu.memory_space<vmem>>, vector<1x1x1x128x128xf32>,
    %c0_21 = arith.constant 0 : index
    %c1 = arith.constant 1 : index
    %c0_22 = arith.constant 0 : index
    %c0_23 = arith.constant 0 : index
    %c0_24 = arith.constant 0 : index
    %36 = vector.load %arg9[%c0_21, %c1, %c0_22, %c0_23, %c0_24] : memref<1x2x2x128x128xf32, #tpu.memory_space<vmem>>, vector<1x1x1x128x128xf32>
    %37 = vector.shape_cast %36 : vector<1x1x1x128x128xf32> to vector<128x128xf32>
    %38 = vector.shape_cast %32 : vector<128x128xf32> to vector<1x1x1x128x128xf32>
    tpu.vector_store %arg9[%c0_21, %c1, %c0_22, %c0_23, %c0_24], %38 {strides = array<i32>} : memref<1x2x2x128x128xf32, #tpu.memory_space<vmem>>, vector<1x1x1x128x128xf32>,
    %39 = tpu.transpose %31, [1, 0] : vector<128x128xf32> -> vector<128x128xf32>
    %cst_25 = arith.constant dense<0.000000e+00> : vector<128x128xf32>
    %40 = tpu.matmul %30, %39, %cst_25 {dimension_numbers = #tpu.dot_dimension_numbers<[1], [0], [0], [1], [0, 0, 1, 1], [], []>} : vector<128x128xf32>, vector<128x128xf32>, vector<128x128xf32> -> vector<128x128xf32>
    %cst_26 = arith.constant 0.0883883461 : f32
    %41 = vector.broadcast %cst_26 : f32 to vector<128x128xf32>
    %42 = arith.mulf %40, %41 : vector<128x128xf32>
    %c0_27 = arith.constant 0 : index
    %c0_28 = arith.constant 0 : index
    %c0_29 = arith.constant 0 : index
    %43 = vector.load %arg3[%c0_27, %c0_28, %c0_29] : memref<2x128x128xf32, #tpu.memory_space<vmem>>, vector<1x128x128xf32>
    %44 = vector.shape_cast %43 : vector<1x128x128xf32> to vector<128x128xf32>
    %45 = arith.addf %42, %44 : vector<128x128xf32>
    %cst_30 = arith.constant 5.000000e-01 : f32
    %46 = vector.broadcast %cst_30 : f32 to vector<128x128xf32>
    %47 = arith.cmpf ogt, %29, %46 : vector<128x128xf32>
    %cst_31 = arith.constant -3.40282347E+38 : f32
    %48 = vector.broadcast %cst_31 : f32 to vector<128x128xf32>
    %49 = arith.select %47, %48, %45 : vector<128x128xi1>, vector<128x128xf32>
    %cst_32 = arith.constant dense<0xFF800000> : vector<128xf32>
    %50 = vector.multi_reduction <maximumf>, %49, %cst_32 [1] : vector<128x128xf32> to vector<128xf32>
    %51 = vector.shape_cast %50 : vector<128xf32> to vector<128x1xf32>
    %52 = vector.broadcast %51 : vector<128x1xf32> to vector<128x128xf32>
    %53 = arith.subf %49, %52 : vector<128x128xf32>
    %54 = math.exp %53 : vector<128x128xf32>
    %cst_33 = arith.constant dense<0.000000e+00> : vector<128xf32>
    %55 = vector.multi_reduction <add>, %54, %cst_33 [1] : vector<128x128xf32> to vector<128xf32>
    %56 = vector.shape_cast %55 : vector<128xf32> to vector<128x1xf32>
    %57 = vector.broadcast %56 : vector<128x1xf32> to vector<128x128xf32>
    %58 = arith.divf %54, %57 : vector<128x128xf32>
    %cst_34 = arith.constant dense<0.000000e+00> : vector<128x128xf32>
    %59 = tpu.matmul %58, %32, %cst_34 {dimension_numbers = #tpu.dot_dimension_numbers<[1], [0], [0], [1], [0, 0, 1, 1], [], []>} : vector<128x128xf32>, vector<128x128xf32>, vector<128x128xf32> -> vector<128x128xf32>
    %60 = vector.extract_strided_slice %27 {offsets = [0, 128], sizes = [128, 128], strides = [1, 1]} : vector<128x768xf32> to vector<128x128xf32>
    %61 = vector.extract_strided_slice %27 {offsets = [0, 384], sizes = [128, 128], strides = [1, 1]} : vector<128x768xf32> to vector<128x128xf32>
    %62 = vector.extract_strided_slice %27 {offsets = [0, 640], sizes = [128, 128], strides = [1, 1]} : vector<128x768xf32> to vector<128x128xf32>
    %c0_35 = arith.constant 0 : index
    %c0_36 = arith.constant 0 : index
    %c1_37 = arith.constant 1 : index
    %c0_38 = arith.constant 0 : index
    %c0_39 = arith.constant 0 : index
    %63 = vector.load %arg9[%c0_35, %c0_36, %c1_37, %c0_38, %c0_39] : memref<1x2x2x128x128xf32, #tpu.memory_space<vmem>>, vector<1x1x1x128x128xf32>
    %64 = vector.shape_cast %63 : vector<1x1x1x128x128xf32> to vector<128x128xf32>
    %65 = vector.shape_cast %61 : vector<128x128xf32> to vector<1x1x1x128x128xf32>
    tpu.vector_store %arg9[%c0_35, %c0_36, %c1_37, %c0_38, %c0_39], %65 {strides = array<i32>} : memref<1x2x2x128x128xf32, #tpu.memory_space<vmem>>, vector<1x1x1x128x128xf32>,
    %c0_40 = arith.constant 0 : index
    %c1_41 = arith.constant 1 : index
    %c1_42 = arith.constant 1 : index
    %c0_43 = arith.constant 0 : index
    %c0_44 = arith.constant 0 : index
    %66 = vector.load %arg9[%c0_40, %c1_41, %c1_42, %c0_43, %c0_44] : memref<1x2x2x128x128xf32, #tpu.memory_space<vmem>>, vector<1x1x1x128x128xf32>
    %67 = vector.shape_cast %66 : vector<1x1x1x128x128xf32> to vector<128x128xf32>
    %68 = vector.shape_cast %62 : vector<128x128xf32> to vector<1x1x1x128x128xf32>
    tpu.vector_store %arg9[%c0_40, %c1_41, %c1_42, %c0_43, %c0_44], %68 {strides = array<i32>} : memref<1x2x2x128x128xf32, #tpu.memory_space<vmem>>, vector<1x1x1x128x128xf32>,
    %69 = tpu.transpose %61, [1, 0] : vector<128x128xf32> -> vector<128x128xf32>
    %cst_45 = arith.constant dense<0.000000e+00> : vector<128x128xf32>
    %70 = tpu.matmul %60, %69, %cst_45 {dimension_numbers = #tpu.dot_dimension_numbers<[1], [0], [0], [1], [0, 0, 1, 1], [], []>} : vector<128x128xf32>, vector<128x128xf32>, vector<128x128xf32> -> vector<128x128xf32>
    %cst_46 = arith.constant 0.0883883461 : f32
    %71 = vector.broadcast %cst_46 : f32 to vector<128x128xf32>
    %72 = arith.mulf %70, %71 : vector<128x128xf32>
    %c1_47 = arith.constant 1 : index
    %c0_48 = arith.constant 0 : index
    %c0_49 = arith.constant 0 : index
    %73 = vector.load %arg3[%c1_47, %c0_48, %c0_49] : memref<2x128x128xf32, #tpu.memory_space<vmem>>, vector<1x128x128xf32>
    %74 = vector.shape_cast %73 : vector<1x128x128xf32> to vector<128x128xf32>
    %75 = arith.addf %72, %74 : vector<128x128xf32>
    %cst_50 = arith.constant 5.000000e-01 : f32
    %76 = vector.broadcast %cst_50 : f32 to vector<128x128xf32>
    %77 = arith.cmpf ogt, %29, %76 : vector<128x128xf32>
    %cst_51 = arith.constant -3.40282347E+38 : f32
    %78 = vector.broadcast %cst_51 : f32 to vector<128x128xf32>
    %79 = arith.select %77, %78, %75 : vector<128x128xi1>, vector<128x128xf32>
    %cst_52 = arith.constant dense<0xFF800000> : vector<128xf32>
    %80 = vector.multi_reduction <maximumf>, %79, %cst_52 [1] : vector<128x128xf32> to vector<128xf32>
    %81 = vector.shape_cast %80 : vector<128xf32> to vector<128x1xf32>
    %82 = vector.broadcast %81 : vector<128x1xf32> to vector<128x128xf32>
    %83 = arith.subf %79, %82 : vector<128x128xf32>
    %84 = math.exp %83 : vector<128x128xf32>
    %cst_53 = arith.constant dense<0.000000e+00> : vector<128xf32>
    %85 = vector.multi_reduction <add>, %84, %cst_53 [1] : vector<128x128xf32> to vector<128xf32>
    %86 = vector.shape_cast %85 : vector<128xf32> to vector<128x1xf32>
    %87 = vector.broadcast %86 : vector<128x1xf32> to vector<128x128xf32>
    %88 = arith.divf %84, %87 : vector<128x128xf32>
    %cst_54 = arith.constant dense<0.000000e+00> : vector<128x128xf32>
    %89 = tpu.matmul %88, %62, %cst_54 {dimension_numbers = #tpu.dot_dimension_numbers<[1], [0], [0], [1], [0, 0, 1, 1], [], []>} : vector<128x128xf32>, vector<128x128xf32>, vector<128x128xf32> -> vector<128x128xf32>
    %90 = tpu.concatenate %59, %89 in 1 : vector<128x128xf32>, vector<128x128xf32> -> vector<128x256xf32>
    %c0_55 = arith.constant 0 : index
    %c0_56 = arith.constant 0 : index
    %91 = vector.load %arg7[%c0_55, %c0_56] : memref<256x128xf32, #tpu.memory_space<vmem>>, vector<256x128xf32>
    %cst_57 = arith.constant dense<0.000000e+00> : vector<128x128xf32>
    %92 = tpu.matmul %90, %91, %cst_57 {dimension_numbers = #tpu.dot_dimension_numbers<[1], [0], [0], [1], [0, 0, 1, 1], [], []>} : vector<128x256xf32>, vector<256x128xf32>, vector<128x128xf32> -> vector<128x128xf32>
    %93 = arith.addf %92, %1 : vector<128x128xf32>
    %c0_58 = arith.constant 0 : index
    %c0_59 = arith.constant 0 : index
    %c0_60 = arith.constant 0 : index
    %94 = vector.load %arg8[%c0_58, %c0_59, %c0_60] : memref<1x128x128xf32, #tpu.memory_space<vmem>>, vector<1x128x128xf32>
    %95 = vector.shape_cast %94 : vector<1x128x128xf32> to vector<128x128xf32>
    %96 = vector.shape_cast %93 : vector<128x128xf32> to vector<1x128x128xf32>
    tpu.vector_store %arg8[%c0_58, %c0_59, %c0_60], %96 {strides = array<i32>} : memref<1x128x128xf32, #tpu.memory_space<vmem>>, vector<1x128x128xf32>,
    return
  }
  func.func @transform_0(%arg0: i32) -> (i32, i32, i32) {
    %c0_i32 = arith.constant 0 : i32
    %c0_i32_0 = arith.constant 0 : i32
    %c0_i32_1 = arith.constant 0 : i32
    return %arg0, %c0_i32, %c0_i32_0 : i32, i32, i32
  }
  func.func @transform_1(%arg0: i32) -> (i32, i32, i32) {
    %c0_i32 = arith.constant 0 : i32
    %c0_i32_0 = arith.constant 0 : i32
    %c0_i32_1 = arith.constant 0 : i32
    return %arg0, %c0_i32, %c0_i32_0 : i32, i32, i32
  }
  func.func @transform_2(%arg0: i32) -> (i32, i32, i32) {
    %c0_i32 = arith.constant 0 : i32
    %c0_i32_0 = arith.constant 0 : i32
    %c0_i32_1 = arith.constant 0 : i32
    %c0_i32_2 = arith.constant 0 : i32
    return %c0_i32, %c0_i32_0, %c0_i32_1 : i32, i32, i32
  }
  func.func @transform_3(%arg0: i32) -> (i32, i32) {
    %c0_i32 = arith.constant 0 : i32
    %c0_i32_0 = arith.constant 0 : i32
    %c0_i32_1 = arith.constant 0 : i32
    return %c0_i32, %c0_i32_0 : i32, i32
  }
  func.func @transform_4(%arg0: i32) -> (i32, i32) {
    %c0_i32 = arith.constant 0 : i32
    %c0_i32_0 = arith.constant 0 : i32
    %c0_i32_1 = arith.constant 0 : i32
    return %c0_i32, %c0_i32_0 : i32, i32
  }
  func.func @transform_5(%arg0: i32) -> (i32, i32) {
    %c0_i32 = arith.constant 0 : i32
    %c0_i32_0 = arith.constant 0 : i32
    %c0_i32_1 = arith.constant 0 : i32
    return %c0_i32, %c0_i32_0 : i32, i32
  }
  func.func @transform_6(%arg0: i32) -> (i32, i32) {
    %c0_i32 = arith.constant 0 : i32
    %c0_i32_0 = arith.constant 0 : i32
    %c0_i32_1 = arith.constant 0 : i32
    return %c0_i32, %c0_i32_0 : i32, i32
  }
  func.func @transform_7(%arg0: i32) -> (i32, i32, i32) {
    %c0_i32 = arith.constant 0 : i32
    %c0_i32_0 = arith.constant 0 : i32
    %c0_i32_1 = arith.constant 0 : i32
    return %arg0, %c0_i32, %c0_i32_0 : i32, i32, i32
  }
  func.func @transform_8(%arg0: i32) -> (i32, i32, i32, i32, i32) {
    %c0_i32 = arith.constant 0 : i32
    %c0_i32_0 = arith.constant 0 : i32
    %c0_i32_1 = arith.constant 0 : i32
    %c0_i32_2 = arith.constant 0 : i32
    %c0_i32_3 = arith.constant 0 : i32
    return %arg0, %c0_i32, %c0_i32_0, %c0_i32_1, %c0_i32_2 : i32, i32, i32, i32, i32
  }
}

</mosaic_0001>

<llo_original>
// kernel: tpu_custom_call.1
$region0: #{tpu_custom_call.1}
  #allocation0 [shape = 'u32[]', space=smem, size = 0x4, offset = 0x4, fixed_abs, tag = 'smem constant byte address 0x4 - core index']
  #allocation1 [shape = 'u32[72,128]{1,0:T(1,128)}', space=vmem, size = 0x9000, scoped, tag = 'internal scratch']
  %s0 = inlined_call_operand.hbm [shape: f32[2,128,128], index: 0, kind: input, shape index: {}]
  %s1 = inlined_call_operand.hbm [shape: f32[2,128,128], index: 1, kind: input, shape index: {}]
  %s2 = inlined_call_operand.hbm [shape: f32[2,128,128], index: 2, kind: input, shape index: {}]
  %s3 = inlined_call_operand.vmem [shape: f32[1,128], index: 3, kind: input, shape index: {}]
  %s4 = inlined_call_operand.vmem [shape: f32[1,128], index: 4, kind: input, shape index: {}]
  %s5 = inlined_call_operand.hbm [shape: f32[128,768], index: 5, kind: input, shape index: {}]
  %s6 = inlined_call_operand.hbm [shape: f32[256,128], index: 6, kind: input, shape index: {}]
  %s7 = inlined_call_operand.hbm [shape: f32[2,128,128], index: 7, kind: output, shape index: {0}]
  %s8 = inlined_call_operand.hbm [shape: f32[2,2,2,128,128], index: 8, kind: output, shape index: {1}]
  %9 = xla_tuple %s7, %s8
  %s10 = sld [smem:[#allocation0]]
  $region89: #{tpu_custom_call.1} parent=0
    _
  %s12 = ssub.s32 1, %s10
  %s13 = scalar_select 0, %s12, %s10
  $region1: #{tpu_custom_call.1} parent=0
    #allocation2 [shape = 'u8[131072]{0}', space=vmem, size = 0x20000, scoped, tag = 'input window, operand 0']
    #allocation3 [shape = 's32[2]{0}', space=sflag, size = 0x8, scoped, tag = 'scoped memory for tpu_custom_call.1']
    #allocation4 [shape = 's32[2]{0}', space=sflag, size = 0x8, scoped, tag = 'scoped memory for tpu_custom_call.1']
    #allocation5 [shape = 'u8[131072]{0}', space=vmem, size = 0x20000, scoped, tag = 'input window, operand 1']
    #allocation6 [shape = 's32[2]{0}', space=sflag, size = 0x8, scoped, tag = 'scoped memory for tpu_custom_call.1']
    #allocation7 [shape = 'u8[131072]{0}', space=vmem, size = 0x20000, scoped, tag = 'input window, operand 2, single buffered']
    #allocation8 [shape = 'u8[393216]{0}', space=vmem, size = 0x60000, scoped, tag = 'input window, operand 5, single buffered']
    #allocation9 [shape = 's32[1]{0}', space=sflag, size = 0x4, scoped, tag = 'scoped memory for tpu_custom_call.1']
    #allocation10 [shape = 'u8[131072]{0}', space=vmem, size = 0x20000, scoped, tag = 'input window, operand 6, single buffered']
    #allocation11 [shape = 'u8[131072]{0}', space=vmem, size = 0x20000, scoped, tag = 'output window, operand 0']
    #allocation12 [shape = 'u8[524288]{0}', space=vmem, size = 0x80000, scoped, tag = 'output window, operand 1']
    #allocation13 [shape = 's32[2]{0}', space=sflag, size = 0x8, scoped, tag = 'scoped memory for tpu_custom_call.1']
    %14 = vsyncpa [#allocation3], 0
    %s15 = scalar_lea.sflag [#allocation3], 1
    %16 = vsyncpa %s15, 0
    %17 = vsyncpa [#allocation6], 0
    %s18 = scalar_lea.sflag [#allocation6], 1
    %19 = vsyncpa %s18, 0
    %20 = vsyncpa [#allocation9], 0
    %21 = vsyncpa [#allocation4], 0
    %s22 = scalar_lea.sflag [#allocation4], 1
    %23 = vsyncpa %s22, 0
    %24 = vsyncpa [#allocation13], 0
    %s25 = scalar_lea.sflag [#allocation13], 1
    %26 = vsyncpa %s25, 0
    loop: start=0, step=1, limit=4
    $region2: #{tpu_custom_call.1} parent=1 // loop_pre_header
      _
    $region3: #{tpu_custom_call.1} parent=1 // loop_header
      %s28 = sphi 0, %s32
      %p29 = scmp.ge.s32.totalorder %s28, 4
      %s38 = sphi 0, %s40
      %s41 = sphi 0, %s38
      %s42 = sphi 0, %s41
      %s58 = sphi 0, %s42
      %s64 = sphi 0, %s66
      %s67 = sphi 0, %s64
      %s68 = sphi 0, %s67
      %s84 = sphi 0, %s68
      %s88 = sphi 0, %s88
      %s90 = sphi 0, %s88
      %s91 = sphi 0, %s90
      %s105 = sphi 0, %s91
      %s109 = sphi 0, %s109
      %s111 = sphi 0, %s109
      %s112 = sphi 0, %s111
      %s126 = sphi 0, %s112
      %s130 = sphi 0, %s130
      %s132 = sphi 0, %s130
      %s133 = sphi 0, %s132
      %s147 = sphi 0, %s133
      %s151 = sphi 0, %s151
      %s153 = sphi 0, %s151
      %s154 = sphi 0, %s153
      %s168 = sphi 0, %s154
      %s172 = sphi 0, %s172
      %s174 = sphi 0, %s172
      %s175 = sphi 0, %s174
      %s189 = sphi 0, %s175
      %s195 = sphi 0, %s197
      %s198 = sphi 0, %s195
      %s199 = sphi 0, %s198
      %s215 = sphi 0, %s199
      %s221 = sphi 0, %s223
      %s224 = sphi 0, %s221
      %s225 = sphi 0, %s224
      %s241 = sphi 0, %s225
    $region4: #{tpu_custom_call.1} parent=1 // loop_header_branch
      %31 = sbr.rel (%p29) target = $region8
    $region5: #{tpu_custom_call.1} parent=1 // loop_body
      %s33 = ssub.s32 %s28, 1
      %s34 = ssub.s32 %s28, 2
      %s35 = sadd.s32 %s28, 1
      %s36 = ssub.s32 %s28, %s35
      %p37 = scmp.eq.s32.totalorder %s36, 0
      %s39 = sadd.s32 %s38, 1
      %s40 = scalar_select %p37, %s38, %s39
      %p43 = pneg %p37
      %p44 = scmp.eq.s32.totalorder %s28, 1
      %p45 = por %p43, %p44
      %p46 = scmp.ne.s32.totalorder %s38, %s41
      %p47 = scmp.eq.s32.totalorder %s28, 0
      %p48 = por %p46, %p47
      %p49 = scmp.ne.s32.totalorder %s38, %s41
      %p50 = scmp.eq.s32.totalorder %s33, 1
      %p51 = por %p49, %p50
      %p52 = scmp.ne.s32.totalorder %s41, %s42
      %p53 = scmp.eq.s32.totalorder %s33, 0
      %p54 = por %p52, %p53
      %p55 = scmp.ne.s32.totalorder %s41, %s42
      %p56 = scmp.eq.s32.totalorder %s34, 1
      %p57 = por %p55, %p56
      %p59 = scmp.ne.s32.totalorder %s42, %s58
      %p60 = scmp.eq.s32.totalorder %s34, 0
      %p61 = por %p59, %p60
      %s62 = ssub.s32 %s28, %s35
      %p63 = scmp.eq.s32.totalorder %s62, 0
      %s65 = sadd.s32 %s64, 1
      %s66 = scalar_select %p63, %s64, %s65
      %p69 = pneg %p63
      %p70 = scmp.eq.s32.totalorder %s28, 1
      %p71 = por %p69, %p70
      %p72 = scmp.ne.s32.totalorder %s64, %s67
      %p73 = scmp.eq.s32.totalorder %s28, 0
      %p74 = por %p72, %p73
      %p75 = scmp.ne.s32.totalorder %s64, %s67
      %p76 = scmp.eq.s32.totalorder %s33, 1
      %p77 = por %p75, %p76
      %p78 = scmp.ne.s32.totalorder %s67, %s68
      %p79 = scmp.eq.s32.totalorder %s33, 0
      %p80 = por %p78, %p79
      %p81 = scmp.ne.s32.totalorder %s67, %s68
      %p82 = scmp.eq.s32.totalorder %s34, 1
      %p83 = por %p81, %p82
      %p85 = scmp.ne.s32.totalorder %s68, %s84
      %p86 = scmp.eq.s32.totalorder %s34, 0
      %p87 = por %p85, %p86
      %s89 = sadd.s32 %s88, 1
      %p92 = scmp.eq.s32.totalorder %s28, 1
      %p93 = scmp.ne.s32.totalorder %s88, %s90
      %p94 = scmp.eq.s32.totalorder %s28, 0
      %p95 = por %p93, %p94
      %p96 = scmp.ne.s32.totalorder %s88, %s90
      %p97 = scmp.eq.s32.totalorder %s33, 1
      %p98 = por %p96, %p97
      %p99 = scmp.ne.s32.totalorder %s90, %s91
      %p100 = scmp.eq.s32.totalorder %s33, 0
      %p101 = por %p99, %p100
      %p102 = scmp.ne.s32.totalorder %s90, %s91
      %p103 = scmp.eq.s32.totalorder %s34, 1
      %p104 = por %p102, %p103
      %p106 = scmp.ne.s32.totalorder %s91, %s105
      %p107 = scmp.eq.s32.totalorder %s34, 0
      %p108 = por %p106, %p107
      %s110 = sadd.s32 %s109, 1
      %p113 = scmp.eq.s32.totalorder %s28, 1
      %p114 = scmp.ne.s32.totalorder %s109, %s111
      %p115 = scmp.eq.s32.totalorder %s28, 0
      %p116 = por %p114, %p115
      %p117 = scmp.ne.s32.totalorder %s109, %s111
      %p118 = scmp.eq.s32.totalorder %s33, 1
      %p119 = por %p117, %p118
      %p120 = scmp.ne.s32.totalorder %s111, %s112
      %p121 = scmp.eq.s32.totalorder %s33, 0
      %p122 = por %p120, %p121
      %p123 = scmp.ne.s32.totalorder %s111, %s112
      %p124 = scmp.eq.s32.totalorder %s34, 1
      %p125 = por %p123, %p124
      %p127 = scmp.ne.s32.totalorder %s112, %s126
      %p128 = scmp.eq.s32.totalorder %s34, 0
      %p129 = por %p127, %p128
      %s131 = sadd.s32 %s130, 1
      %p134 = scmp.eq.s32.totalorder %s28, 1
      %p135 = scmp.ne.s32.totalorder %s130, %s132
      %p136 = scmp.eq.s32.totalorder %s28, 0
      %p137 = por %p135, %p136
      %p138 = scmp.ne.s32.totalorder %s130, %s132
      %p139 = scmp.eq.s32.totalorder %s33, 1
      %p140 = por %p138, %p139
      %p141 = scmp.ne.s32.totalorder %s132, %s133
      %p142 = scmp.eq.s32.totalorder %s33, 0
      %p143 = por %p141, %p142
      %p144 = scmp.ne.s32.totalorder %s132, %s133
      %p145 = scmp.eq.s32.totalorder %s34, 1
      %p146 = por %p144, %p145
      %p148 = scmp.ne.s32.totalorder %s133, %s147
      %p149 = scmp.eq.s32.totalorder %s34, 0
      %p150 = por %p148, %p149
      %s152 = sadd.s32 %s151, 1
      %p155 = scmp.eq.s32.totalorder %s28, 1
      %p156 = scmp.ne.s32.totalorder %s151, %s153
      %p157 = scmp.eq.s32.totalorder %s28, 0
      %p158 = por %p156, %p157
      %p159 = scmp.ne.s32.totalorder %s151, %s153
      %p160 = scmp.eq.s32.totalorder %s33, 1
      %p161 = por %p159, %p160
      %p162 = scmp.ne.s32.totalorder %s153, %s154
      %p163 = scmp.eq.s32.totalorder %s33, 0
      %p164 = por %p162, %p163
      %p165 = scmp.ne.s32.totalorder %s153, %s154
      %p166 = scmp.eq.s32.totalorder %s34, 1
      %p167 = por %p165, %p166
      %p169 = scmp.ne.s32.totalorder %s154, %s168
      %p170 = scmp.eq.s32.totalorder %s34, 0
      %p171 = por %p169, %p170
      %s173 = sadd.s32 %s172, 1
      %p176 = scmp.eq.s32.totalorder %s28, 1
      %p177 = scmp.ne.s32.totalorder %s172, %s174
      %p178 = scmp.eq.s32.totalorder %s28, 0
      %p179 = por %p177, %p178
      %p180 = scmp.ne.s32.totalorder %s172, %s174
      %p181 = scmp.eq.s32.totalorder %s33, 1
      %p182 = por %p180, %p181
      %p183 = scmp.ne.s32.totalorder %s174, %s175
      %p184 = scmp.eq.s32.totalorder %s33, 0
      %p185 = por %p183, %p184
      %p186 = scmp.ne.s32.totalorder %s174, %s175
      %p187 = scmp.eq.s32.totalorder %s34, 1
      %p188 = por %p186, %p187
      %p190 = scmp.ne.s32.totalorder %s175, %s189
      %p191 = scmp.eq.s32.totalorder %s34, 0
      %p192 = por %p190, %p191
      %s193 = ssub.s32 %s28, %s35
      %p194 = scmp.eq.s32.totalorder %s193, 0
      %s196 = sadd.s32 %s195, 1
      %s197 = scalar_select %p194, %s195, %s196
      %p200 = pneg %p194
      %p201 = scmp.eq.s32.totalorder %s28, 1
      %p202 = por %p200, %p201
      %p203 = scmp.ne.s32.totalorder %s195, %s198
      %p204 = scmp.eq.s32.totalorder %s28, 0
      %p205 = por %p203, %p204
      %p206 = scmp.ne.s32.totalorder %s195, %s198
      %p207 = scmp.eq.s32.totalorder %s33, 1
      %p208 = por %p206, %p207
      %p209 = scmp.ne.s32.totalorder %s198, %s199
      %p210 = scmp.eq.s32.totalorder %s33, 0
      %p211 = por %p209, %p210
      %p212 = scmp.ne.s32.totalorder %s198, %s199
      %p213 = scmp.eq.s32.totalorder %s34, 1
      %p214 = por %p212, %p213
      %p216 = scmp.ne.s32.totalorder %s199, %s215
      %p217 = scmp.eq.s32.totalorder %s34, 0
      %p218 = por %p216, %p217
      %s219 = ssub.s32 %s28, %s35
      %p220 = scmp.eq.s32.totalorder %s219, 0
      %s222 = sadd.s32 %s221, 1
      %s223 = scalar_select %p220, %s221, %s222
      %p226 = pneg %p220
      %p227 = scmp.eq.s32.totalorder %s28, 1
      %p228 = por %p226, %p227
      %p229 = scmp.ne.s32.totalorder %s221, %s224
      %p230 = scmp.eq.s32.totalorder %s28, 0
      %p231 = por %p229, %p230
      %p232 = scmp.ne.s32.totalorder %s221, %s224
      %p233 = scmp.eq.s32.totalorder %s33, 1
      %p234 = por %p232, %p233
      %p235 = scmp.ne.s32.totalorder %s224, %s225
      %p236 = scmp.eq.s32.totalorder %s33, 0
      %p237 = por %p235, %p236
      %p238 = scmp.ne.s32.totalorder %s224, %s225
      %p239 = scmp.eq.s32.totalorder %s34, 1
      %p240 = por %p238, %p239
      %p242 = scmp.ne.s32.totalorder %s225, %s241
      %p243 = scmp.eq.s32.totalorder %s34, 0
      %p244 = por %p242, %p243
      %p245 = scmp.le.s32.totalorder 1, %s28
      %p246 = scmp.lt.s32.totalorder %s28, 3
      %p247 = pnand %p245, %p246
      %p248 = pneg %p247
      // Predicated region
      $region9: #{tpu_custom_call.1} parent=5 // pred_check
        _
      $region10: #{tpu_custom_call.1} parent=5 // pred_check_branch
        %250 = sbr.rel (%p247) target = $region12
      $region11: #{tpu_custom_call.1} parent=5 // pred_region
        %s251 = ssub.s32 %s28, 1
        // Predicated region
        $region13: #{tpu_custom_call.1} parent=11 // pred_check
          %p252 = pneg %p101
        $region14: #{tpu_custom_call.1} parent=11 // pred_check_branch
          %254 = sbr.rel (%p252) target = $region16
        $region15: #{tpu_custom_call.1} parent=11 // pred_region
          %256 = vsyncadd [#allocation6], 0
          %s257 = sshll.u32 %s2, 4
          %s258 = int_to_ptr.hbm [resolvable:$true] %s257
          %s259 = sshll.u32 [#allocation7], 4
          %s260 = int_to_ptr.vmem [resolvable:$true] %s259
          %265 = dma.hbm_to_vmem [thread:$0]  %s258, 4096, %s260, [#allocation6], 128, 128, 8
        $region16: #{tpu_custom_call.1} parent=11 // pred_fallthru
          _
        // Predicated region
        $region17: #{tpu_custom_call.1} parent=11 // pred_check
          %p266 = pneg %p122
        $region18: #{tpu_custom_call.1} parent=11 // pred_check_branch
          %268 = sbr.rel (%p266) target = $region20
        $region19: #{tpu_custom_call.1} parent=11 // pred_region
          _
        $region20: #{tpu_custom_call.1} parent=11 // pred_fallthru
          _
        // Predicated region
        $region21: #{tpu_custom_call.1} parent=11 // pred_check
          %p269 = pneg %p143
        $region22: #{tpu_custom_call.1} parent=11 // pred_check_branch
          %271 = sbr.rel (%p269) target = $region24
        $region23: #{tpu_custom_call.1} parent=11 // pred_region
          _
        $region24: #{tpu_custom_call.1} parent=11 // pred_fallthru
          _
        // Predicated region
        $region25: #{tpu_custom_call.1} parent=11 // pred_check
          %p272 = pneg %p164
        $region26: #{tpu_custom_call.1} parent=11 // pred_check_branch
          %274 = sbr.rel (%p272) target = $region28
        $region27: #{tpu_custom_call.1} parent=11 // pred_region
          %276 = vsyncadd [#allocation9], 0
          %s277 = sshll.u32 %s5, 4
          %s278 = int_to_ptr.hbm [resolvable:$true] %s277
          %s279 = sshll.u32 [#allocation8], 4
          %s280 = int_to_ptr.vmem [resolvable:$true] %s279
          %285 = dma.hbm_to_vmem [thread:$0]  %s278, 12288, %s280, [#allocation9], 768, 768, 48
        $region28: #{tpu_custom_call.1} parent=11 // pred_fallthru
          _
        // Predicated region
        $region29: #{tpu_custom_call.1} parent=11 // pred_check
          %p286 = pneg %p185
        $region30: #{tpu_custom_call.1} parent=11 // pred_check_branch
          %288 = sbr.rel (%p286) target = $region32
        $region31: #{tpu_custom_call.1} parent=11 // pred_region
          %290 = vsyncadd [#allocation9], 0
          %s291 = sshll.u32 %s6, 4
          %s292 = int_to_ptr.hbm [resolvable:$true] %s291
          %s293 = sshll.u32 [#allocation10], 4
          %s294 = int_to_ptr.vmem [resolvable:$true] %s293
          %299 = dma.hbm_to_vmem [thread:$0]  %s292, 4096, %s294, [#allocation9], 128, 128, 8
        $region32: #{tpu_custom_call.1} parent=11 // pred_fallthru
          _
      $region12: #{tpu_custom_call.1} parent=5 // pred_fallthru
        _
      %p300 = scmp.lt.s32.totalorder %s28, 2
      // Predicated region
      $region33: #{tpu_custom_call.1} parent=5 // pred_check
        %p301 = pneg %p300
      $region34: #{tpu_custom_call.1} parent=5 // pred_check_branch
        %303 = sbr.rel (%p301) target = $region36
      $region35: #{tpu_custom_call.1} parent=5 // pred_region
        // Predicated region
        $region37: #{tpu_custom_call.1} parent=35 // pred_check
          %p304 = pneg %p48
        $region38: #{tpu_custom_call.1} parent=35 // pred_check_branch
          %306 = sbr.rel (%p304) target = $region40
        $region39: #{tpu_custom_call.1} parent=35 // pred_region
          %s307 = sand.u32 %s38, 1
          %s308 = scalar_lea.sflag [#allocation3], %s307
          %s309 = sand.u32 %s38, 1
          %s310 = smul.addr %s309, 128
          %s311 = scalar_lea.vmem [#allocation2], %s310
          %313 = vsyncadd %s308, 0
          %s314 = smul.addr %s28, 16
          %s315 = smul.addr %s314, 8
          %s316 = scalar_lea.hbm %s0, %s315
          %s317 = sshll.u32 %s316, 4
          %s318 = int_to_ptr.hbm [resolvable:$true] %s317
          %s319 = sshll.u32 %s311, 4
          %s320 = int_to_ptr.vmem [resolvable:$true] %s319
          %325 = dma.hbm_to_vmem [thread:$0]  %s318, 2048, %s320, %s308, 128, 128, 8
        $region40: #{tpu_custom_call.1} parent=35 // pred_fallthru
          _
        // Predicated region
        $region41: #{tpu_custom_call.1} parent=35 // pred_check
          %p326 = pneg %p74
        $region42: #{tpu_custom_call.1} parent=35 // pred_check_branch
          %328 = sbr.rel (%p326) target = $region44
        $region43: #{tpu_custom_call.1} parent=35 // pred_region
          %s329 = sand.u32 %s28, 1
          %s330 = scalar_lea.sflag [#allocation6], %s329
          %s331 = sand.u32 %s64, 1
          %s332 = smul.addr %s331, 128
          %s333 = scalar_lea.vmem [#allocation5], %s332
          %335 = vsyncadd %s330, 0
          %s336 = smul.addr %s28, 16
          %s337 = smul.addr %s336, 8
          %s338 = scalar_lea.hbm %s1, %s337
          %s339 = sshll.u32 %s338, 4
          %s340 = int_to_ptr.hbm [resolvable:$true] %s339
          %s341 = sshll.u32 %s333, 4
          %s342 = int_to_ptr.vmem [resolvable:$true] %s341
          %347 = dma.hbm_to_vmem [thread:$0]  %s340, 2048, %s342, %s330, 128, 128, 8
        $region44: #{tpu_custom_call.1} parent=35 // pred_fallthru
          _
      $region36: #{tpu_custom_call.1} parent=5 // pred_fallthru
        _
      %p348 = scmp.le.s32.totalorder 1, %s28
      %p349 = scmp.lt.s32.totalorder %s28, 3
      %p350 = pnand %p348, %p349
      %p351 = pneg %p350
      // Predicated region
      $region45: #{tpu_custom_call.1} parent=5 // pred_check
        _
      $region46: #{tpu_custom_call.1} parent=5 // pred_check_branch
        %353 = sbr.rel (%p350) target = $region48
      $region47: #{tpu_custom_call.1} parent=5 // pred_region
        %s354 = ssub.s32 %s28, 1
        %s355 = sand.u32 %s41, 1
        %s356 = scalar_lea.sflag [#allocation3], %s355
        %s357 = sand.u32 %s41, 1
        %s358 = smul.addr %s357, 128
        %s359 = scalar_lea.vmem [#allocation2], %s358
        // Predicated region
        $region49: #{tpu_custom_call.1} parent=47 // pred_check
          %p360 = pneg %p54
        $region50: #{tpu_custom_call.1} parent=47 // pred_check_branch
          %362 = sbr.rel (%p360) target = $region52
        $region51: #{tpu_custom_call.1} parent=47 // pred_region
          %364 = dma.done %s356, 2048
        $region52: #{tpu_custom_call.1} parent=47 // pred_fallthru
          _
        %s365 = sand.u32 %s33, 1
        %s366 = scalar_lea.sflag [#allocation6], %s365
        %s367 = sand.u32 %s67, 1
        %s368 = smul.addr %s367, 128
        %s369 = scalar_lea.vmem [#allocation5], %s368
        // Predicated region
        $region53: #{tpu_custom_call.1} parent=47 // pred_check
          %p370 = pneg %p80
        $region54: #{tpu_custom_call.1} parent=47 // pred_check_branch
          %372 = sbr.rel (%p370) target = $region56
        $region55: #{tpu_custom_call.1} parent=47 // pred_region
          %374 = dma.done %s366, 2048
        $region56: #{tpu_custom_call.1} parent=47 // pred_fallthru
          _
        // Predicated region
        $region57: #{tpu_custom_call.1} parent=47 // pred_check
          %p375 = pneg %p101
        $region58: #{tpu_custom_call.1} parent=47 // pred_check_branch
          %377 = sbr.rel (%p375) target = $region60
        $region59: #{tpu_custom_call.1} parent=47 // pred_region
          %379 = dma.done [#allocation6], 4096
        $region60: #{tpu_custom_call.1} parent=47 // pred_fallthru
          _
        // Predicated region
        $region61: #{tpu_custom_call.1} parent=47 // pred_check
          %p380 = pneg %p164
        $region62: #{tpu_custom_call.1} parent=47 // pred_check_branch
          %382 = sbr.rel (%p380) target = $region64
        $region63: #{tpu_custom_call.1} parent=47 // pred_region
          %384 = dma.done [#allocation9], 12288
        $region64: #{tpu_custom_call.1} parent=47 // pred_fallthru
          _
        // Predicated region
        $region65: #{tpu_custom_call.1} parent=47 // pred_check
          %p385 = pneg %p185
        $region66: #{tpu_custom_call.1} parent=47 // pred_check_branch
          %387 = sbr.rel (%p385) target = $region68
        $region67: #{tpu_custom_call.1} parent=47 // pred_region
          %389 = dma.done [#allocation9], 4096
        $region68: #{tpu_custom_call.1} parent=47 // pred_fallthru
          _
        %s390 = sand.u32 %s41, 1
        %s391 = scalar_lea.sflag [#allocation3], %s390
        %s392 = sand.u32 %s41, 1
        %s393 = smul.addr %s392, 128
        %s394 = scalar_lea.vmem [#allocation2], %s393
        %p395 = pneg %p54
        %p396 = pneg %p51
        %s397 = sand.u32 %s33, 1
        %s398 = scalar_lea.sflag [#allocation6], %s397
        %s399 = sand.u32 %s67, 1
        %s400 = smul.addr %s399, 128
        %s401 = scalar_lea.vmem [#allocation5], %s400
        %p402 = pneg %p80
        %p403 = pneg %p77
        %p404 = pneg %p101
        %p405 = pneg %p98
        %p406 = pneg %p122
        %p407 = pneg %p119
        %p408 = pneg %p143
        %p409 = pneg %p140
        %p410 = pneg %p164
        %p411 = pneg %p161
        %p412 = pneg %p185
        %p413 = pneg %p182
        %p414 = pneg %p211
        %p415 = pneg %p208
        %s416 = sand.u32 %s198, 1
        %s417 = scalar_lea.sflag [#allocation4], %s416
        %s418 = sand.u32 %s198, 1
        %s419 = smul.addr %s418, 128
        %s420 = scalar_lea.vmem [#allocation11], %s419
        %p421 = pneg %p237
        %p422 = pneg %p234
        %s423 = sand.u32 %s224, 1
        %s424 = scalar_lea.sflag [#allocation13], %s423
        %s425 = sand.u32 %s224, 1
        %s426 = smul.addr %s425, 512
        %s427 = scalar_lea.vmem [#allocation12], %s426
        %v428 = vld [vmem:[%s359] sm:$0xff]
        %v429 = vld [vmem:[%s359 + $0x8] sm:$0xff]
        %v430 = vld [vmem:[%s359 + $0x10] sm:$0xff]
        %v431 = vld [vmem:[%s359 + $0x18] sm:$0xff]
        %v432 = vld [vmem:[%s359 + $0x20] sm:$0xff]
        %v433 = vld [vmem:[%s359 + $0x28] sm:$0xff]
        %v434 = vld [vmem:[%s359 + $0x30] sm:$0xff]
        %v435 = vld [vmem:[%s359 + $0x38] sm:$0xff]
        %v436 = vld [vmem:[%s359 + $0x40] sm:$0xff]
        %v437 = vld [vmem:[%s359 + $0x48] sm:$0xff]
        %v438 = vld [vmem:[%s359 + $0x50] sm:$0xff]
        %v439 = vld [vmem:[%s359 + $0x58] sm:$0xff]
        %v440 = vld [vmem:[%s359 + $0x60] sm:$0xff]
        %v441 = vld [vmem:[%s359 + $0x68] sm:$0xff]
        %v442 = vld [vmem:[%s359 + $0x70] sm:$0xff]
        %v443 = vld [vmem:[%s359 + $0x78] sm:$0xff]
        %v444 = vld [vmem:[%s3] sm:$0x1]
        %v445 = vld [vmem:[%s4] sm:$0x1]
        %446 = vadd.xlane.f32.xlu0 %v428
        %v447 = vpop.xlane.xlu0 %446
        %448 = vadd.xlane.f32.xlu0 %v429
        %v449 = vpop.xlane.xlu0 %448
        %450 = vadd.xlane.f32.xlu0 %v430
        %v451 = vpop.xlane.xlu0 %450
        %452 = vadd.xlane.f32.xlu0 %v431
        %v453 = vpop.xlane.xlu0 %452
        %454 = vadd.xlane.f32.xlu0 %v432
        %v455 = vpop.xlane.xlu0 %454
        %456 = vadd.xlane.f32.xlu0 %v433
        %v457 = vpop.xlane.xlu0 %456
        %458 = vadd.xlane.f32.xlu0 %v434
        %v459 = vpop.xlane.xlu0 %458
        %460 = vadd.xlane.f32.xlu0 %v435
        %v461 = vpop.xlane.xlu0 %460
        %462 = vadd.xlane.f32.xlu0 %v436
        %v463 = vpop.xlane.xlu0 %462
        %464 = vadd.xlane.f32.xlu0 %v437
        %v465 = vpop.xlane.xlu0 %464
        %466 = vadd.xlane.f32.xlu0 %v438
        %v467 = vpop.xlane.xlu0 %466
        %468 = vadd.xlane.f32.xlu0 %v439
        %v469 = vpop.xlane.xlu0 %468
        %470 = vadd.xlane.f32.xlu0 %v440
        %v471 = vpop.xlane.xlu0 %470
        %472 = vadd.xlane.f32.xlu0 %v441
        %v473 = vpop.xlane.xlu0 %472
        %474 = vadd.xlane.f32.xlu0 %v442
        %v475 = vpop.xlane.xlu0 %474
        %476 = vadd.xlane.f32.xlu0 %v443
        %v477 = vpop.xlane.xlu0 %476
        %v478 = vrcp.pop 128.0
        %v479 = vmul.f32 128.0, %v478
        %v480 = vsub.f32 1.0, %v479
        %v481 = vmul.f32 %v478, %v480
        %v482 = vadd.f32 %v478, %v481
        %vm483 = vweird.f32 %v478
        %v484 = vsel %vm483, %v478, %v482
        %v485 = vmul.f32 %v447, %v484
        %v486 = vmul.f32 %v449, %v484
        %v487 = vmul.f32 %v451, %v484
        %v488 = vmul.f32 %v453, %v484
        %v489 = vmul.f32 %v455, %v484
        %v490 = vmul.f32 %v457, %v484
        %v491 = vmul.f32 %v459, %v484
        %v492 = vmul.f32 %v461, %v484
        %v493 = vmul.f32 %v463, %v484
        %v494 = vmul.f32 %v465, %v484
        %v495 = vmul.f32 %v467, %v484
        %v496 = vmul.f32 %v469, %v484
        %v497 = vmul.f32 %v471, %v484
        %v498 = vmul.f32 %v473, %v484
        %v499 = vmul.f32 %v475, %v484
        %v500 = vmul.f32 %v477, %v484
        %v501 = vsub.f32 %v428, %v485
        %v502 = vsub.f32 %v429, %v486
        %v503 = vsub.f32 %v430, %v487
        %v504 = vsub.f32 %v431, %v488
        %v505 = vsub.f32 %v432, %v489
        %v506 = vsub.f32 %v433, %v490
        %v507 = vsub.f32 %v434, %v491
        %v508 = vsub.f32 %v435, %v492
        %v509 = vsub.f32 %v436, %v493
        %v510 = vsub.f32 %v437, %v494
        %v511 = vsub.f32 %v438, %v495
        %v512 = vsub.f32 %v439, %v496
        %v513 = vsub.f32 %v440, %v497
        %v514 = vsub.f32 %v441, %v498
        %v515 = vsub.f32 %v442, %v499
        %v516 = vsub.f32 %v443, %v500
        %v517 = vmul.f32 %v501, %v501
        %v518 = vmul.f32 %v502, %v502
        %v519 = vmul.f32 %v503, %v503
        %v520 = vmul.f32 %v504, %v504
        %v521 = vmul.f32 %v505, %v505
        %v522 = vmul.f32 %v506, %v506
        %v523 = vmul.f32 %v507, %v507
        %v524 = vmul.f32 %v508, %v508
        %v525 = vmul.f32 %v509, %v509
        %v526 = vmul.f32 %v510, %v510
        %v527 = vmul.f32 %v511, %v511
        %v528 = vmul.f32 %v512, %v512
        %v529 = vmul.f32 %v513, %v513
        %v530 = vmul.f32 %v514, %v514
        %v531 = vmul.f32 %v515, %v515
        %v532 = vmul.f32 %v516, %v516
        %533 = vadd.xlane.f32.xlu0 %v517
        %v534 = vpop.xlane.xlu0 %533
        %535 = vadd.xlane.f32.xlu0 %v518
        %v536 = vpop.xlane.xlu0 %535
        %537 = vadd.xlane.f32.xlu0 %v519
        %v538 = vpop.xlane.xlu0 %537
        %539 = vadd.xlane.f32.xlu0 %v520
        %v540 = vpop.xlane.xlu0 %539
        %541 = vadd.xlane.f32.xlu0 %v521
        %v542 = vpop.xlane.xlu0 %541
        %543 = vadd.xlane.f32.xlu0 %v522
        %v544 = vpop.xlane.xlu0 %543
        %545 = vadd.xlane.f32.xlu0 %v523
        %v546 = vpop.xlane.xlu0 %545
        %547 = vadd.xlane.f32.xlu0 %v524
        %v548 = vpop.xlane.xlu0 %547
        %549 = vadd.xlane.f32.xlu0 %v525
        %v550 = vpop.xlane.xlu0 %549
        %551 = vadd.xlane.f32.xlu0 %v526
        %v552 = vpop.xlane.xlu0 %551
        %553 = vadd.xlane.f32.xlu0 %v527
        %v554 = vpop.xlane.xlu0 %553
        %555 = vadd.xlane.f32.xlu0 %v528
        %v556 = vpop.xlane.xlu0 %555
        %557 = vadd.xlane.f32.xlu0 %v529
        %v558 = vpop.xlane.xlu0 %557
        %559 = vadd.xlane.f32.xlu0 %v530
        %v560 = vpop.xlane.xlu0 %559
        %561 = vadd.xlane.f32.xlu0 %v531
        %v562 = vpop.xlane.xlu0 %561
        %563 = vadd.xlane.f32.xlu0 %v532
        %v564 = vpop.xlane.xlu0 %563
        %v565 = vmul.f32 %v534, %v484
        %v566 = vmul.f32 %v536, %v484
        %v567 = vmul.f32 %v538, %v484
        %v568 = vmul.f32 %v540, %v484
        %v569 = vmul.f32 %v542, %v484
        %v570 = vmul.f32 %v544, %v484
        %v571 = vmul.f32 %v546, %v484
        %v572 = vmul.f32 %v548, %v484
        %v573 = vmul.f32 %v550, %v484
        %v574 = vmul.f32 %v552, %v484
        %v575 = vmul.f32 %v554, %v484
        %v576 = vmul.f32 %v556, %v484
        %v577 = vmul.f32 %v558, %v484
        %v578 = vmul.f32 %v560, %v484
        %v579 = vmul.f32 %v562, %v484
        %v580 = vmul.f32 %v564, %v484
        %v581 = vadd.f32 %v565, 1e-05
        %v582 = vadd.f32 %v566, 1e-05
        %v583 = vadd.f32 %v567, 1e-05
        %v584 = vadd.f32 %v568, 1e-05
        %v585 = vadd.f32 %v569, 1e-05
        %v586 = vadd.f32 %v570, 1e-05
        %v587 = vadd.f32 %v571, 1e-05
        %v588 = vadd.f32 %v572, 1e-05
        %v589 = vadd.f32 %v573, 1e-05
        %v590 = vadd.f32 %v574, 1e-05
        %v591 = vadd.f32 %v575, 1e-05
        %v592 = vadd.f32 %v576, 1e-05
        %v593 = vadd.f32 %v577, 1e-05
        %v594 = vadd.f32 %v578, 1e-05
        %v595 = vadd.f32 %v579, 1e-05
        %v596 = vadd.f32 %v580, 1e-05
        %v597 = vrsqrt.pop %v581
        %v598 = vmul.f32 %v597, %v581
        %v599 = vmul.f32 %v598, %v597
        %v600 = vmul.f32 0.5, %v599
        %v601 = vsub.f32 1.5, %v600
        %v602 = vmul.f32 %v597, %v601
        %vm603 = vweird.f32 %v581
        %vm604 = vweird.f32 %v597
        %vm605 = vmor %vm603, %vm604
        %v606 = vsel %vm605, %v597, %v602
        %v607 = vrsqrt.pop %v582
        %v608 = vmul.f32 %v607, %v582
        %v609 = vmul.f32 %v608, %v607
        %v610 = vmul.f32 0.5, %v609
        %v611 = vsub.f32 1.5, %v610
        %v612 = vmul.f32 %v607, %v611
        %vm613 = vweird.f32 %v582
        %vm614 = vweird.f32 %v607
        %vm615 = vmor %vm613, %vm614
        %v616 = vsel %vm615, %v607, %v612
        %v617 = vrsqrt.pop %v583
        %v618 = vmul.f32 %v617, %v583
        %v619 = vmul.f32 %v618, %v617
        %v620 = vmul.f32 0.5, %v619
        %v621 = vsub.f32 1.5, %v620
        %v622 = vmul.f32 %v617, %v621
        %vm623 = vweird.f32 %v583
        %vm624 = vweird.f32 %v617
        %vm625 = vmor %vm623, %vm624
        %v626 = vsel %vm625, %v617, %v622
        %v627 = vrsqrt.pop %v584
        %v628 = vmul.f32 %v627, %v584
        %v629 = vmul.f32 %v628, %v627
        %v630 = vmul.f32 0.5, %v629
        %v631 = vsub.f32 1.5, %v630
        %v632 = vmul.f32 %v627, %v631
        %vm633 = vweird.f32 %v584
        %vm634 = vweird.f32 %v627
        %vm635 = vmor %vm633, %vm634
        %v636 = vsel %vm635, %v627, %v632
        %v637 = vrsqrt.pop %v585
        %v638 = vmul.f32 %v637, %v585
        %v639 = vmul.f32 %v638, %v637
        %v640 = vmul.f32 0.5, %v639
        %v641 = vsub.f32 1.5, %v640
        %v642 = vmul.f32 %v637, %v641
        %vm643 = vweird.f32 %v585
        %vm644 = vweird.f32 %v637
        %vm645 = vmor %vm643, %vm644
        %v646 = vsel %vm645, %v637, %v642
        %v647 = vrsqrt.pop %v586
        %v648 = vmul.f32 %v647, %v586
        %v649 = vmul.f32 %v648, %v647
        %v650 = vmul.f32 0.5, %v649
        %v651 = vsub.f32 1.5, %v650
        %v652 = vmul.f32 %v647, %v651
        %vm653 = vweird.f32 %v586
        %vm654 = vweird.f32 %v647
        %vm655 = vmor %vm653, %vm654
        %v656 = vsel %vm655, %v647, %v652
        %v657 = vrsqrt.pop %v587
        %v658 = vmul.f32 %v657, %v587
        %v659 = vmul.f32 %v658, %v657
        %v660 = vmul.f32 0.5, %v659
        %v661 = vsub.f32 1.5, %v660
        %v662 = vmul.f32 %v657, %v661
        %vm663 = vweird.f32 %v587
        %vm664 = vweird.f32 %v657
        %vm665 = vmor %vm663, %vm664
        %v666 = vsel %vm665, %v657, %v662
        %v667 = vrsqrt.pop %v588
        %v668 = vmul.f32 %v667, %v588
        %v669 = vmul.f32 %v668, %v667
        %v670 = vmul.f32 0.5, %v669
        %v671 = vsub.f32 1.5, %v670
        %v672 = vmul.f32 %v667, %v671
        %vm673 = vweird.f32 %v588
        %vm674 = vweird.f32 %v667
        %vm675 = vmor %vm673, %vm674
        %v676 = vsel %vm675, %v667, %v672
        %v677 = vrsqrt.pop %v589
        %v678 = vmul.f32 %v677, %v589
        %v679 = vmul.f32 %v678, %v677
        %v680 = vmul.f32 0.5, %v679
        %v681 = vsub.f32 1.5, %v680
        %v682 = vmul.f32 %v677, %v681
        %vm683 = vweird.f32 %v589
        %vm684 = vweird.f32 %v677
        %vm685 = vmor %vm683, %vm684
        %v686 = vsel %vm685, %v677, %v682
        %v687 = vrsqrt.pop %v590
        %v688 = vmul.f32 %v687, %v590
        %v689 = vmul.f32 %v688, %v687
        %v690 = vmul.f32 0.5, %v689
        %v691 = vsub.f32 1.5, %v690
        %v692 = vmul.f32 %v687, %v691
        %vm693 = vweird.f32 %v590
        %vm694 = vweird.f32 %v687
        %vm695 = vmor %vm693, %vm694
        %v696 = vsel %vm695, %v687, %v692
        %v697 = vrsqrt.pop %v591
        %v698 = vmul.f32 %v697, %v591
        %v699 = vmul.f32 %v698, %v697
        %v700 = vmul.f32 0.5, %v699
        %v701 = vsub.f32 1.5, %v700
        %v702 = vmul.f32 %v697, %v701
        %vm703 = vweird.f32 %v591
        %vm704 = vweird.f32 %v697
        %vm705 = vmor %vm703, %vm704
        %v706 = vsel %vm705, %v697, %v702
        %v707 = vrsqrt.pop %v592
        %v708 = vmul.f32 %v707, %v592
        %v709 = vmul.f32 %v708, %v707
        %v710 = vmul.f32 0.5, %v709
        %v711 = vsub.f32 1.5, %v710
        %v712 = vmul.f32 %v707, %v711
        %vm713 = vweird.f32 %v592
        %vm714 = vweird.f32 %v707
        %vm715 = vmor %vm713, %vm714
        %v716 = vsel %vm715, %v707, %v712
        %v717 = vrsqrt.pop %v593
        %v718 = vmul.f32 %v717, %v593
        %v719 = vmul.f32 %v718, %v717
        %v720 = vmul.f32 0.5, %v719
        %v721 = vsub.f32 1.5, %v720
        %v722 = vmul.f32 %v717, %v721
        %vm723 = vweird.f32 %v593
        %vm724 = vweird.f32 %v717
        %vm725 = vmor %vm723, %vm724
        %v726 = vsel %vm725, %v717, %v722
        %v727 = vrsqrt.pop %v594
        %v728 = vmul.f32 %v727, %v594
        %v729 = vmul.f32 %v728, %v727
        %v730 = vmul.f32 0.5, %v729
        %v731 = vsub.f32 1.5, %v730
        %v732 = vmul.f32 %v727, %v731
        %vm733 = vweird.f32 %v594
        %vm734 = vweird.f32 %v727
        %vm735 = vmor %vm733, %vm734
        %v736 = vsel %vm735, %v727, %v732
        %v737 = vrsqrt.pop %v595
        %v738 = vmul.f32 %v737, %v595
        %v739 = vmul.f32 %v738, %v737
        %v740 = vmul.f32 0.5, %v739
        %v741 = vsub.f32 1.5, %v740
        %v742 = vmul.f32 %v737, %v741
        %vm743 = vweird.f32 %v595
        %vm744 = vweird.f32 %v737
        %vm745 = vmor %vm743, %vm744
        %v746 = vsel %vm745, %v737, %v742
        %v747 = vrsqrt.pop %v596
        %v748 = vmul.f32 %v747, %v596
        %v749 = vmul.f32 %v748, %v747
        %v750 = vmul.f32 0.5, %v749
        %v751 = vsub.f32 1.5, %v750
        %v752 = vmul.f32 %v747, %v751
        %vm753 = vweird.f32 %v596
        %vm754 = vweird.f32 %v747
        %vm755 = vmor %vm753, %vm754
        %v756 = vsel %vm755, %v747, %v752
        %v757 = vmul.f32 %v501, %v606
        %v758 = vmul.f32 %v502, %v616
        %v759 = vmul.f32 %v503, %v626
        %v760 = vmul.f32 %v504, %v636
        %v761 = vmul.f32 %v505, %v646
        %v762 = vmul.f32 %v506, %v656
        %v763 = vmul.f32 %v507, %v666
        %v764 = vmul.f32 %v508, %v676
        %v765 = vmul.f32 %v509, %v686
        %v766 = vmul.f32 %v510, %v696
        %v767 = vmul.f32 %v511, %v706
        %v768 = vmul.f32 %v512, %v716
        %v769 = vmul.f32 %v513, %v726
        %v770 = vmul.f32 %v514, %v736
        %v771 = vmul.f32 %v515, %v746
        %v772 = vmul.f32 %v516, %v756
        %v774 = vperm.slane %v444, 0
        %v776 = vmul.f32 %v757, %v774
        %v777 = vmul.f32 %v758, %v774
        %v778 = vmul.f32 %v759, %v774
        %v779 = vmul.f32 %v760, %v774
        %v780 = vmul.f32 %v761, %v774
        %v781 = vmul.f32 %v762, %v774
        %v782 = vmul.f32 %v763, %v774
        %v783 = vmul.f32 %v764, %v774
        %v784 = vmul.f32 %v765, %v774
        %v785 = vmul.f32 %v766, %v774
        %v786 = vmul.f32 %v767, %v774
        %v787 = vmul.f32 %v768, %v774
        %v788 = vmul.f32 %v769, %v774
        %v789 = vmul.f32 %v770, %v774
        %v790 = vmul.f32 %v771, %v774
        %v791 = vmul.f32 %v772, %v774
        %v793 = vperm.slane %v445, 0
        %v795 = vadd.f32 %v776, %v793
        %v796 = vadd.f32 %v777, %v793
        %v797 = vadd.f32 %v778, %v793
        %v798 = vadd.f32 %v779, %v793
        %v799 = vadd.f32 %v780, %v793
        %v800 = vadd.f32 %v781, %v793
        %v801 = vadd.f32 %v782, %v793
        %v802 = vadd.f32 %v783, %v793
        %v803 = vadd.f32 %v784, %v793
        %v804 = vadd.f32 %v785, %v793
        %v805 = vadd.f32 %v786, %v793
        %v806 = vadd.f32 %v787, %v793
        %v807 = vadd.f32 %v788, %v793
        %v808 = vadd.f32 %v789, %v793
        %v809 = vadd.f32 %v790, %v793
        %v810 = vadd.f32 %v791, %v793
        %v811 = vld [vmem:[#allocation8] sm:$0xff]
        %v812 = vld [vmem:[#allocation8 + $0x8] sm:$0xff]
        %v813 = vld [vmem:[#allocation8 + $0x10] sm:$0xff]
        %v814 = vld [vmem:[#allocation8 + $0x18] sm:$0xff]
        %v815 = vld [vmem:[#allocation8 + $0x20] sm:$0xff]
        %v816 = vld [vmem:[#allocation8 + $0x28] sm:$0xff]
        %v817 = vld [vmem:[#allocation8 + $0x30] sm:$0xff]
        %v818 = vld [vmem:[#allocation8 + $0x38] sm:$0xff]
        %v819 = vld [vmem:[#allocation8 + $0x40] sm:$0xff]
        %v820 = vld [vmem:[#allocation8 + $0x48] sm:$0xff]
        %v821 = vld [vmem:[#allocation8 + $0x50] sm:$0xff]
        %v822 = vld [vmem:[#allocation8 + $0x58] sm:$0xff]
        %v823 = vld [vmem:[#allocation8 + $0x60] sm:$0xff]
        %v824 = vld [vmem:[#allocation8 + $0x68] sm:$0xff]
        %v825 = vld [vmem:[#allocation8 + $0x70] sm:$0xff]
        %v826 = vld [vmem:[#allocation8 + $0x78] sm:$0xff]
        %v827 = vld [vmem:[#allocation8 + $0x80] sm:$0xff]
        %v828 = vld [vmem:[#allocation8 + $0x88] sm:$0xff]
        %v829 = vld [vmem:[#allocation8 + $0x90] sm:$0xff]
        %v830 = vld [vmem:[#allocation8 + $0x98] sm:$0xff]
        %v831 = vld [vmem:[#allocation8 + $0xa0] sm:$0xff]
        %v832 = vld [vmem:[#allocation8 + $0xa8] sm:$0xff]
        %v833 = vld [vmem:[#allocation8 + $0xb0] sm:$0xff]
        %v834 = vld [vmem:[#allocation8 + $0xb8] sm:$0xff]
        %v835 = vld [vmem:[#allocation8 + $0xc0] sm:$0xff]
        %v836 = vld [vmem:[#allocation8 + $0xc8] sm:$0xff]
        %v837 = vld [vmem:[#allocation8 + $0xd0] sm:$0xff]
        %v838 = vld [vmem:[#allocation8 + $0xd8] sm:$0xff]
        %v839 = vld [vmem:[#allocation8 + $0xe0] sm:$0xff]
        %v840 = vld [vmem:[#allocation8 + $0xe8] sm:$0xff]
        %v841 = vld [vmem:[#allocation8 + $0xf0] sm:$0xff]
        %v842 = vld [vmem:[#allocation8 + $0xf8] sm:$0xff]
        %v843 = vld [vmem:[#allocation8 + $0x100] sm:$0xff]
        %v844 = vld [vmem:[#allocation8 + $0x108] sm:$0xff]
        %v845 = vld [vmem:[#allocation8 + $0x110] sm:$0xff]
        %v846 = vld [vmem:[#allocation8 + $0x118] sm:$0xff]
        %v847 = vld [vmem:[#allocation8 + $0x120] sm:$0xff]
        %v848 = vld [vmem:[#allocation8 + $0x128] sm:$0xff]
        %v849 = vld [vmem:[#allocation8 + $0x130] sm:$0xff]
        %v850 = vld [vmem:[#allocation8 + $0x138] sm:$0xff]
        %v851 = vld [vmem:[#allocation8 + $0x140] sm:$0xff]
        %v852 = vld [vmem:[#allocation8 + $0x148] sm:$0xff]
        %v853 = vld [vmem:[#allocation8 + $0x150] sm:$0xff]
        %v854 = vld [vmem:[#allocation8 + $0x158] sm:$0xff]
        %v855 = vld [vmem:[#allocation8 + $0x160] sm:$0xff]
        %v856 = vld [vmem:[#allocation8 + $0x168] sm:$0xff]
        %v857 = vld [vmem:[#allocation8 + $0x170] sm:$0xff]
        %v858 = vld [vmem:[#allocation8 + $0x178] sm:$0xff]
        %v859 = vld [vmem:[#allocation8 + $0x180] sm:$0xff]
        %v860 = vld [vmem:[#allocation8 + $0x188] sm:$0xff]
        %v861 = vld [vmem:[#allocation8 + $0x190] sm:$0xff]
        %v862 = vld [vmem:[#allocation8 + $0x198] sm:$0xff]
        %v863 = vld [vmem:[#allocation8 + $0x1a0] sm:$0xff]
        %v864 = vld [vmem:[#allocation8 + $0x1a8] sm:$0xff]
        %v865 = vld [vmem:[#allocation8 + $0x1b0] sm:$0xff]
        %v866 = vld [vmem:[#allocation8 + $0x1b8] sm:$0xff]
        %v867 = vld [vmem:[#allocation8 + $0x1c0] sm:$0xff]
        %v868 = vld [vmem:[#allocation8 + $0x1c8] sm:$0xff]
        %v869 = vld [vmem:[#allocation8 + $0x1d0] sm:$0xff]
        %v870 = vld [vmem:[#allocation8 + $0x1d8] sm:$0xff]
        %v871 = vld [vmem:[#allocation8 + $0x1e0] sm:$0xff]
        %v872 = vld [vmem:[#allocation8 + $0x1e8] sm:$0xff]
        %v873 = vld [vmem:[#allocation8 + $0x1f0] sm:$0xff]
        %v874 = vld [vmem:[#allocation8 + $0x1f8] sm:$0xff]
        %v875 = vld [vmem:[#allocation8 + $0x200] sm:$0xff]
        %v876 = vld [vmem:[#allocation8 + $0x208] sm:$0xff]
        %v877 = vld [vmem:[#allocation8 + $0x210] sm:$0xff]
        %v878 = vld [vmem:[#allocation8 + $0x218] sm:$0xff]
        %v879 = vld [vmem:[#allocation8 + $0x220] sm:$0xff]
        %v880 = vld [vmem:[#allocation8 + $0x228] sm:$0xff]
        %v881 = vld [vmem:[#allocation8 + $0x230] sm:$0xff]
        %v882 = vld [vmem:[#allocation8 + $0x238] sm:$0xff]
        %v883 = vld [vmem:[#allocation8 + $0x240] sm:$0xff]
        %v884 = vld [vmem:[#allocation8 + $0x248] sm:$0xff]
        %v885 = vld [vmem:[#allocation8 + $0x250] sm:$0xff]
        %v886 = vld [vmem:[#allocation8 + $0x258] sm:$0xff]
        %v887 = vld [vmem:[#allocation8 + $0x260] sm:$0xff]
        %v888 = vld [vmem:[#allocation8 + $0x268] sm:$0xff]
        %v889 = vld [vmem:[#allocation8 + $0x270] sm:$0xff]
        %v890 = vld [vmem:[#allocation8 + $0x278] sm:$0xff]
        %v891 = vld [vmem:[#allocation8 + $0x280] sm:$0xff]
        %v892 = vld [vmem:[#allocation8 + $0x288] sm:$0xff]
        %v893 = vld [vmem:[#allocation8 + $0x290] sm:$0xff]
        %v894 = vld [vmem:[#allocation8 + $0x298] sm:$0xff]
        %v895 = vld [vmem:[#allocation8 + $0x2a0] sm:$0xff]
        %v896 = vld [vmem:[#allocation8 + $0x2a8] sm:$0xff]
        %v897 = vld [vmem:[#allocation8 + $0x2b0] sm:$0xff]
        %v898 = vld [vmem:[#allocation8 + $0x2b8] sm:$0xff]
        %v899 = vld [vmem:[#allocation8 + $0x2c0] sm:$0xff]
        %v900 = vld [vmem:[#allocation8 + $0x2c8] sm:$0xff]
        %v901 = vld [vmem:[#allocation8 + $0x2d0] sm:$0xff]
        %v902 = vld [vmem:[#allocation8 + $0x2d8] sm:$0xff]
        %v903 = vld [vmem:[#allocation8 + $0x2e0] sm:$0xff]
        %v904 = vld [vmem:[#allocation8 + $0x2e8] sm:$0xff]
        %v905 = vld [vmem:[#allocation8 + $0x2f0] sm:$0xff]
        %v906 = vld [vmem:[#allocation8 + $0x2f8] sm:$0xff]
        %907 = vmatpush.msra.mxu0 %v901
        %908 = vmatpush.msra.mxu0 %v895
        %909 = vmatpush.msra.mxu0 %v889
        %910 = vmatpush.msra.mxu0 %v883
        %911 = vmatpush.msra.mxu0 %v877
        %912 = vmatpush.msra.mxu0 %v871
        %913 = vmatpush.msra.mxu0 %v865
        %914 = vmatpush.msra.mxu0 %v859
        %915 = vmatpush.msra.mxu0 %v853
        %916 = vmatpush.msra.mxu0 %v847
        %917 = vmatpush.msra.mxu0 %v841
        %918 = vmatpush.msra.mxu0 %v835
        %919 = vmatpush.msra.mxu0 %v829
        %920 = vmatpush.msra.mxu0 %v823
        %921 = vmatpush.msra.mxu0 %v817
        %922 = vmatpush.msra.mxu0 %v811
        %923 = vmatmul.f32.gmra.mxu0 %v795
        %v924 = vpop.f32.mrf.mxu0
        %v925 = vadd.f32 0.0, %v924
        %926 = vmatmul.f32.gmra.mxu0 %v796
        %v927 = vpop.f32.mrf.mxu0
        %v928 = vadd.f32 0.0, %v927
        %929 = vmatmul.f32.gmra.mxu0 %v797
        %v930 = vpop.f32.mrf.mxu0
        %v931 = vadd.f32 0.0, %v930
        %932 = vmatmul.f32.gmra.mxu0 %v798
        %v933 = vpop.f32.mrf.mxu0
        %v934 = vadd.f32 0.0, %v933
        %935 = vmatmul.f32.gmra.mxu0 %v799
        %v936 = vpop.f32.mrf.mxu0
        %v937 = vadd.f32 0.0, %v936
        %938 = vmatmul.f32.gmra.mxu0 %v800
        %v939 = vpop.f32.mrf.mxu0
        %v940 = vadd.f32 0.0, %v939
        %941 = vmatmul.f32.gmra.mxu0 %v801
        %v942 = vpop.f32.mrf.mxu0
        %v943 = vadd.f32 0.0, %v942
        %944 = vmatmul.f32.gmra.mxu0 %v802
        %v945 = vpop.f32.mrf.mxu0
        %v946 = vadd.f32 0.0, %v945
        %947 = vmatmul.f32.gmra.mxu0 %v803
        %v948 = vpop.f32.mrf.mxu0
        %v949 = vadd.f32 0.0, %v948
        %950 = vmatmul.f32.gmra.mxu0 %v804
        %v951 = vpop.f32.mrf.mxu0
        %v952 = vadd.f32 0.0, %v951
        %953 = vmatmul.f32.gmra.mxu0 %v805
        %v954 = vpop.f32.mrf.mxu0
        %v955 = vadd.f32 0.0, %v954
        %956 = vmatmul.f32.gmra.mxu0 %v806
        %v957 = vpop.f32.mrf.mxu0
        %v958 = vadd.f32 0.0, %v957
        %959 = vmatmul.f32.gmra.mxu0 %v807
        %v960 = vpop.f32.mrf.mxu0
        %v961 = vadd.f32 0.0, %v960
        %962 = vmatmul.f32.gmra.mxu0 %v808
        %v963 = vpop.f32.mrf.mxu0
        %v964 = vadd.f32 0.0, %v963
        %965 = vmatmul.f32.gmra.mxu0 %v809
        %v966 = vpop.f32.mrf.mxu0
        %v967 = vadd.f32 0.0, %v966
        %968 = vmatmul.f32.gmra.mxu0 %v810
        %v969 = vpop.f32.mrf.mxu0
        %v970 = vadd.f32 0.0, %v969
        %971 = vdwg.mxu0
        %972 = vmatpush.msra.mxu0 %v902
        %973 = vmatpush.msra.mxu0 %v896
        %974 = vmatpush.msra.mxu0 %v890
        %975 = vmatpush.msra.mxu0 %v884
        %976 = vmatpush.msra.mxu0 %v878
        %977 = vmatpush.msra.mxu0 %v872
        %978 = vmatpush.msra.mxu0 %v866
        %979 = vmatpush.msra.mxu0 %v860
        %980 = vmatpush.msra.mxu0 %v854
        %981 = vmatpush.msra.mxu0 %v848
        %982 = vmatpush.msra.mxu0 %v842
        %983 = vmatpush.msra.mxu0 %v836
        %984 = vmatpush.msra.mxu0 %v830
        %985 = vmatpush.msra.mxu0 %v824
        %986 = vmatpush.msra.mxu0 %v818
        %987 = vmatpush.msra.mxu0 %v812
        %988 = vmatmul.f32.gmra.mxu0 %v795
        %v989 = vpop.f32.mrf.mxu0
        %v990 = vadd.f32 0.0, %v989
        %991 = vmatmul.f32.gmra.mxu0 %v796
        %v992 = vpop.f32.mrf.mxu0
        %v993 = vadd.f32 0.0, %v992
        %994 = vmatmul.f32.gmra.mxu0 %v797
        %v995 = vpop.f32.mrf.mxu0
        %v996 = vadd.f32 0.0, %v995
        %997 = vmatmul.f32.gmra.mxu0 %v798
        %v998 = vpop.f32.mrf.mxu0
        %v999 = vadd.f32 0.0, %v998
        %1000 = vmatmul.f32.gmra.mxu0 %v799
        %v1001 = vpop.f32.mrf.mxu0
        %v1002 = vadd.f32 0.0, %v1001
        %1003 = vmatmul.f32.gmra.mxu0 %v800
        %v1004 = vpop.f32.mrf.mxu0
        %v1005 = vadd.f32 0.0, %v1004
        %1006 = vmatmul.f32.gmra.mxu0 %v801
        %v1007 = vpop.f32.mrf.mxu0
        %v1008 = vadd.f32 0.0, %v1007
        %1009 = vmatmul.f32.gmra.mxu0 %v802
        %v1010 = vpop.f32.mrf.mxu0
        %v1011 = vadd.f32 0.0, %v1010
        %1012 = vmatmul.f32.gmra.mxu0 %v803
        %v1013 = vpop.f32.mrf.mxu0
        %v1014 = vadd.f32 0.0, %v1013
        %1015 = vmatmul.f32.gmra.mxu0 %v804
        %v1016 = vpop.f32.mrf.mxu0
        %v1017 = vadd.f32 0.0, %v1016
        %1018 = vmatmul.f32.gmra.mxu0 %v805
        %v1019 = vpop.f32.mrf.mxu0
        %v1020 = vadd.f32 0.0, %v1019
        %1021 = vmatmul.f32.gmra.mxu0 %v806
        %v1022 = vpop.f32.mrf.mxu0
        %v1023 = vadd.f32 0.0, %v1022
        %1024 = vmatmul.f32.gmra.mxu0 %v807
        %v1025 = vpop.f32.mrf.mxu0
        %v1026 = vadd.f32 0.0, %v1025
        %1027 = vmatmul.f32.gmra.mxu0 %v808
        %v1028 = vpop.f32.mrf.mxu0
        %v1029 = vadd.f32 0.0, %v1028
        %1030 = vmatmul.f32.gmra.mxu0 %v809
        %v1031 = vpop.f32.mrf.mxu0
        %v1032 = vadd.f32 0.0, %v1031
        %1033 = vmatmul.f32.gmra.mxu0 %v810
        %v1034 = vpop.f32.mrf.mxu0
        %v1035 = vadd.f32 0.0, %v1034
        %1036 = vdwg.mxu0
        %1037 = vmatpush.msra.mxu0 %v903
        %1038 = vmatpush.msra.mxu0 %v897
        %1039 = vmatpush.msra.mxu0 %v891
        %1040 = vmatpush.msra.mxu0 %v885
        %1041 = vmatpush.msra.mxu0 %v879
        %1042 = vmatpush.msra.mxu0 %v873
        %1043 = vmatpush.msra.mxu0 %v867
        %1044 = vmatpush.msra.mxu0 %v861
        %1045 = vmatpush.msra.mxu0 %v855
        %1046 = vmatpush.msra.mxu0 %v849
        %1047 = vmatpush.msra.mxu0 %v843
        %1048 = vmatpush.msra.mxu0 %v837
        %1049 = vmatpush.msra.mxu0 %v831
        %1050 = vmatpush.msra.mxu0 %v825
        %1051 = vmatpush.msra.mxu0 %v819
        %1052 = vmatpush.msra.mxu0 %v813
        %1053 = vmatmul.f32.gmra.mxu0 %v795
        %v1054 = vpop.f32.mrf.mxu0
        %v1055 = vadd.f32 0.0, %v1054
        %1056 = vmatmul.f32.gmra.mxu0 %v796
        %v1057 = vpop.f32.mrf.mxu0
        %v1058 = vadd.f32 0.0, %v1057
        %1059 = vmatmul.f32.gmra.mxu0 %v797
        %v1060 = vpop.f32.mrf.mxu0
        %v1061 = vadd.f32 0.0, %v1060
        %1062 = vmatmul.f32.gmra.mxu0 %v798
        %v1063 = vpop.f32.mrf.mxu0
        %v1064 = vadd.f32 0.0, %v1063
        %1065 = vmatmul.f32.gmra.mxu0 %v799
        %v1066 = vpop.f32.mrf.mxu0
        %v1067 = vadd.f32 0.0, %v1066
        %1068 = vmatmul.f32.gmra.mxu0 %v800
        %v1069 = vpop.f32.mrf.mxu0
        %v1070 = vadd.f32 0.0, %v1069
        %1071 = vmatmul.f32.gmra.mxu0 %v801
        %v1072 = vpop.f32.mrf.mxu0
        %v1073 = vadd.f32 0.0, %v1072
        %1074 = vmatmul.f32.gmra.mxu0 %v802
        %v1075 = vpop.f32.mrf.mxu0
        %v1076 = vadd.f32 0.0, %v1075
        %1077 = vmatmul.f32.gmra.mxu0 %v803
        %v1078 = vpop.f32.mrf.mxu0
        %v1079 = vadd.f32 0.0, %v1078
        %1080 = vmatmul.f32.gmra.mxu0 %v804
        %v1081 = vpop.f32.mrf.mxu0
        %v1082 = vadd.f32 0.0, %v1081
        %1083 = vmatmul.f32.gmra.mxu0 %v805
        %v1084 = vpop.f32.mrf.mxu0
        %v1085 = vadd.f32 0.0, %v1084
        %1086 = vmatmul.f32.gmra.mxu0 %v806
        %v1087 = vpop.f32.mrf.mxu0
        %v1088 = vadd.f32 0.0, %v1087
        %1089 = vmatmul.f32.gmra.mxu0 %v807
        %v1090 = vpop.f32.mrf.mxu0
        %v1091 = vadd.f32 0.0, %v1090
        %1092 = vmatmul.f32.gmra.mxu0 %v808
        %v1093 = vpop.f32.mrf.mxu0
        %v1094 = vadd.f32 0.0, %v1093
        %1095 = vmatmul.f32.gmra.mxu0 %v809
        %v1096 = vpop.f32.mrf.mxu0
        %v1097 = vadd.f32 0.0, %v1096
        %1098 = vmatmul.f32.gmra.mxu0 %v810
        %v1099 = vpop.f32.mrf.mxu0
        %v1100 = vadd.f32 0.0, %v1099
        %1101 = vdwg.mxu0
        %1102 = vmatpush.msra.mxu0 %v904
        %1103 = vmatpush.msra.mxu0 %v898
        %1104 = vmatpush.msra.mxu0 %v892
        %1105 = vmatpush.msra.mxu0 %v886
        %1106 = vmatpush.msra.mxu0 %v880
        %1107 = vmatpush.msra.mxu0 %v874
        %1108 = vmatpush.msra.mxu0 %v868
        %1109 = vmatpush.msra.mxu0 %v862
        %1110 = vmatpush.msra.mxu0 %v856
        %1111 = vmatpush.msra.mxu0 %v850
        %1112 = vmatpush.msra.mxu0 %v844
        %1113 = vmatpush.msra.mxu0 %v838
        %1114 = vmatpush.msra.mxu0 %v832
        %1115 = vmatpush.msra.mxu0 %v826
        %1116 = vmatpush.msra.mxu0 %v820
        %1117 = vmatpush.msra.mxu0 %v814
        %1118 = vmatmul.f32.gmra.mxu0 %v795
        %v1119 = vpop.f32.mrf.mxu0
        %v1120 = vadd.f32 0.0, %v1119
        %1121 = vmatmul.f32.gmra.mxu0 %v796
        %v1122 = vpop.f32.mrf.mxu0
        %v1123 = vadd.f32 0.0, %v1122
        %1124 = vmatmul.f32.gmra.mxu0 %v797
        %v1125 = vpop.f32.mrf.mxu0
        %v1126 = vadd.f32 0.0, %v1125
        %1127 = vmatmul.f32.gmra.mxu0 %v798
        %v1128 = vpop.f32.mrf.mxu0
        %v1129 = vadd.f32 0.0, %v1128
        %1130 = vmatmul.f32.gmra.mxu0 %v799
        %v1131 = vpop.f32.mrf.mxu0
        %v1132 = vadd.f32 0.0, %v1131
        %1133 = vmatmul.f32.gmra.mxu0 %v800
        %v1134 = vpop.f32.mrf.mxu0
        %v1135 = vadd.f32 0.0, %v1134
        %1136 = vmatmul.f32.gmra.mxu0 %v801
        %v1137 = vpop.f32.mrf.mxu0
        %v1138 = vadd.f32 0.0, %v1137
        %1139 = vmatmul.f32.gmra.mxu0 %v802
        %v1140 = vpop.f32.mrf.mxu0
        %v1141 = vadd.f32 0.0, %v1140
        %1142 = vmatmul.f32.gmra.mxu0 %v803
        %v1143 = vpop.f32.mrf.mxu0
        %v1144 = vadd.f32 0.0, %v1143
        %1145 = vmatmul.f32.gmra.mxu0 %v804
        %v1146 = vpop.f32.mrf.mxu0
        %v1147 = vadd.f32 0.0, %v1146
        %1148 = vmatmul.f32.gmra.mxu0 %v805
        %v1149 = vpop.f32.mrf.mxu0
        %v1150 = vadd.f32 0.0, %v1149
        %1151 = vmatmul.f32.gmra.mxu0 %v806
        %v1152 = vpop.f32.mrf.mxu0
        %v1153 = vadd.f32 0.0, %v1152
        %1154 = vmatmul.f32.gmra.mxu0 %v807
        %v1155 = vpop.f32.mrf.mxu0
        %v1156 = vadd.f32 0.0, %v1155
        %1157 = vmatmul.f32.gmra.mxu0 %v808
        %v1158 = vpop.f32.mrf.mxu0
        %v1159 = vadd.f32 0.0, %v1158
        %1160 = vmatmul.f32.gmra.mxu0 %v809
        %v1161 = vpop.f32.mrf.mxu0
        %v1162 = vadd.f32 0.0, %v1161
        %1163 = vmatmul.f32.gmra.mxu0 %v810
        %v1164 = vpop.f32.mrf.mxu0
        %v1165 = vadd.f32 0.0, %v1164
        %1166 = vdwg.mxu0
        %1167 = vmatpush.msra.mxu0 %v905
        %1168 = vmatpush.msra.mxu0 %v899
        %1169 = vmatpush.msra.mxu0 %v893
        %1170 = vmatpush.msra.mxu0 %v887
        %1171 = vmatpush.msra.mxu0 %v881
        %1172 = vmatpush.msra.mxu0 %v875
        %1173 = vmatpush.msra.mxu0 %v869
        %1174 = vmatpush.msra.mxu0 %v863
        %1175 = vmatpush.msra.mxu0 %v857
        %1176 = vmatpush.msra.mxu0 %v851
        %1177 = vmatpush.msra.mxu0 %v845
        %1178 = vmatpush.msra.mxu0 %v839
        %1179 = vmatpush.msra.mxu0 %v833
        %1180 = vmatpush.msra.mxu0 %v827
        %1181 = vmatpush.msra.mxu0 %v821
        %1182 = vmatpush.msra.mxu0 %v815
        %1183 = vmatmul.f32.gmra.mxu0 %v795
        %v1184 = vpop.f32.mrf.mxu0
        %v1185 = vadd.f32 0.0, %v1184
        %1186 = vmatmul.f32.gmra.mxu0 %v796
        %v1187 = vpop.f32.mrf.mxu0
        %v1188 = vadd.f32 0.0, %v1187
        %1189 = vmatmul.f32.gmra.mxu0 %v797
        %v1190 = vpop.f32.mrf.mxu0
        %v1191 = vadd.f32 0.0, %v1190
        %1192 = vmatmul.f32.gmra.mxu0 %v798
        %v1193 = vpop.f32.mrf.mxu0
        %v1194 = vadd.f32 0.0, %v1193
        %1195 = vmatmul.f32.gmra.mxu0 %v799
        %v1196 = vpop.f32.mrf.mxu0
        %v1197 = vadd.f32 0.0, %v1196
        %1198 = vmatmul.f32.gmra.mxu0 %v800
        %v1199 = vpop.f32.mrf.mxu0
        %v1200 = vadd.f32 0.0, %v1199
        %1201 = vmatmul.f32.gmra.mxu0 %v801
        %v1202 = vpop.f32.mrf.mxu0
        %v1203 = vadd.f32 0.0, %v1202
        %1204 = vmatmul.f32.gmra.mxu0 %v802
        %v1205 = vpop.f32.mrf.mxu0
        %v1206 = vadd.f32 0.0, %v1205
        %1207 = vmatmul.f32.gmra.mxu0 %v803
        %v1208 = vpop.f32.mrf.mxu0
        %v1209 = vadd.f32 0.0, %v1208
        %1210 = vmatmul.f32.gmra.mxu0 %v804
        %v1211 = vpop.f32.mrf.mxu0
        %v1212 = vadd.f32 0.0, %v1211
        %1213 = vmatmul.f32.gmra.mxu0 %v805
        %v1214 = vpop.f32.mrf.mxu0
        %v1215 = vadd.f32 0.0, %v1214
        %1216 = vmatmul.f32.gmra.mxu0 %v806
        %v1217 = vpop.f32.mrf.mxu0
        %v1218 = vadd.f32 0.0, %v1217
        %1219 = vmatmul.f32.gmra.mxu0 %v807
        %v1220 = vpop.f32.mrf.mxu0
        %v1221 = vadd.f32 0.0, %v1220
        %1222 = vmatmul.f32.gmra.mxu0 %v808
        %v1223 = vpop.f32.mrf.mxu0
        %v1224 = vadd.f32 0.0, %v1223
        %1225 = vmatmul.f32.gmra.mxu0 %v809
        %v1226 = vpop.f32.mrf.mxu0
        %v1227 = vadd.f32 0.0, %v1226
        %1228 = vmatmul.f32.gmra.mxu0 %v810
        %v1229 = vpop.f32.mrf.mxu0
        %v1230 = vadd.f32 0.0, %v1229
        %1231 = vdwg.mxu0
        %1232 = vmatpush.msra.mxu0 %v906
        %1233 = vmatpush.msra.mxu0 %v900
        %1234 = vmatpush.msra.mxu0 %v894
        %1235 = vmatpush.msra.mxu0 %v888
        %1236 = vmatpush.msra.mxu0 %v882
        %1237 = vmatpush.msra.mxu0 %v876
        %1238 = vmatpush.msra.mxu0 %v870
        %1239 = vmatpush.msra.mxu0 %v864
        %1240 = vmatpush.msra.mxu0 %v858
        %1241 = vmatpush.msra.mxu0 %v852
        %1242 = vmatpush.msra.mxu0 %v846
        %1243 = vmatpush.msra.mxu0 %v840
        %1244 = vmatpush.msra.mxu0 %v834
        %1245 = vmatpush.msra.mxu0 %v828
        %1246 = vmatpush.msra.mxu0 %v822
        %1247 = vmatpush.msra.mxu0 %v816
        %1248 = vmatmul.f32.gmra.mxu0 %v795
        %v1249 = vpop.f32.mrf.mxu0
        %v1250 = vadd.f32 0.0, %v1249
        %1251 = vmatmul.f32.gmra.mxu0 %v796
        %v1252 = vpop.f32.mrf.mxu0
        %v1253 = vadd.f32 0.0, %v1252
        %1254 = vmatmul.f32.gmra.mxu0 %v797
        %v1255 = vpop.f32.mrf.mxu0
        %v1256 = vadd.f32 0.0, %v1255
        %1257 = vmatmul.f32.gmra.mxu0 %v798
        %v1258 = vpop.f32.mrf.mxu0
        %v1259 = vadd.f32 0.0, %v1258
        %1260 = vmatmul.f32.gmra.mxu0 %v799
        %v1261 = vpop.f32.mrf.mxu0
        %v1262 = vadd.f32 0.0, %v1261
        %1263 = vmatmul.f32.gmra.mxu0 %v800
        %v1264 = vpop.f32.mrf.mxu0
        %v1265 = vadd.f32 0.0, %v1264
        %1266 = vmatmul.f32.gmra.mxu0 %v801
        %v1267 = vpop.f32.mrf.mxu0
        %v1268 = vadd.f32 0.0, %v1267
        %1269 = vmatmul.f32.gmra.mxu0 %v802
        %v1270 = vpop.f32.mrf.mxu0
        %v1271 = vadd.f32 0.0, %v1270
        %1272 = vmatmul.f32.gmra.mxu0 %v803
        %v1273 = vpop.f32.mrf.mxu0
        %v1274 = vadd.f32 0.0, %v1273
        %1275 = vmatmul.f32.gmra.mxu0 %v804
        %v1276 = vpop.f32.mrf.mxu0
        %v1277 = vadd.f32 0.0, %v1276
        %1278 = vmatmul.f32.gmra.mxu0 %v805
        %v1279 = vpop.f32.mrf.mxu0
        %v1280 = vadd.f32 0.0, %v1279
        %1281 = vmatmul.f32.gmra.mxu0 %v806
        %v1282 = vpop.f32.mrf.mxu0
        %v1283 = vadd.f32 0.0, %v1282
        %1284 = vmatmul.f32.gmra.mxu0 %v807
        %v1285 = vpop.f32.mrf.mxu0
        %v1286 = vadd.f32 0.0, %v1285
        %1287 = vmatmul.f32.gmra.mxu0 %v808
        %v1288 = vpop.f32.mrf.mxu0
        %v1289 = vadd.f32 0.0, %v1288
        %1290 = vmatmul.f32.gmra.mxu0 %v809
        %v1291 = vpop.f32.mrf.mxu0
        %v1292 = vadd.f32 0.0, %v1291
        %1293 = vmatmul.f32.gmra.mxu0 %v810
        %v1294 = vpop.f32.mrf.mxu0
        %v1295 = vadd.f32 0.0, %v1294
        %1296 = vdwg.mxu0
        %v1297 = vld [vmem:[%s369] sm:$0xff]
        %v1298 = vld [vmem:[%s369 + $0x8] sm:$0xff]
        %v1299 = vld [vmem:[%s369 + $0x10] sm:$0xff]
        %v1300 = vld [vmem:[%s369 + $0x18] sm:$0xff]
        %v1301 = vld [vmem:[%s369 + $0x20] sm:$0xff]
        %v1302 = vld [vmem:[%s369 + $0x28] sm:$0xff]
        %v1303 = vld [vmem:[%s369 + $0x30] sm:$0xff]
        %v1304 = vld [vmem:[%s369 + $0x38] sm:$0xff]
        %v1305 = vld [vmem:[%s369 + $0x40] sm:$0xff]
        %v1306 = vld [vmem:[%s369 + $0x48] sm:$0xff]
        %v1307 = vld [vmem:[%s369 + $0x50] sm:$0xff]
        %v1308 = vld [vmem:[%s369 + $0x58] sm:$0xff]
        %v1309 = vld [vmem:[%s369 + $0x60] sm:$0xff]
        %v1310 = vld [vmem:[%s369 + $0x68] sm:$0xff]
        %v1311 = vld [vmem:[%s369 + $0x70] sm:$0xff]
        %v1312 = vld [vmem:[%s369 + $0x78] sm:$0xff]
        %1313 = vst [vmem:[%s427] sm:$0xff] %v1055
        %1314 = vst [vmem:[%s427 + $0x8] sm:$0xff] %v1058
        %1315 = vst [vmem:[%s427 + $0x10] sm:$0xff] %v1061
        %1316 = vst [vmem:[%s427 + $0x18] sm:$0xff] %v1064
        %1317 = vst [vmem:[%s427 + $0x20] sm:$0xff] %v1067
        %1318 = vst [vmem:[%s427 + $0x28] sm:$0xff] %v1070
        %1319 = vst [vmem:[%s427 + $0x30] sm:$0xff] %v1073
        %1320 = vst [vmem:[%s427 + $0x38] sm:$0xff] %v1076
        %1321 = vst [vmem:[%s427 + $0x40] sm:$0xff] %v1079
        %1322 = vst [vmem:[%s427 + $0x48] sm:$0xff] %v1082
        %1323 = vst [vmem:[%s427 + $0x50] sm:$0xff] %v1085
        %1324 = vst [vmem:[%s427 + $0x58] sm:$0xff] %v1088
        %1325 = vst [vmem:[%s427 + $0x60] sm:$0xff] %v1091
        %1326 = vst [vmem:[%s427 + $0x68] sm:$0xff] %v1094
        %1327 = vst [vmem:[%s427 + $0x70] sm:$0xff] %v1097
        %1328 = vst [vmem:[%s427 + $0x78] sm:$0xff] %v1100
        %s1329 = scalar_lea.vmem %s427, 256 [#allocation12]
        %1330 = vst [vmem:[%s1329] sm:$0xff] %v1185
        %1331 = vst [vmem:[%s1329 + $0x8] sm:$0xff] %v1188
        %1332 = vst [vmem:[%s1329 + $0x10] sm:$0xff] %v1191
        %1333 = vst [vmem:[%s1329 + $0x18] sm:$0xff] %v1194
        %1334 = vst [vmem:[%s1329 + $0x20] sm:$0xff] %v1197
        %1335 = vst [vmem:[%s1329 + $0x28] sm:$0xff] %v1200
        %1336 = vst [vmem:[%s1329 + $0x30] sm:$0xff] %v1203
        %1337 = vst [vmem:[%s1329 + $0x38] sm:$0xff] %v1206
        %1338 = vst [vmem:[%s1329 + $0x40] sm:$0xff] %v1209
        %1339 = vst [vmem:[%s1329 + $0x48] sm:$0xff] %v1212
        %1340 = vst [vmem:[%s1329 + $0x50] sm:$0xff] %v1215
        %1341 = vst [vmem:[%s1329 + $0x58] sm:$0xff] %v1218
        %1342 = vst [vmem:[%s1329 + $0x60] sm:$0xff] %v1221
        %1343 = vst [vmem:[%s1329 + $0x68] sm:$0xff] %v1224
        %1344 = vst [vmem:[%s1329 + $0x70] sm:$0xff] %v1227
        %1345 = vst [vmem:[%s1329 + $0x78] sm:$0xff] %v1230
        %1346 = vmatpush.xpose.msra.mxu0 %v1100
        %1347 = vmatpush.xpose.msra.mxu0 %v1097
        %1348 = vmatpush.xpose.msra.mxu0 %v1094
        %1349 = vmatpush.xpose.msra.mxu0 %v1091
        %1350 = vmatpush.xpose.msra.mxu0 %v1088
        %1351 = vmatpush.xpose.msra.mxu0 %v1085
        %1352 = vmatpush.xpose.msra.mxu0 %v1082
        %1353 = vmatpush.xpose.msra.mxu0 %v1079
        %1354 = vmatpush.xpose.msra.mxu0 %v1076
        %1355 = vmatpush.xpose.msra.mxu0 %v1073
        %1356 = vmatpush.xpose.msra.mxu0 %v1070
        %1357 = vmatpush.xpose.msra.mxu0 %v1067
        %1358 = vmatpush.xpose.msra.mxu0 %v1064
        %1359 = vmatpush.xpose.msra.mxu0 %v1061
        %1360 = vmatpush.xpose.msra.mxu0 %v1058
        %1361 = vmatpush.xpose.msra.mxu0 %v1055
        %1362 = vmatmul.f32.gmra.mxu0 %v925
        %v1363 = vpop.f32.mrf.mxu0
        %v1364 = vadd.f32 0.0, %v1363
        %1365 = vmatmul.f32.gmra.mxu0 %v928
        %v1366 = vpop.f32.mrf.mxu0
        %v1367 = vadd.f32 0.0, %v1366
        %1368 = vmatmul.f32.gmra.mxu0 %v931
        %v1369 = vpop.f32.mrf.mxu0
        %v1370 = vadd.f32 0.0, %v1369
        %1371 = vmatmul.f32.gmra.mxu0 %v934
        %v1372 = vpop.f32.mrf.mxu0
        %v1373 = vadd.f32 0.0, %v1372
        %1374 = vmatmul.f32.gmra.mxu0 %v937
        %v1375 = vpop.f32.mrf.mxu0
        %v1376 = vadd.f32 0.0, %v1375
        %1377 = vmatmul.f32.gmra.mxu0 %v940
        %v1378 = vpop.f32.mrf.mxu0
        %v1379 = vadd.f32 0.0, %v1378
        %1380 = vmatmul.f32.gmra.mxu0 %v943
        %v1381 = vpop.f32.mrf.mxu0
        %v1382 = vadd.f32 0.0, %v1381
        %1383 = vmatmul.f32.gmra.mxu0 %v946
        %v1384 = vpop.f32.mrf.mxu0
        %v1385 = vadd.f32 0.0, %v1384
        %1386 = vmatmul.f32.gmra.mxu0 %v949
        %v1387 = vpop.f32.mrf.mxu0
        %v1388 = vadd.f32 0.0, %v1387
        %1389 = vmatmul.f32.gmra.mxu0 %v952
        %v1390 = vpop.f32.mrf.mxu0
        %v1391 = vadd.f32 0.0, %v1390
        %1392 = vmatmul.f32.gmra.mxu0 %v955
        %v1393 = vpop.f32.mrf.mxu0
        %v1394 = vadd.f32 0.0, %v1393
        %1395 = vmatmul.f32.gmra.mxu0 %v958
        %v1396 = vpop.f32.mrf.mxu0
        %v1397 = vadd.f32 0.0, %v1396
        %1398 = vmatmul.f32.gmra.mxu0 %v961
        %v1399 = vpop.f32.mrf.mxu0
        %v1400 = vadd.f32 0.0, %v1399
        %1401 = vmatmul.f32.gmra.mxu0 %v964
        %v1402 = vpop.f32.mrf.mxu0
        %v1403 = vadd.f32 0.0, %v1402
        %1404 = vmatmul.f32.gmra.mxu0 %v967
        %v1405 = vpop.f32.mrf.mxu0
        %v1406 = vadd.f32 0.0, %v1405
        %1407 = vmatmul.f32.gmra.mxu0 %v970
        %v1408 = vpop.f32.mrf.mxu0
        %v1409 = vadd.f32 0.0, %v1408
        %1410 = vdwg.mxu0
        %v1411 = vmul.f32 %v1364, 0.088388346
        %v1412 = vmul.f32 %v1367, 0.088388346
        %v1413 = vmul.f32 %v1370, 0.088388346
        %v1414 = vmul.f32 %v1373, 0.088388346
        %v1415 = vmul.f32 %v1376, 0.088388346
        %v1416 = vmul.f32 %v1379, 0.088388346
        %v1417 = vmul.f32 %v1382, 0.088388346
        %v1418 = vmul.f32 %v1385, 0.088388346
        %v1419 = vmul.f32 %v1388, 0.088388346
        %v1420 = vmul.f32 %v1391, 0.088388346
        %v1421 = vmul.f32 %v1394, 0.088388346
        %v1422 = vmul.f32 %v1397, 0.088388346
        %v1423 = vmul.f32 %v1400, 0.088388346
        %v1424 = vmul.f32 %v1403, 0.088388346
        %v1425 = vmul.f32 %v1406, 0.088388346
        %v1426 = vmul.f32 %v1409, 0.088388346
        %v1427 = vld [vmem:[#allocation7] sm:$0xff]
        %v1428 = vld [vmem:[#allocation7 + $0x8] sm:$0xff]
        %v1429 = vld [vmem:[#allocation7 + $0x10] sm:$0xff]
        %v1430 = vld [vmem:[#allocation7 + $0x18] sm:$0xff]
        %v1431 = vld [vmem:[#allocation7 + $0x20] sm:$0xff]
        %v1432 = vld [vmem:[#allocation7 + $0x28] sm:$0xff]
        %v1433 = vld [vmem:[#allocation7 + $0x30] sm:$0xff]
        %v1434 = vld [vmem:[#allocation7 + $0x38] sm:$0xff]
        %v1435 = vld [vmem:[#allocation7 + $0x40] sm:$0xff]
        %v1436 = vld [vmem:[#allocation7 + $0x48] sm:$0xff]
        %v1437 = vld [vmem:[#allocation7 + $0x50] sm:$0xff]
        %v1438 = vld [vmem:[#allocation7 + $0x58] sm:$0xff]
        %v1439 = vld [vmem:[#allocation7 + $0x60] sm:$0xff]
        %v1440 = vld [vmem:[#allocation7 + $0x68] sm:$0xff]
        %v1441 = vld [vmem:[#allocation7 + $0x70] sm:$0xff]
        %v1442 = vld [vmem:[#allocation7 + $0x78] sm:$0xff]
        %v1443 = vadd.f32 %v1411, %v1427
        %v1444 = vadd.f32 %v1412, %v1428
        %v1445 = vadd.f32 %v1413, %v1429
        %v1446 = vadd.f32 %v1414, %v1430
        %v1447 = vadd.f32 %v1415, %v1431
        %v1448 = vadd.f32 %v1416, %v1432
        %v1449 = vadd.f32 %v1417, %v1433
        %v1450 = vadd.f32 %v1418, %v1434
        %v1451 = vadd.f32 %v1419, %v1435
        %v1452 = vadd.f32 %v1420, %v1436
        %v1453 = vadd.f32 %v1421, %v1437
        %v1454 = vadd.f32 %v1422, %v1438
        %v1455 = vadd.f32 %v1423, %v1439
        %v1456 = vadd.f32 %v1424, %v1440
        %v1457 = vadd.f32 %v1425, %v1441
        %v1458 = vadd.f32 %v1426, %v1442
        %vm1459 = vcmp.gt.f32.partialorder %v1297, 0.5
        %vm1460 = vcmp.gt.f32.partialorder %v1298, 0.5
        %vm1461 = vcmp.gt.f32.partialorder %v1299, 0.5
        %vm1462 = vcmp.gt.f32.partialorder %v1300, 0.5
        %vm1463 = vcmp.gt.f32.partialorder %v1301, 0.5
        %vm1464 = vcmp.gt.f32.partialorder %v1302, 0.5
        %vm1465 = vcmp.gt.f32.partialorder %v1303, 0.5
        %vm1466 = vcmp.gt.f32.partialorder %v1304, 0.5
        %vm1467 = vcmp.gt.f32.partialorder %v1305, 0.5
        %vm1468 = vcmp.gt.f32.partialorder %v1306, 0.5
        %vm1469 = vcmp.gt.f32.partialorder %v1307, 0.5
        %vm1470 = vcmp.gt.f32.partialorder %v1308, 0.5
        %vm1471 = vcmp.gt.f32.partialorder %v1309, 0.5
        %vm1472 = vcmp.gt.f32.partialorder %v1310, 0.5
        %vm1473 = vcmp.gt.f32.partialorder %v1311, 0.5
        %vm1474 = vcmp.gt.f32.partialorder %v1312, 0.5
        %v1475 = vsel %vm1459, -3.4028235e+38, %v1443
        %v1476 = vsel %vm1460, -3.4028235e+38, %v1444
        %v1477 = vsel %vm1461, -3.4028235e+38, %v1445
        %v1478 = vsel %vm1462, -3.4028235e+38, %v1446
        %v1479 = vsel %vm1463, -3.4028235e+38, %v1447
        %v1480 = vsel %vm1464, -3.4028235e+38, %v1448
        %v1481 = vsel %vm1465, -3.4028235e+38, %v1449
        %v1482 = vsel %vm1466, -3.4028235e+38, %v1450
        %v1483 = vsel %vm1467, -3.4028235e+38, %v1451
        %v1484 = vsel %vm1468, -3.4028235e+38, %v1452
        %v1485 = vsel %vm1469, -3.4028235e+38, %v1453
        %v1486 = vsel %vm1470, -3.4028235e+38, %v1454
        %v1487 = vsel %vm1471, -3.4028235e+38, %v1455
        %v1488 = vsel %vm1472, -3.4028235e+38, %v1456
        %v1489 = vsel %vm1473, -3.4028235e+38, %v1457
        %v1490 = vsel %vm1474, -3.4028235e+38, %v1458
        %1491 = vmax.xlane.f32.xlu0 %v1475
        %v1492 = vpop.xlane.xlu0 %1491
        %1493 = vmax.xlane.f32.xlu0 %v1476
        %v1494 = vpop.xlane.xlu0 %1493
        %1495 = vmax.xlane.f32.xlu0 %v1477
        %v1496 = vpop.xlane.xlu0 %1495
        %1497 = vmax.xlane.f32.xlu0 %v1478
        %v1498 = vpop.xlane.xlu0 %1497
        %1499 = vmax.xlane.f32.xlu0 %v1479
        %v1500 = vpop.xlane.xlu0 %1499
        %1501 = vmax.xlane.f32.xlu0 %v1480
        %v1502 = vpop.xlane.xlu0 %1501
        %1503 = vmax.xlane.f32.xlu0 %v1481
        %v1504 = vpop.xlane.xlu0 %1503
        %1505 = vmax.xlane.f32.xlu0 %v1482
        %v1506 = vpop.xlane.xlu0 %1505
        %1507 = vmax.xlane.f32.xlu0 %v1483
        %v1508 = vpop.xlane.xlu0 %1507
        %1509 = vmax.xlane.f32.xlu0 %v1484
        %v1510 = vpop.xlane.xlu0 %1509
        %1511 = vmax.xlane.f32.xlu0 %v1485
        %v1512 = vpop.xlane.xlu0 %1511
        %1513 = vmax.xlane.f32.xlu0 %v1486
        %v1514 = vpop.xlane.xlu0 %1513
        %1515 = vmax.xlane.f32.xlu0 %v1487
        %v1516 = vpop.xlane.xlu0 %1515
        %1517 = vmax.xlane.f32.xlu0 %v1488
        %v1518 = vpop.xlane.xlu0 %1517
        %1519 = vmax.xlane.f32.xlu0 %v1489
        %v1520 = vpop.xlane.xlu0 %1519
        %1521 = vmax.xlane.f32.xlu0 %v1490
        %v1522 = vpop.xlane.xlu0 %1521
        %v1523 = vsub.f32 %v1475, %v1492
        %v1524 = vsub.f32 %v1476, %v1494
        %v1525 = vsub.f32 %v1477, %v1496
        %v1526 = vsub.f32 %v1478, %v1498
        %v1527 = vsub.f32 %v1479, %v1500
        %v1528 = vsub.f32 %v1480, %v1502
        %v1529 = vsub.f32 %v1481, %v1504
        %v1530 = vsub.f32 %v1482, %v1506
        %v1531 = vsub.f32 %v1483, %v1508
        %v1532 = vsub.f32 %v1484, %v1510
        %v1533 = vsub.f32 %v1485, %v1512
        %v1534 = vsub.f32 %v1486, %v1514
        %v1535 = vsub.f32 %v1487, %v1516
        %v1536 = vsub.f32 %v1488, %v1518
        %v1537 = vsub.f32 %v1489, %v1520
        %v1538 = vsub.f32 %v1490, %v1522
        %v1539 = vmul.f32 %v1523, 1.442695
        %v1540 = vpow.pop %v1539
        %v1541 = vmul.f32 %v1524, 1.442695
        %v1542 = vpow.pop %v1541
        %v1543 = vmul.f32 %v1525, 1.442695
        %v1544 = vpow.pop %v1543
        %v1545 = vmul.f32 %v1526, 1.442695
        %v1546 = vpow.pop %v1545
        %v1547 = vmul.f32 %v1527, 1.442695
        %v1548 = vpow.pop %v1547
        %v1549 = vmul.f32 %v1528, 1.442695
        %v1550 = vpow.pop %v1549
        %v1551 = vmul.f32 %v1529, 1.442695
        %v1552 = vpow.pop %v1551
        %v1553 = vmul.f32 %v1530, 1.442695
        %v1554 = vpow.pop %v1553
        %v1555 = vmul.f32 %v1531, 1.442695
        %v1556 = vpow.pop %v1555
        %v1557 = vmul.f32 %v1532, 1.442695
        %v1558 = vpow.pop %v1557
        %v1559 = vmul.f32 %v1533, 1.442695
        %v1560 = vpow.pop %v1559
        %v1561 = vmul.f32 %v1534, 1.442695
        %v1562 = vpow.pop %v1561
        %v1563 = vmul.f32 %v1535, 1.442695
        %v1564 = vpow.pop %v1563
        %v1565 = vmul.f32 %v1536, 1.442695
        %v1566 = vpow.pop %v1565
        %v1567 = vmul.f32 %v1537, 1.442695
        %v1568 = vpow.pop %v1567
        %v1569 = vmul.f32 %v1538, 1.442695
        %v1570 = vpow.pop %v1569
        %1571 = vadd.xlane.f32.xlu0 %v1540
        %v1572 = vpop.xlane.xlu0 %1571
        %1573 = vadd.xlane.f32.xlu0 %v1542
        %v1574 = vpop.xlane.xlu0 %1573
        %1575 = vadd.xlane.f32.xlu0 %v1544
        %v1576 = vpop.xlane.xlu0 %1575
        %1577 = vadd.xlane.f32.xlu0 %v1546
        %v1578 = vpop.xlane.xlu0 %1577
        %1579 = vadd.xlane.f32.xlu0 %v1548
        %v1580 = vpop.xlane.xlu0 %1579
        %1581 = vadd.xlane.f32.xlu0 %v1550
        %v1582 = vpop.xlane.xlu0 %1581
        %1583 = vadd.xlane.f32.xlu0 %v1552
        %v1584 = vpop.xlane.xlu0 %1583
        %1585 = vadd.xlane.f32.xlu0 %v1554
        %v1586 = vpop.xlane.xlu0 %1585
        %1587 = vadd.xlane.f32.xlu0 %v1556
        %v1588 = vpop.xlane.xlu0 %1587
        %1589 = vadd.xlane.f32.xlu0 %v1558
        %v1590 = vpop.xlane.xlu0 %1589
        %1591 = vadd.xlane.f32.xlu0 %v1560
        %v1592 = vpop.xlane.xlu0 %1591
        %1593 = vadd.xlane.f32.xlu0 %v1562
        %v1594 = vpop.xlane.xlu0 %1593
        %1595 = vadd.xlane.f32.xlu0 %v1564
        %v1596 = vpop.xlane.xlu0 %1595
        %1597 = vadd.xlane.f32.xlu0 %v1566
        %v1598 = vpop.xlane.xlu0 %1597
        %1599 = vadd.xlane.f32.xlu0 %v1568
        %v1600 = vpop.xlane.xlu0 %1599
        %1601 = vadd.xlane.f32.xlu0 %v1570
        %v1602 = vpop.xlane.xlu0 %1601
        %v1603 = vrcp.pop %v1572
        %v1604 = vmul.f32 %v1572, %v1603
        %v1605 = vsub.f32 1.0, %v1604
        %v1606 = vmul.f32 %v1603, %v1605
        %v1607 = vadd.f32 %v1603, %v1606
        %vm1608 = vweird.f32 %v1572
        %vm1609 = vweird.f32 %v1603
        %vm1610 = vmor %vm1608, %vm1609
        %v1611 = vsel %vm1610, %v1603, %v1607
        %v1612 = vand.u32 2147483647, %v1572
        %vm1613 = vcmp.eq.f32.partialorder %v1612, 8.507059e+37
        %v1614 = vand.u32 %v1572, 2147483648
        %v1615 = vor.u32 1.1754944e-38, %v1614
        %v1616 = vsel %vm1613, %v1615, %v1611
        %v1617 = vmul.f32 %v1540, %v1616
        %v1618 = vrcp.pop %v1574
        %v1619 = vmul.f32 %v1574, %v1618
        %v1620 = vsub.f32 1.0, %v1619
        %v1621 = vmul.f32 %v1618, %v1620
        %v1622 = vadd.f32 %v1618, %v1621
        %vm1623 = vweird.f32 %v1574
        %vm1624 = vweird.f32 %v1618
        %vm1625 = vmor %vm1623, %vm1624
        %v1626 = vsel %vm1625, %v1618, %v1622
        %v1627 = vand.u32 2147483647, %v1574
        %vm1628 = vcmp.eq.f32.partialorder %v1627, 8.507059e+37
        %v1629 = vand.u32 %v1574, 2147483648
        %v1630 = vor.u32 1.1754944e-38, %v1629
        %v1631 = vsel %vm1628, %v1630, %v1626
        %v1632 = vmul.f32 %v1542, %v1631
        %v1633 = vrcp.pop %v1576
        %v1634 = vmul.f32 %v1576, %v1633
        %v1635 = vsub.f32 1.0, %v1634
        %v1636 = vmul.f32 %v1633, %v1635
        %v1637 = vadd.f32 %v1633, %v1636
        %vm1638 = vweird.f32 %v1576
        %vm1639 = vweird.f32 %v1633
        %vm1640 = vmor %vm1638, %vm1639
        %v1641 = vsel %vm1640, %v1633, %v1637
        %v1642 = vand.u32 2147483647, %v1576
        %vm1643 = vcmp.eq.f32.partialorder %v1642, 8.507059e+37
        %v1644 = vand.u32 %v1576, 2147483648
        %v1645 = vor.u32 1.1754944e-38, %v1644
        %v1646 = vsel %vm1643, %v1645, %v1641
        %v1647 = vmul.f32 %v1544, %v1646
        %v1648 = vrcp.pop %v1578
        %v1649 = vmul.f32 %v1578, %v1648
        %v1650 = vsub.f32 1.0, %v1649
        %v1651 = vmul.f32 %v1648, %v1650
        %v1652 = vadd.f32 %v1648, %v1651
        %vm1653 = vweird.f32 %v1578
        %vm1654 = vweird.f32 %v1648
        %vm1655 = vmor %vm1653, %vm1654
        %v1656 = vsel %vm1655, %v1648, %v1652
        %v1657 = vand.u32 2147483647, %v1578
        %vm1658 = vcmp.eq.f32.partialorder %v1657, 8.507059e+37
        %v1659 = vand.u32 %v1578, 2147483648
        %v1660 = vor.u32 1.1754944e-38, %v1659
        %v1661 = vsel %vm1658, %v1660, %v1656
        %v1662 = vmul.f32 %v1546, %v1661
        %v1663 = vrcp.pop %v1580
        %v1664 = vmul.f32 %v1580, %v1663
        %v1665 = vsub.f32 1.0, %v1664
        %v1666 = vmul.f32 %v1663, %v1665
        %v1667 = vadd.f32 %v1663, %v1666
        %vm1668 = vweird.f32 %v1580
        %vm1669 = vweird.f32 %v1663
        %vm1670 = vmor %vm1668, %vm1669
        %v1671 = vsel %vm1670, %v1663, %v1667
        %v1672 = vand.u32 2147483647, %v1580
        %vm1673 = vcmp.eq.f32.partialorder %v1672, 8.507059e+37
        %v1674 = vand.u32 %v1580, 2147483648
        %v1675 = vor.u32 1.1754944e-38, %v1674
        %v1676 = vsel %vm1673, %v1675, %v1671
        %v1677 = vmul.f32 %v1548, %v1676
        %v1678 = vrcp.pop %v1582
        %v1679 = vmul.f32 %v1582, %v1678
        %v1680 = vsub.f32 1.0, %v1679
        %v1681 = vmul.f32 %v1678, %v1680
        %v1682 = vadd.f32 %v1678, %v1681
        %vm1683 = vweird.f32 %v1582
        %vm1684 = vweird.f32 %v1678
        %vm1685 = vmor %vm1683, %vm1684
        %v1686 = vsel %vm1685, %v1678, %v1682
        %v1687 = vand.u32 2147483647, %v1582
        %vm1688 = vcmp.eq.f32.partialorder %v1687, 8.507059e+37
        %v1689 = vand.u32 %v1582, 2147483648
        %v1690 = vor.u32 1.1754944e-38, %v1689
        %v1691 = vsel %vm1688, %v1690, %v1686
        %v1692 = vmul.f32 %v1550, %v1691
        %v1693 = vrcp.pop %v1584
        %v1694 = vmul.f32 %v1584, %v1693
        %v1695 = vsub.f32 1.0, %v1694
        %v1696 = vmul.f32 %v1693, %v1695
        %v1697 = vadd.f32 %v1693, %v1696
        %vm1698 = vweird.f32 %v1584
        %vm1699 = vweird.f32 %v1693
        %vm1700 = vmor %vm1698, %vm1699
        %v1701 = vsel %vm1700, %v1693, %v1697
        %v1702 = vand.u32 2147483647, %v1584
        %vm1703 = vcmp.eq.f32.partialorder %v1702, 8.507059e+37
        %v1704 = vand.u32 %v1584, 2147483648
        %v1705 = vor.u32 1.1754944e-38, %v1704
        %v1706 = vsel %vm1703, %v1705, %v1701
        %v1707 = vmul.f32 %v1552, %v1706
        %v1708 = vrcp.pop %v1586
        %v1709 = vmul.f32 %v1586, %v1708
        %v1710 = vsub.f32 1.0, %v1709
        %v1711 = vmul.f32 %v1708, %v1710
        %v1712 = vadd.f32 %v1708, %v1711
        %vm1713 = vweird.f32 %v1586
        %vm1714 = vweird.f32 %v1708
        %vm1715 = vmor %vm1713, %vm1714
        %v1716 = vsel %vm1715, %v1708, %v1712
        %v1717 = vand.u32 2147483647, %v1586
        %vm1718 = vcmp.eq.f32.partialorder %v1717, 8.507059e+37
        %v1719 = vand.u32 %v1586, 2147483648
        %v1720 = vor.u32 1.1754944e-38, %v1719
        %v1721 = vsel %vm1718, %v1720, %v1716
        %v1722 = vmul.f32 %v1554, %v1721
        %v1723 = vrcp.pop %v1588
        %v1724 = vmul.f32 %v1588, %v1723
        %v1725 = vsub.f32 1.0, %v1724
        %v1726 = vmul.f32 %v1723, %v1725
        %v1727 = vadd.f32 %v1723, %v1726
        %vm1728 = vweird.f32 %v1588
        %vm1729 = vweird.f32 %v1723
        %vm1730 = vmor %vm1728, %vm1729
        %v1731 = vsel %vm1730, %v1723, %v1727
        %v1732 = vand.u32 2147483647, %v1588
        %vm1733 = vcmp.eq.f32.partialorder %v1732, 8.507059e+37
        %v1734 = vand.u32 %v1588, 2147483648
        %v1735 = vor.u32 1.1754944e-38, %v1734
        %v1736 = vsel %vm1733, %v1735, %v1731
        %v1737 = vmul.f32 %v1556, %v1736
        %v1738 = vrcp.pop %v1590
        %v1739 = vmul.f32 %v1590, %v1738
        %v1740 = vsub.f32 1.0, %v1739
        %v1741 = vmul.f32 %v1738, %v1740
        %v1742 = vadd.f32 %v1738, %v1741
        %vm1743 = vweird.f32 %v1590
        %vm1744 = vweird.f32 %v1738
        %vm1745 = vmor %vm1743, %vm1744
        %v1746 = vsel %vm1745, %v1738, %v1742
        %v1747 = vand.u32 2147483647, %v1590
        %vm1748 = vcmp.eq.f32.partialorder %v1747, 8.507059e+37
        %v1749 = vand.u32 %v1590, 2147483648
        %v1750 = vor.u32 1.1754944e-38, %v1749
        %v1751 = vsel %vm1748, %v1750, %v1746
        %v1752 = vmul.f32 %v1558, %v1751
        %v1753 = vrcp.pop %v1592
        %v1754 = vmul.f32 %v1592, %v1753
        %v1755 = vsub.f32 1.0, %v1754
        %v1756 = vmul.f32 %v1753, %v1755
        %v1757 = vadd.f32 %v1753, %v1756
        %vm1758 = vweird.f32 %v1592
        %vm1759 = vweird.f32 %v1753
        %vm1760 = vmor %vm1758, %vm1759
        %v1761 = vsel %vm1760, %v1753, %v1757
        %v1762 = vand.u32 2147483647, %v1592
        %vm1763 = vcmp.eq.f32.partialorder %v1762, 8.507059e+37
        %v1764 = vand.u32 %v1592, 2147483648
        %v1765 = vor.u32 1.1754944e-38, %v1764
        %v1766 = vsel %vm1763, %v1765, %v1761
        %v1767 = vmul.f32 %v1560, %v1766
        %v1768 = vrcp.pop %v1594
        %v1769 = vmul.f32 %v1594, %v1768
        %v1770 = vsub.f32 1.0, %v1769
        %v1771 = vmul.f32 %v1768, %v1770
        %v1772 = vadd.f32 %v1768, %v1771
        %vm1773 = vweird.f32 %v1594
        %vm1774 = vweird.f32 %v1768
        %vm1775 = vmor %vm1773, %vm1774
        %v1776 = vsel %vm1775, %v1768, %v1772
        %v1777 = vand.u32 2147483647, %v1594
        %vm1778 = vcmp.eq.f32.partialorder %v1777, 8.507059e+37
        %v1779 = vand.u32 %v1594, 2147483648
        %v1780 = vor.u32 1.1754944e-38, %v1779
        %v1781 = vsel %vm1778, %v1780, %v1776
        %v1782 = vmul.f32 %v1562, %v1781
        %v1783 = vrcp.pop %v1596
        %v1784 = vmul.f32 %v1596, %v1783
        %v1785 = vsub.f32 1.0, %v1784
        %v1786 = vmul.f32 %v1783, %v1785
        %v1787 = vadd.f32 %v1783, %v1786
        %vm1788 = vweird.f32 %v1596
        %vm1789 = vweird.f32 %v1783
        %vm1790 = vmor %vm1788, %vm1789
        %v1791 = vsel %vm1790, %v1783, %v1787
        %v1792 = vand.u32 2147483647, %v1596
        %vm1793 = vcmp.eq.f32.partialorder %v1792, 8.507059e+37
        %v1794 = vand.u32 %v1596, 2147483648
        %v1795 = vor.u32 1.1754944e-38, %v1794
        %v1796 = vsel %vm1793, %v1795, %v1791
        %v1797 = vmul.f32 %v1564, %v1796
        %v1798 = vrcp.pop %v1598
        %v1799 = vmul.f32 %v1598, %v1798
        %v1800 = vsub.f32 1.0, %v1799
        %v1801 = vmul.f32 %v1798, %v1800
        %v1802 = vadd.f32 %v1798, %v1801
        %vm1803 = vweird.f32 %v1598
        %vm1804 = vweird.f32 %v1798
        %vm1805 = vmor %vm1803, %vm1804
        %v1806 = vsel %vm1805, %v1798, %v1802
        %v1807 = vand.u32 2147483647, %v1598
        %vm1808 = vcmp.eq.f32.partialorder %v1807, 8.507059e+37
        %v1809 = vand.u32 %v1598, 2147483648
        %v1810 = vor.u32 1.1754944e-38, %v1809
        %v1811 = vsel %vm1808, %v1810, %v1806
        %v1812 = vmul.f32 %v1566, %v1811
        %v1813 = vrcp.pop %v1600
        %v1814 = vmul.f32 %v1600, %v1813
        %v1815 = vsub.f32 1.0, %v1814
        %v1816 = vmul.f32 %v1813, %v1815
        %v1817 = vadd.f32 %v1813, %v1816
        %vm1818 = vweird.f32 %v1600
        %vm1819 = vweird.f32 %v1813
        %vm1820 = vmor %vm1818, %vm1819
        %v1821 = vsel %vm1820, %v1813, %v1817
        %v1822 = vand.u32 2147483647, %v1600
        %vm1823 = vcmp.eq.f32.partialorder %v1822, 8.507059e+37
        %v1824 = vand.u32 %v1600, 2147483648
        %v1825 = vor.u32 1.1754944e-38, %v1824
        %v1826 = vsel %vm1823, %v1825, %v1821
        %v1827 = vmul.f32 %v1568, %v1826
        %v1828 = vrcp.pop %v1602
        %v1829 = vmul.f32 %v1602, %v1828
        %v1830 = vsub.f32 1.0, %v1829
        %v1831 = vmul.f32 %v1828, %v1830
        %v1832 = vadd.f32 %v1828, %v1831
        %vm1833 = vweird.f32 %v1602
        %vm1834 = vweird.f32 %v1828
        %vm1835 = vmor %vm1833, %vm1834
        %v1836 = vsel %vm1835, %v1828, %v1832
        %v1837 = vand.u32 2147483647, %v1602
        %vm1838 = vcmp.eq.f32.partialorder %v1837, 8.507059e+37
        %v1839 = vand.u32 %v1602, 2147483648
        %v1840 = vor.u32 1.1754944e-38, %v1839
        %v1841 = vsel %vm1838, %v1840, %v1836
        %v1842 = vmul.f32 %v1570, %v1841
        %1843 = vmatpush.msra.mxu0 %v1230
        %1844 = vmatpush.msra.mxu0 %v1227
        %1845 = vmatpush.msra.mxu0 %v1224
        %1846 = vmatpush.msra.mxu0 %v1221
        %1847 = vmatpush.msra.mxu0 %v1218
        %1848 = vmatpush.msra.mxu0 %v1215
        %1849 = vmatpush.msra.mxu0 %v1212
        %1850 = vmatpush.msra.mxu0 %v1209
        %1851 = vmatpush.msra.mxu0 %v1206
        %1852 = vmatpush.msra.mxu0 %v1203
        %1853 = vmatpush.msra.mxu0 %v1200
        %1854 = vmatpush.msra.mxu0 %v1197
        %1855 = vmatpush.msra.mxu0 %v1194
        %1856 = vmatpush.msra.mxu0 %v1191
        %1857 = vmatpush.msra.mxu0 %v1188
        %1858 = vmatpush.msra.mxu0 %v1185
        %1859 = vmatmul.f32.gmra.mxu0 %v1617
        %v1860 = vpop.f32.mrf.mxu0
        %v1861 = vadd.f32 0.0, %v1860
        %1862 = vmatmul.f32.gmra.mxu0 %v1632
        %v1863 = vpop.f32.mrf.mxu0
        %v1864 = vadd.f32 0.0, %v1863
        %1865 = vmatmul.f32.gmra.mxu0 %v1647
        %v1866 = vpop.f32.mrf.mxu0
        %v1867 = vadd.f32 0.0, %v1866
        %1868 = vmatmul.f32.gmra.mxu0 %v1662
        %v1869 = vpop.f32.mrf.mxu0
        %v1870 = vadd.f32 0.0, %v1869
        %1871 = vmatmul.f32.gmra.mxu0 %v1677
        %v1872 = vpop.f32.mrf.mxu0
        %v1873 = vadd.f32 0.0, %v1872
        %1874 = vmatmul.f32.gmra.mxu0 %v1692
        %v1875 = vpop.f32.mrf.mxu0
        %v1876 = vadd.f32 0.0, %v1875
        %1877 = vmatmul.f32.gmra.mxu0 %v1707
        %v1878 = vpop.f32.mrf.mxu0
        %v1879 = vadd.f32 0.0, %v1878
        %1880 = vmatmul.f32.gmra.mxu0 %v1722
        %v1881 = vpop.f32.mrf.mxu0
        %v1882 = vadd.f32 0.0, %v1881
        %1883 = vmatmul.f32.gmra.mxu0 %v1737
        %v1884 = vpop.f32.mrf.mxu0
        %v1885 = vadd.f32 0.0, %v1884
        %1886 = vmatmul.f32.gmra.mxu0 %v1752
        %v1887 = vpop.f32.mrf.mxu0
        %v1888 = vadd.f32 0.0, %v1887
        %1889 = vmatmul.f32.gmra.mxu0 %v1767
        %v1890 = vpop.f32.mrf.mxu0
        %v1891 = vadd.f32 0.0, %v1890
        %1892 = vmatmul.f32.gmra.mxu0 %v1782
        %v1893 = vpop.f32.mrf.mxu0
        %v1894 = vadd.f32 0.0, %v1893
        %1895 = vmatmul.f32.gmra.mxu0 %v1797
        %v1896 = vpop.f32.mrf.mxu0
        %v1897 = vadd.f32 0.0, %v1896
        %1898 = vmatmul.f32.gmra.mxu0 %v1812
        %v1899 = vpop.f32.mrf.mxu0
        %v1900 = vadd.f32 0.0, %v1899
        %1901 = vmatmul.f32.gmra.mxu0 %v1827
        %v1902 = vpop.f32.mrf.mxu0
        %v1903 = vadd.f32 0.0, %v1902
        %1904 = vmatmul.f32.gmra.mxu0 %v1842
        %v1905 = vpop.f32.mrf.mxu0
        %v1906 = vadd.f32 0.0, %v1905
        %1907 = vdwg.mxu0
        %s1908 = scalar_lea.vmem %s427, 128 [#allocation12]
        %1909 = vst [vmem:[%s1908] sm:$0xff] %v1120
        %1910 = vst [vmem:[%s1908 + $0x8] sm:$0xff] %v1123
        %1911 = vst [vmem:[%s1908 + $0x10] sm:$0xff] %v1126
        %1912 = vst [vmem:[%s1908 + $0x18] sm:$0xff] %v1129
        %1913 = vst [vmem:[%s1908 + $0x20] sm:$0xff] %v1132
        %1914 = vst [vmem:[%s1908 + $0x28] sm:$0xff] %v1135
        %1915 = vst [vmem:[%s1908 + $0x30] sm:$0xff] %v1138
        %1916 = vst [vmem:[%s1908 + $0x38] sm:$0xff] %v1141
        %1917 = vst [vmem:[%s1908 + $0x40] sm:$0xff] %v1144
        %1918 = vst [vmem:[%s1908 + $0x48] sm:$0xff] %v1147
        %1919 = vst [vmem:[%s1908 + $0x50] sm:$0xff] %v1150
        %1920 = vst [vmem:[%s1908 + $0x58] sm:$0xff] %v1153
        %1921 = vst [vmem:[%s1908 + $0x60] sm:$0xff] %v1156
        %1922 = vst [vmem:[%s1908 + $0x68] sm:$0xff] %v1159
        %1923 = vst [vmem:[%s1908 + $0x70] sm:$0xff] %v1162
        %1924 = vst [vmem:[%s1908 + $0x78] sm:$0xff] %v1165
        %s1925 = scalar_lea.vmem %s427, 384 [#allocation12]
        %1926 = vst [vmem:[%s1925] sm:$0xff] %v1250
        %1927 = vst [vmem:[%s1925 + $0x8] sm:$0xff] %v1253
        %1928 = vst [vmem:[%s1925 + $0x10] sm:$0xff] %v1256
        %1929 = vst [vmem:[%s1925 + $0x18] sm:$0xff] %v1259
        %1930 = vst [vmem:[%s1925 + $0x20] sm:$0xff] %v1262
        %1931 = vst [vmem:[%s1925 + $0x28] sm:$0xff] %v1265
        %1932 = vst [vmem:[%s1925 + $0x30] sm:$0xff] %v1268
        %1933 = vst [vmem:[%s1925 + $0x38] sm:$0xff] %v1271
        %1934 = vst [vmem:[%s1925 + $0x40] sm:$0xff] %v1274
        %1935 = vst [vmem:[%s1925 + $0x48] sm:$0xff] %v1277
        %1936 = vst [vmem:[%s1925 + $0x50] sm:$0xff] %v1280
        %1937 = vst [vmem:[%s1925 + $0x58] sm:$0xff] %v1283
        %1938 = vst [vmem:[%s1925 + $0x60] sm:$0xff] %v1286
        %1939 = vst [vmem:[%s1925 + $0x68] sm:$0xff] %v1289
        %1940 = vst [vmem:[%s1925 + $0x70] sm:$0xff] %v1292
        %1941 = vst [vmem:[%s1925 + $0x78] sm:$0xff] %v1295
        %1942 = vmatpush.xpose.msra.mxu0 %v1165
        %1943 = vmatpush.xpose.msra.mxu0 %v1162
        %1944 = vmatpush.xpose.msra.mxu0 %v1159
        %1945 = vmatpush.xpose.msra.mxu0 %v1156
        %1946 = vmatpush.xpose.msra.mxu0 %v1153
        %1947 = vmatpush.xpose.msra.mxu0 %v1150
        %1948 = vmatpush.xpose.msra.mxu0 %v1147
        %1949 = vmatpush.xpose.msra.mxu0 %v1144
        %1950 = vmatpush.xpose.msra.mxu0 %v1141
        %1951 = vmatpush.xpose.msra.mxu0 %v1138
        %1952 = vmatpush.xpose.msra.mxu0 %v1135
        %1953 = vmatpush.xpose.msra.mxu0 %v1132
        %1954 = vmatpush.xpose.msra.mxu0 %v1129
        %1955 = vmatpush.xpose.msra.mxu0 %v1126
        %1956 = vmatpush.xpose.msra.mxu0 %v1123
        %1957 = vmatpush.xpose.msra.mxu0 %v1120
        %1958 = vmatmul.f32.gmra.mxu0 %v990
        %v1959 = vpop.f32.mrf.mxu0
        %v1960 = vadd.f32 0.0, %v1959
        %1961 = vmatmul.f32.gmra.mxu0 %v993
        %v1962 = vpop.f32.mrf.mxu0
        %v1963 = vadd.f32 0.0, %v1962
        %1964 = vmatmul.f32.gmra.mxu0 %v996
        %v1965 = vpop.f32.mrf.mxu0
        %v1966 = vadd.f32 0.0, %v1965
        %1967 = vmatmul.f32.gmra.mxu0 %v999
        %v1968 = vpop.f32.mrf.mxu0
        %v1969 = vadd.f32 0.0, %v1968
        %1970 = vmatmul.f32.gmra.mxu0 %v1002
        %v1971 = vpop.f32.mrf.mxu0
        %v1972 = vadd.f32 0.0, %v1971
        %1973 = vmatmul.f32.gmra.mxu0 %v1005
        %v1974 = vpop.f32.mrf.mxu0
        %v1975 = vadd.f32 0.0, %v1974
        %1976 = vmatmul.f32.gmra.mxu0 %v1008
        %v1977 = vpop.f32.mrf.mxu0
        %v1978 = vadd.f32 0.0, %v1977
        %1979 = vmatmul.f32.gmra.mxu0 %v1011
        %v1980 = vpop.f32.mrf.mxu0
        %v1981 = vadd.f32 0.0, %v1980
        %1982 = vmatmul.f32.gmra.mxu0 %v1014
        %v1983 = vpop.f32.mrf.mxu0
        %v1984 = vadd.f32 0.0, %v1983
        %1985 = vmatmul.f32.gmra.mxu0 %v1017
        %v1986 = vpop.f32.mrf.mxu0
        %v1987 = vadd.f32 0.0, %v1986
        %1988 = vmatmul.f32.gmra.mxu0 %v1020
        %v1989 = vpop.f32.mrf.mxu0
        %v1990 = vadd.f32 0.0, %v1989
        %1991 = vmatmul.f32.gmra.mxu0 %v1023
        %v1992 = vpop.f32.mrf.mxu0
        %v1993 = vadd.f32 0.0, %v1992
        %1994 = vmatmul.f32.gmra.mxu0 %v1026
        %v1995 = vpop.f32.mrf.mxu0
        %v1996 = vadd.f32 0.0, %v1995
        %1997 = vmatmul.f32.gmra.mxu0 %v1029
        %v1998 = vpop.f32.mrf.mxu0
        %v1999 = vadd.f32 0.0, %v1998
        %2000 = vmatmul.f32.gmra.mxu0 %v1032
        %v2001 = vpop.f32.mrf.mxu0
        %v2002 = vadd.f32 0.0, %v2001
        %2003 = vmatmul.f32.gmra.mxu0 %v1035
        %v2004 = vpop.f32.mrf.mxu0
        %v2005 = vadd.f32 0.0, %v2004
        %2006 = vdwg.mxu0
        %v2007 = vmul.f32 %v1960, 0.088388346
        %v2008 = vmul.f32 %v1963, 0.088388346
        %v2009 = vmul.f32 %v1966, 0.088388346
        %v2010 = vmul.f32 %v1969, 0.088388346
        %v2011 = vmul.f32 %v1972, 0.088388346
        %v2012 = vmul.f32 %v1975, 0.088388346
        %v2013 = vmul.f32 %v1978, 0.088388346
        %v2014 = vmul.f32 %v1981, 0.088388346
        %v2015 = vmul.f32 %v1984, 0.088388346
        %v2016 = vmul.f32 %v1987, 0.088388346
        %v2017 = vmul.f32 %v1990, 0.088388346
        %v2018 = vmul.f32 %v1993, 0.088388346
        %v2019 = vmul.f32 %v1996, 0.088388346
        %v2020 = vmul.f32 %v1999, 0.088388346
        %v2021 = vmul.f32 %v2002, 0.088388346
        %v2022 = vmul.f32 %v2005, 0.088388346
        %s2023 = scalar_lea.vmem [#allocation7], 128
        %v2024 = vld [vmem:[%s2023] sm:$0xff]
        %v2025 = vld [vmem:[%s2023 + $0x8] sm:$0xff]
        %v2026 = vld [vmem:[%s2023 + $0x10] sm:$0xff]
        %v2027 = vld [vmem:[%s2023 + $0x18] sm:$0xff]
        %v2028 = vld [vmem:[%s2023 + $0x20] sm:$0xff]
        %v2029 = vld [vmem:[%s2023 + $0x28] sm:$0xff]
        %v2030 = vld [vmem:[%s2023 + $0x30] sm:$0xff]
        %v2031 = vld [vmem:[%s2023 + $0x38] sm:$0xff]
        %v2032 = vld [vmem:[%s2023 + $0x40] sm:$0xff]
        %v2033 = vld [vmem:[%s2023 + $0x48] sm:$0xff]
        %v2034 = vld [vmem:[%s2023 + $0x50] sm:$0xff]
        %v2035 = vld [vmem:[%s2023 + $0x58] sm:$0xff]
        %v2036 = vld [vmem:[%s2023 + $0x60] sm:$0xff]
        %v2037 = vld [vmem:[%s2023 + $0x68] sm:$0xff]
        %v2038 = vld [vmem:[%s2023 + $0x70] sm:$0xff]
        %v2039 = vld [vmem:[%s2023 + $0x78] sm:$0xff]
        %v2040 = vadd.f32 %v2007, %v2024
        %v2041 = vadd.f32 %v2008, %v2025
        %v2042 = vadd.f32 %v2009, %v2026
        %v2043 = vadd.f32 %v2010, %v2027
        %v2044 = vadd.f32 %v2011, %v2028
        %v2045 = vadd.f32 %v2012, %v2029
        %v2046 = vadd.f32 %v2013, %v2030
        %v2047 = vadd.f32 %v2014, %v2031
        %v2048 = vadd.f32 %v2015, %v2032
        %v2049 = vadd.f32 %v2016, %v2033
        %v2050 = vadd.f32 %v2017, %v2034
        %v2051 = vadd.f32 %v2018, %v2035
        %v2052 = vadd.f32 %v2019, %v2036
        %v2053 = vadd.f32 %v2020, %v2037
        %v2054 = vadd.f32 %v2021, %v2038
        %v2055 = vadd.f32 %v2022, %v2039
        %v2056 = vsel %vm1459, -3.4028235e+38, %v2040
        %v2057 = vsel %vm1460, -3.4028235e+38, %v2041
        %v2058 = vsel %vm1461, -3.4028235e+38, %v2042
        %v2059 = vsel %vm1462, -3.4028235e+38, %v2043
        %v2060 = vsel %vm1463, -3.4028235e+38, %v2044
        %v2061 = vsel %vm1464, -3.4028235e+38, %v2045
        %v2062 = vsel %vm1465, -3.4028235e+38, %v2046
        %v2063 = vsel %vm1466, -3.4028235e+38, %v2047
        %v2064 = vsel %vm1467, -3.4028235e+38, %v2048
        %v2065 = vsel %vm1468, -3.4028235e+38, %v2049
        %v2066 = vsel %vm1469, -3.4028235e+38, %v2050
        %v2067 = vsel %vm1470, -3.4028235e+38, %v2051
        %v2068 = vsel %vm1471, -3.4028235e+38, %v2052
        %v2069 = vsel %vm1472, -3.4028235e+38, %v2053
        %v2070 = vsel %vm1473, -3.4028235e+38, %v2054
        %v2071 = vsel %vm1474, -3.4028235e+38, %v2055
        %2072 = vmax.xlane.f32.xlu0 %v2056
        %v2073 = vpop.xlane.xlu0 %2072
        %2074 = vmax.xlane.f32.xlu0 %v2057
        %v2075 = vpop.xlane.xlu0 %2074
        %2076 = vmax.xlane.f32.xlu0 %v2058
        %v2077 = vpop.xlane.xlu0 %2076
        %2078 = vmax.xlane.f32.xlu0 %v2059
        %v2079 = vpop.xlane.xlu0 %2078
        %2080 = vmax.xlane.f32.xlu0 %v2060
        %v2081 = vpop.xlane.xlu0 %2080
        %2082 = vmax.xlane.f32.xlu0 %v2061
        %v2083 = vpop.xlane.xlu0 %2082
        %2084 = vmax.xlane.f32.xlu0 %v2062
        %v2085 = vpop.xlane.xlu0 %2084
        %2086 = vmax.xlane.f32.xlu0 %v2063
        %v2087 = vpop.xlane.xlu0 %2086
        %2088 = vmax.xlane.f32.xlu0 %v2064
        %v2089 = vpop.xlane.xlu0 %2088
        %2090 = vmax.xlane.f32.xlu0 %v2065
        %v2091 = vpop.xlane.xlu0 %2090
        %2092 = vmax.xlane.f32.xlu0 %v2066
        %v2093 = vpop.xlane.xlu0 %2092
        %2094 = vmax.xlane.f32.xlu0 %v2067
        %v2095 = vpop.xlane.xlu0 %2094
        %2096 = vmax.xlane.f32.xlu0 %v2068
        %v2097 = vpop.xlane.xlu0 %2096
        %2098 = vmax.xlane.f32.xlu0 %v2069
        %v2099 = vpop.xlane.xlu0 %2098
        %2100 = vmax.xlane.f32.xlu0 %v2070
        %v2101 = vpop.xlane.xlu0 %2100
        %2102 = vmax.xlane.f32.xlu0 %v2071
        %v2103 = vpop.xlane.xlu0 %2102
        %v2104 = vsub.f32 %v2056, %v2073
        %v2105 = vsub.f32 %v2057, %v2075
        %v2106 = vsub.f32 %v2058, %v2077
        %v2107 = vsub.f32 %v2059, %v2079
        %v2108 = vsub.f32 %v2060, %v2081
        %v2109 = vsub.f32 %v2061, %v2083
        %v2110 = vsub.f32 %v2062, %v2085
        %v2111 = vsub.f32 %v2063, %v2087
        %v2112 = vsub.f32 %v2064, %v2089
        %v2113 = vsub.f32 %v2065, %v2091
        %v2114 = vsub.f32 %v2066, %v2093
        %v2115 = vsub.f32 %v2067, %v2095
        %v2116 = vsub.f32 %v2068, %v2097
        %v2117 = vsub.f32 %v2069, %v2099
        %v2118 = vsub.f32 %v2070, %v2101
        %v2119 = vsub.f32 %v2071, %v2103
        %v2120 = vmul.f32 %v2104, 1.442695
        %v2121 = vpow.pop %v2120
        %v2122 = vmul.f32 %v2105, 1.442695
        %v2123 = vpow.pop %v2122
        %v2124 = vmul.f32 %v2106, 1.442695
        %v2125 = vpow.pop %v2124
        %v2126 = vmul.f32 %v2107, 1.442695
        %v2127 = vpow.pop %v2126
        %v2128 = vmul.f32 %v2108, 1.442695
        %v2129 = vpow.pop %v2128
        %v2130 = vmul.f32 %v2109, 1.442695
        %v2131 = vpow.pop %v2130
        %v2132 = vmul.f32 %v2110, 1.442695
        %v2133 = vpow.pop %v2132
        %v2134 = vmul.f32 %v2111, 1.442695
        %v2135 = vpow.pop %v2134
        %v2136 = vmul.f32 %v2112, 1.442695
        %v2137 = vpow.pop %v2136
        %v2138 = vmul.f32 %v2113, 1.442695
        %v2139 = vpow.pop %v2138
        %v2140 = vmul.f32 %v2114, 1.442695
        %v2141 = vpow.pop %v2140
        %v2142 = vmul.f32 %v2115, 1.442695
        %v2143 = vpow.pop %v2142
        %v2144 = vmul.f32 %v2116, 1.442695
        %v2145 = vpow.pop %v2144
        %v2146 = vmul.f32 %v2117, 1.442695
        %v2147 = vpow.pop %v2146
        %v2148 = vmul.f32 %v2118, 1.442695
        %v2149 = vpow.pop %v2148
        %v2150 = vmul.f32 %v2119, 1.442695
        %v2151 = vpow.pop %v2150
        %2152 = vadd.xlane.f32.xlu0 %v2121
        %v2153 = vpop.xlane.xlu0 %2152
        %2154 = vadd.xlane.f32.xlu0 %v2123
        %v2155 = vpop.xlane.xlu0 %2154
        %2156 = vadd.xlane.f32.xlu0 %v2125
        %v2157 = vpop.xlane.xlu0 %2156
        %2158 = vadd.xlane.f32.xlu0 %v2127
        %v2159 = vpop.xlane.xlu0 %2158
        %2160 = vadd.xlane.f32.xlu0 %v2129
        %v2161 = vpop.xlane.xlu0 %2160
        %2162 = vadd.xlane.f32.xlu0 %v2131
        %v2163 = vpop.xlane.xlu0 %2162
        %2164 = vadd.xlane.f32.xlu0 %v2133
        %v2165 = vpop.xlane.xlu0 %2164
        %2166 = vadd.xlane.f32.xlu0 %v2135
        %v2167 = vpop.xlane.xlu0 %2166
        %2168 = vadd.xlane.f32.xlu0 %v2137
        %v2169 = vpop.xlane.xlu0 %2168
        %2170 = vadd.xlane.f32.xlu0 %v2139
        %v2171 = vpop.xlane.xlu0 %2170
        %2172 = vadd.xlane.f32.xlu0 %v2141
        %v2173 = vpop.xlane.xlu0 %2172
        %2174 = vadd.xlane.f32.xlu0 %v2143
        %v2175 = vpop.xlane.xlu0 %2174
        %2176 = vadd.xlane.f32.xlu0 %v2145
        %v2177 = vpop.xlane.xlu0 %2176
        %2178 = vadd.xlane.f32.xlu0 %v2147
        %v2179 = vpop.xlane.xlu0 %2178
        %2180 = vadd.xlane.f32.xlu0 %v2149
        %v2181 = vpop.xlane.xlu0 %2180
        %2182 = vadd.xlane.f32.xlu0 %v2151
        %v2183 = vpop.xlane.xlu0 %2182
        %v2184 = vrcp.pop %v2153
        %v2185 = vmul.f32 %v2153, %v2184
        %v2186 = vsub.f32 1.0, %v2185
        %v2187 = vmul.f32 %v2184, %v2186
        %v2188 = vadd.f32 %v2184, %v2187
        %vm2189 = vweird.f32 %v2153
        %vm2190 = vweird.f32 %v2184
        %vm2191 = vmor %vm2189, %vm2190
        %v2192 = vsel %vm2191, %v2184, %v2188
        %v2193 = vand.u32 2147483647, %v2153
        %vm2194 = vcmp.eq.f32.partialorder %v2193, 8.507059e+37
        %v2195 = vand.u32 %v2153, 2147483648
        %v2196 = vor.u32 1.1754944e-38, %v2195
        %v2197 = vsel %vm2194, %v2196, %v2192
        %v2198 = vmul.f32 %v2121, %v2197
        %v2199 = vrcp.pop %v2155
        %v2200 = vmul.f32 %v2155, %v2199
        %v2201 = vsub.f32 1.0, %v2200
        %v2202 = vmul.f32 %v2199, %v2201
        %v2203 = vadd.f32 %v2199, %v2202
        %vm2204 = vweird.f32 %v2155
        %vm2205 = vweird.f32 %v2199
        %vm2206 = vmor %vm2204, %vm2205
        %v2207 = vsel %vm2206, %v2199, %v2203
        %v2208 = vand.u32 2147483647, %v2155
        %vm2209 = vcmp.eq.f32.partialorder %v2208, 8.507059e+37
        %v2210 = vand.u32 %v2155, 2147483648
        %v2211 = vor.u32 1.1754944e-38, %v2210
        %v2212 = vsel %vm2209, %v2211, %v2207
        %v2213 = vmul.f32 %v2123, %v2212
        %v2214 = vrcp.pop %v2157
        %v2215 = vmul.f32 %v2157, %v2214
        %v2216 = vsub.f32 1.0, %v2215
        %v2217 = vmul.f32 %v2214, %v2216
        %v2218 = vadd.f32 %v2214, %v2217
        %vm2219 = vweird.f32 %v2157
        %vm2220 = vweird.f32 %v2214
        %vm2221 = vmor %vm2219, %vm2220
        %v2222 = vsel %vm2221, %v2214, %v2218
        %v2223 = vand.u32 2147483647, %v2157
        %vm2224 = vcmp.eq.f32.partialorder %v2223, 8.507059e+37
        %v2225 = vand.u32 %v2157, 2147483648
        %v2226 = vor.u32 1.1754944e-38, %v2225
        %v2227 = vsel %vm2224, %v2226, %v2222
        %v2228 = vmul.f32 %v2125, %v2227
        %v2229 = vrcp.pop %v2159
        %v2230 = vmul.f32 %v2159, %v2229
        %v2231 = vsub.f32 1.0, %v2230
        %v2232 = vmul.f32 %v2229, %v2231
        %v2233 = vadd.f32 %v2229, %v2232
        %vm2234 = vweird.f32 %v2159
        %vm2235 = vweird.f32 %v2229
        %vm2236 = vmor %vm2234, %vm2235
        %v2237 = vsel %vm2236, %v2229, %v2233
        %v2238 = vand.u32 2147483647, %v2159
        %vm2239 = vcmp.eq.f32.partialorder %v2238, 8.507059e+37
        %v2240 = vand.u32 %v2159, 2147483648
        %v2241 = vor.u32 1.1754944e-38, %v2240
        %v2242 = vsel %vm2239, %v2241, %v2237
        %v2243 = vmul.f32 %v2127, %v2242
        %v2244 = vrcp.pop %v2161
        %v2245 = vmul.f32 %v2161, %v2244
        %v2246 = vsub.f32 1.0, %v2245
        %v2247 = vmul.f32 %v2244, %v2246
        %v2248 = vadd.f32 %v2244, %v2247
        %vm2249 = vweird.f32 %v2161
        %vm2250 = vweird.f32 %v2244
        %vm2251 = vmor %vm2249, %vm2250
        %v2252 = vsel %vm2251, %v2244, %v2248
        %v2253 = vand.u32 2147483647, %v2161
        %vm2254 = vcmp.eq.f32.partialorder %v2253, 8.507059e+37
        %v2255 = vand.u32 %v2161, 2147483648
        %v2256 = vor.u32 1.1754944e-38, %v2255
        %v2257 = vsel %vm2254, %v2256, %v2252
        %v2258 = vmul.f32 %v2129, %v2257
        %v2259 = vrcp.pop %v2163
        %v2260 = vmul.f32 %v2163, %v2259
        %v2261 = vsub.f32 1.0, %v2260
        %v2262 = vmul.f32 %v2259, %v2261
        %v2263 = vadd.f32 %v2259, %v2262
        %vm2264 = vweird.f32 %v2163
        %vm2265 = vweird.f32 %v2259
        %vm2266 = vmor %vm2264, %vm2265
        %v2267 = vsel %vm2266, %v2259, %v2263
        %v2268 = vand.u32 2147483647, %v2163
        %vm2269 = vcmp.eq.f32.partialorder %v2268, 8.507059e+37
        %v2270 = vand.u32 %v2163, 2147483648
        %v2271 = vor.u32 1.1754944e-38, %v2270
        %v2272 = vsel %vm2269, %v2271, %v2267
        %v2273 = vmul.f32 %v2131, %v2272
        %v2274 = vrcp.pop %v2165
        %v2275 = vmul.f32 %v2165, %v2274
        %v2276 = vsub.f32 1.0, %v2275
        %v2277 = vmul.f32 %v2274, %v2276
        %v2278 = vadd.f32 %v2274, %v2277
        %vm2279 = vweird.f32 %v2165
        %vm2280 = vweird.f32 %v2274
        %vm2281 = vmor %vm2279, %vm2280
        %v2282 = vsel %vm2281, %v2274, %v2278
        %v2283 = vand.u32 2147483647, %v2165
        %vm2284 = vcmp.eq.f32.partialorder %v2283, 8.507059e+37
        %v2285 = vand.u32 %v2165, 2147483648
        %v2286 = vor.u32 1.1754944e-38, %v2285
        %v2287 = vsel %vm2284, %v2286, %v2282
        %v2288 = vmul.f32 %v2133, %v2287
        %v2289 = vrcp.pop %v2167
        %v2290 = vmul.f32 %v2167, %v2289
        %v2291 = vsub.f32 1.0, %v2290
        %v2292 = vmul.f32 %v2289, %v2291
        %v2293 = vadd.f32 %v2289, %v2292
        %vm2294 = vweird.f32 %v2167
        %vm2295 = vweird.f32 %v2289
        %vm2296 = vmor %vm2294, %vm2295
        %v2297 = vsel %vm2296, %v2289, %v2293
        %v2298 = vand.u32 2147483647, %v2167
        %vm2299 = vcmp.eq.f32.partialorder %v2298, 8.507059e+37
        %v2300 = vand.u32 %v2167, 2147483648
        %v2301 = vor.u32 1.1754944e-38, %v2300
        %v2302 = vsel %vm2299, %v2301, %v2297
        %v2303 = vmul.f32 %v2135, %v2302
        %v2304 = vrcp.pop %v2169
        %v2305 = vmul.f32 %v2169, %v2304
        %v2306 = vsub.f32 1.0, %v2305
        %v2307 = vmul.f32 %v2304, %v2306
        %v2308 = vadd.f32 %v2304, %v2307
        %vm2309 = vweird.f32 %v2169
        %vm2310 = vweird.f32 %v2304
        %vm2311 = vmor %vm2309, %vm2310
        %v2312 = vsel %vm2311, %v2304, %v2308
        %v2313 = vand.u32 2147483647, %v2169
        %vm2314 = vcmp.eq.f32.partialorder %v2313, 8.507059e+37
        %v2315 = vand.u32 %v2169, 2147483648
        %v2316 = vor.u32 1.1754944e-38, %v2315
        %v2317 = vsel %vm2314, %v2316, %v2312
        %v2318 = vmul.f32 %v2137, %v2317
        %v2319 = vrcp.pop %v2171
        %v2320 = vmul.f32 %v2171, %v2319
        %v2321 = vsub.f32 1.0, %v2320
        %v2322 = vmul.f32 %v2319, %v2321
        %v2323 = vadd.f32 %v2319, %v2322
        %vm2324 = vweird.f32 %v2171
        %vm2325 = vweird.f32 %v2319
        %vm2326 = vmor %vm2324, %vm2325
        %v2327 = vsel %vm2326, %v2319, %v2323
        %v2328 = vand.u32 2147483647, %v2171
        %vm2329 = vcmp.eq.f32.partialorder %v2328, 8.507059e+37
        %v2330 = vand.u32 %v2171, 2147483648
        %v2331 = vor.u32 1.1754944e-38, %v2330
        %v2332 = vsel %vm2329, %v2331, %v2327
        %v2333 = vmul.f32 %v2139, %v2332
        %v2334 = vrcp.pop %v2173
        %v2335 = vmul.f32 %v2173, %v2334
        %v2336 = vsub.f32 1.0, %v2335
        %v2337 = vmul.f32 %v2334, %v2336
        %v2338 = vadd.f32 %v2334, %v2337
        %vm2339 = vweird.f32 %v2173
        %vm2340 = vweird.f32 %v2334
        %vm2341 = vmor %vm2339, %vm2340
        %v2342 = vsel %vm2341, %v2334, %v2338
        %v2343 = vand.u32 2147483647, %v2173
        %vm2344 = vcmp.eq.f32.partialorder %v2343, 8.507059e+37
        %v2345 = vand.u32 %v2173, 2147483648
        %v2346 = vor.u32 1.1754944e-38, %v2345
        %v2347 = vsel %vm2344, %v2346, %v2342
        %v2348 = vmul.f32 %v2141, %v2347
        %v2349 = vrcp.pop %v2175
        %v2350 = vmul.f32 %v2175, %v2349
        %v2351 = vsub.f32 1.0, %v2350
        %v2352 = vmul.f32 %v2349, %v2351
        %v2353 = vadd.f32 %v2349, %v2352
        %vm2354 = vweird.f32 %v2175
        %vm2355 = vweird.f32 %v2349
        %vm2356 = vmor %vm2354, %vm2355
        %v2357 = vsel %vm2356, %v2349, %v2353
        %v2358 = vand.u32 2147483647, %v2175
        %vm2359 = vcmp.eq.f32.partialorder %v2358, 8.507059e+37
        %v2360 = vand.u32 %v2175, 2147483648
        %v2361 = vor.u32 1.1754944e-38, %v2360
        %v2362 = vsel %vm2359, %v2361, %v2357
        %v2363 = vmul.f32 %v2143, %v2362
        %v2364 = vrcp.pop %v2177
        %v2365 = vmul.f32 %v2177, %v2364
        %v2366 = vsub.f32 1.0, %v2365
        %v2367 = vmul.f32 %v2364, %v2366
        %v2368 = vadd.f32 %v2364, %v2367
        %vm2369 = vweird.f32 %v2177
        %vm2370 = vweird.f32 %v2364
        %vm2371 = vmor %vm2369, %vm2370
        %v2372 = vsel %vm2371, %v2364, %v2368
        %v2373 = vand.u32 2147483647, %v2177
        %vm2374 = vcmp.eq.f32.partialorder %v2373, 8.507059e+37
        %v2375 = vand.u32 %v2177, 2147483648
        %v2376 = vor.u32 1.1754944e-38, %v2375
        %v2377 = vsel %vm2374, %v2376, %v2372
        %v2378 = vmul.f32 %v2145, %v2377
        %v2379 = vrcp.pop %v2179
        %v2380 = vmul.f32 %v2179, %v2379
        %v2381 = vsub.f32 1.0, %v2380
        %v2382 = vmul.f32 %v2379, %v2381
        %v2383 = vadd.f32 %v2379, %v2382
        %vm2384 = vweird.f32 %v2179
        %vm2385 = vweird.f32 %v2379
        %vm2386 = vmor %vm2384, %vm2385
        %v2387 = vsel %vm2386, %v2379, %v2383
        %v2388 = vand.u32 2147483647, %v2179
        %vm2389 = vcmp.eq.f32.partialorder %v2388, 8.507059e+37
        %v2390 = vand.u32 %v2179, 2147483648
        %v2391 = vor.u32 1.1754944e-38, %v2390
        %v2392 = vsel %vm2389, %v2391, %v2387
        %v2393 = vmul.f32 %v2147, %v2392
        %v2394 = vrcp.pop %v2181
        %v2395 = vmul.f32 %v2181, %v2394
        %v2396 = vsub.f32 1.0, %v2395
        %v2397 = vmul.f32 %v2394, %v2396
        %v2398 = vadd.f32 %v2394, %v2397
        %vm2399 = vweird.f32 %v2181
        %vm2400 = vweird.f32 %v2394
        %vm2401 = vmor %vm2399, %vm2400
        %v2402 = vsel %vm2401, %v2394, %v2398
        %v2403 = vand.u32 2147483647, %v2181
        %vm2404 = vcmp.eq.f32.partialorder %v2403, 8.507059e+37
        %v2405 = vand.u32 %v2181, 2147483648
        %v2406 = vor.u32 1.1754944e-38, %v2405
        %v2407 = vsel %vm2404, %v2406, %v2402
        %v2408 = vmul.f32 %v2149, %v2407
        %v2409 = vrcp.pop %v2183
        %v2410 = vmul.f32 %v2183, %v2409
        %v2411 = vsub.f32 1.0, %v2410
        %v2412 = vmul.f32 %v2409, %v2411
        %v2413 = vadd.f32 %v2409, %v2412
        %vm2414 = vweird.f32 %v2183
        %vm2415 = vweird.f32 %v2409
        %vm2416 = vmor %vm2414, %vm2415
        %v2417 = vsel %vm2416, %v2409, %v2413
        %v2418 = vand.u32 2147483647, %v2183
        %vm2419 = vcmp.eq.f32.partialorder %v2418, 8.507059e+37
        %v2420 = vand.u32 %v2183, 2147483648
        %v2421 = vor.u32 1.1754944e-38, %v2420
        %v2422 = vsel %vm2419, %v2421, %v2417
        %v2423 = vmul.f32 %v2151, %v2422
        %2424 = vmatpush.msra.mxu0 %v1295
        %2425 = vmatpush.msra.mxu0 %v1292
        %2426 = vmatpush.msra.mxu0 %v1289
        %2427 = vmatpush.msra.mxu0 %v1286
        %2428 = vmatpush.msra.mxu0 %v1283
        %2429 = vmatpush.msra.mxu0 %v1280
        %2430 = vmatpush.msra.mxu0 %v1277
        %2431 = vmatpush.msra.mxu0 %v1274
        %2432 = vmatpush.msra.mxu0 %v1271
        %2433 = vmatpush.msra.mxu0 %v1268
        %2434 = vmatpush.msra.mxu0 %v1265
        %2435 = vmatpush.msra.mxu0 %v1262
        %2436 = vmatpush.msra.mxu0 %v1259
        %2437 = vmatpush.msra.mxu0 %v1256
        %2438 = vmatpush.msra.mxu0 %v1253
        %2439 = vmatpush.msra.mxu0 %v1250
        %2440 = vmatmul.f32.gmra.mxu0 %v2198
        %v2441 = vpop.f32.mrf.mxu0
        %v2442 = vadd.f32 0.0, %v2441
        %2443 = vmatmul.f32.gmra.mxu0 %v2213
        %v2444 = vpop.f32.mrf.mxu0
        %v2445 = vadd.f32 0.0, %v2444
        %2446 = vmatmul.f32.gmra.mxu0 %v2228
        %v2447 = vpop.f32.mrf.mxu0
        %v2448 = vadd.f32 0.0, %v2447
        %2449 = vmatmul.f32.gmra.mxu0 %v2243
        %v2450 = vpop.f32.mrf.mxu0
        %v2451 = vadd.f32 0.0, %v2450
        %2452 = vmatmul.f32.gmra.mxu0 %v2258
        %v2453 = vpop.f32.mrf.mxu0
        %v2454 = vadd.f32 0.0, %v2453
        %2455 = vmatmul.f32.gmra.mxu0 %v2273
        %v2456 = vpop.f32.mrf.mxu0
        %v2457 = vadd.f32 0.0, %v2456
        %2458 = vmatmul.f32.gmra.mxu0 %v2288
        %v2459 = vpop.f32.mrf.mxu0
        %v2460 = vadd.f32 0.0, %v2459
        %2461 = vmatmul.f32.gmra.mxu0 %v2303
        %v2462 = vpop.f32.mrf.mxu0
        %v2463 = vadd.f32 0.0, %v2462
        %2464 = vmatmul.f32.gmra.mxu0 %v2318
        %v2465 = vpop.f32.mrf.mxu0
        %v2466 = vadd.f32 0.0, %v2465
        %2467 = vmatmul.f32.gmra.mxu0 %v2333
        %v2468 = vpop.f32.mrf.mxu0
        %v2469 = vadd.f32 0.0, %v2468
        %2470 = vmatmul.f32.gmra.mxu0 %v2348
        %v2471 = vpop.f32.mrf.mxu0
        %v2472 = vadd.f32 0.0, %v2471
        %2473 = vmatmul.f32.gmra.mxu0 %v2363
        %v2474 = vpop.f32.mrf.mxu0
        %v2475 = vadd.f32 0.0, %v2474
        %2476 = vmatmul.f32.gmra.mxu0 %v2378
        %v2477 = vpop.f32.mrf.mxu0
        %v2478 = vadd.f32 0.0, %v2477
        %2479 = vmatmul.f32.gmra.mxu0 %v2393
        %v2480 = vpop.f32.mrf.mxu0
        %v2481 = vadd.f32 0.0, %v2480
        %2482 = vmatmul.f32.gmra.mxu0 %v2408
        %v2483 = vpop.f32.mrf.mxu0
        %v2484 = vadd.f32 0.0, %v2483
        %2485 = vmatmul.f32.gmra.mxu0 %v2423
        %v2486 = vpop.f32.mrf.mxu0
        %v2487 = vadd.f32 0.0, %v2486
        %2488 = vdwg.mxu0
        %v2489 = vld [vmem:[#allocation10] sm:$0xff]
        %v2490 = vld [vmem:[#allocation10 + $0x8] sm:$0xff]
        %v2491 = vld [vmem:[#allocation10 + $0x10] sm:$0xff]
        %v2492 = vld [vmem:[#allocation10 + $0x18] sm:$0xff]
        %v2493 = vld [vmem:[#allocation10 + $0x20] sm:$0xff]
        %v2494 = vld [vmem:[#allocation10 + $0x28] sm:$0xff]
        %v2495 = vld [vmem:[#allocation10 + $0x30] sm:$0xff]
        %v2496 = vld [vmem:[#allocation10 + $0x38] sm:$0xff]
        %v2497 = vld [vmem:[#allocation10 + $0x40] sm:$0xff]
        %v2498 = vld [vmem:[#allocation10 + $0x48] sm:$0xff]
        %v2499 = vld [vmem:[#allocation10 + $0x50] sm:$0xff]
        %v2500 = vld [vmem:[#allocation10 + $0x58] sm:$0xff]
        %v2501 = vld [vmem:[#allocation10 + $0x60] sm:$0xff]
        %v2502 = vld [vmem:[#allocation10 + $0x68] sm:$0xff]
        %v2503 = vld [vmem:[#allocation10 + $0x70] sm:$0xff]
        %v2504 = vld [vmem:[#allocation10 + $0x78] sm:$0xff]
        %v2505 = vld [vmem:[#allocation10 + $0x80] sm:$0xff]
        %v2506 = vld [vmem:[#allocation10 + $0x88] sm:$0xff]
        %v2507 = vld [vmem:[#allocation10 + $0x90] sm:$0xff]
        %v2508 = vld [vmem:[#allocation10 + $0x98] sm:$0xff]
        %v2509 = vld [vmem:[#allocation10 + $0xa0] sm:$0xff]
        %v2510 = vld [vmem:[#allocation10 + $0xa8] sm:$0xff]
        %v2511 = vld [vmem:[#allocation10 + $0xb0] sm:$0xff]
        %v2512 = vld [vmem:[#allocation10 + $0xb8] sm:$0xff]
        %v2513 = vld [vmem:[#allocation10 + $0xc0] sm:$0xff]
        %v2514 = vld [vmem:[#allocation10 + $0xc8] sm:$0xff]
        %v2515 = vld [vmem:[#allocation10 + $0xd0] sm:$0xff]
        %v2516 = vld [vmem:[#allocation10 + $0xd8] sm:$0xff]
        %v2517 = vld [vmem:[#allocation10 + $0xe0] sm:$0xff]
        %v2518 = vld [vmem:[#allocation10 + $0xe8] sm:$0xff]
        %v2519 = vld [vmem:[#allocation10 + $0xf0] sm:$0xff]
        %v2520 = vld [vmem:[#allocation10 + $0xf8] sm:$0xff]
        %2521 = vmatpush.msra.mxu0 %v2504
        %2522 = vmatpush.msra.mxu0 %v2503
        %2523 = vmatpush.msra.mxu0 %v2502
        %2524 = vmatpush.msra.mxu0 %v2501
        %2525 = vmatpush.msra.mxu0 %v2500
        %2526 = vmatpush.msra.mxu0 %v2499
        %2527 = vmatpush.msra.mxu0 %v2498
        %2528 = vmatpush.msra.mxu0 %v2497
        %2529 = vmatpush.msra.mxu0 %v2496
        %2530 = vmatpush.msra.mxu0 %v2495
        %2531 = vmatpush.msra.mxu0 %v2494
        %2532 = vmatpush.msra.mxu0 %v2493
        %2533 = vmatpush.msra.mxu0 %v2492
        %2534 = vmatpush.msra.mxu0 %v2491
        %2535 = vmatpush.msra.mxu0 %v2490
        %2536 = vmatpush.msra.mxu0 %v2489
        %2537 = vmatmul.f32.gmra.mxu0 %v1861
        %v2538 = vpop.f32.mrf.mxu0
        %v2539 = vadd.f32 %v428, %v2538
        %2540 = vmatmul.f32.gmra.mxu0 %v1864
        %v2541 = vpop.f32.mrf.mxu0
        %v2542 = vadd.f32 %v429, %v2541
        %2543 = vmatmul.f32.gmra.mxu0 %v1867
        %v2544 = vpop.f32.mrf.mxu0
        %v2545 = vadd.f32 %v430, %v2544
        %2546 = vmatmul.f32.gmra.mxu0 %v1870
        %v2547 = vpop.f32.mrf.mxu0
        %v2548 = vadd.f32 %v431, %v2547
        %2549 = vmatmul.f32.gmra.mxu0 %v1873
        %v2550 = vpop.f32.mrf.mxu0
        %v2551 = vadd.f32 %v432, %v2550
        %2552 = vmatmul.f32.gmra.mxu0 %v1876
        %v2553 = vpop.f32.mrf.mxu0
        %v2554 = vadd.f32 %v433, %v2553
        %2555 = vmatmul.f32.gmra.mxu0 %v1879
        %v2556 = vpop.f32.mrf.mxu0
        %v2557 = vadd.f32 %v434, %v2556
        %2558 = vmatmul.f32.gmra.mxu0 %v1882
        %v2559 = vpop.f32.mrf.mxu0
        %v2560 = vadd.f32 %v435, %v2559
        %2561 = vmatmul.f32.gmra.mxu0 %v1885
        %v2562 = vpop.f32.mrf.mxu0
        %v2563 = vadd.f32 %v436, %v2562
        %2564 = vmatmul.f32.gmra.mxu0 %v1888
        %v2565 = vpop.f32.mrf.mxu0
        %v2566 = vadd.f32 %v437, %v2565
        %2567 = vmatmul.f32.gmra.mxu0 %v1891
        %v2568 = vpop.f32.mrf.mxu0
        %v2569 = vadd.f32 %v438, %v2568
        %2570 = vmatmul.f32.gmra.mxu0 %v1894
        %v2571 = vpop.f32.mrf.mxu0
        %v2572 = vadd.f32 %v439, %v2571
        %2573 = vmatmul.f32.gmra.mxu0 %v1897
        %v2574 = vpop.f32.mrf.mxu0
        %v2575 = vadd.f32 %v440, %v2574
        %2576 = vmatmul.f32.gmra.mxu0 %v1900
        %v2577 = vpop.f32.mrf.mxu0
        %v2578 = vadd.f32 %v441, %v2577
        %2579 = vmatmul.f32.gmra.mxu0 %v1903
        %v2580 = vpop.f32.mrf.mxu0
        %v2581 = vadd.f32 %v442, %v2580
        %2582 = vmatmul.f32.gmra.mxu0 %v1906
        %v2583 = vpop.f32.mrf.mxu0
        %v2584 = vadd.f32 %v443, %v2583
        %2585 = vdwg.mxu0
        %2586 = vmatpush.msra.mxu0 %v2520
        %2587 = vmatpush.msra.mxu0 %v2519
        %2588 = vmatpush.msra.mxu0 %v2518
        %2589 = vmatpush.msra.mxu0 %v2517
        %2590 = vmatpush.msra.mxu0 %v2516
        %2591 = vmatpush.msra.mxu0 %v2515
        %2592 = vmatpush.msra.mxu0 %v2514
        %2593 = vmatpush.msra.mxu0 %v2513
        %2594 = vmatpush.msra.mxu0 %v2512
        %2595 = vmatpush.msra.mxu0 %v2511
        %2596 = vmatpush.msra.mxu0 %v2510
        %2597 = vmatpush.msra.mxu0 %v2509
        %2598 = vmatpush.msra.mxu0 %v2508
        %2599 = vmatpush.msra.mxu0 %v2507
        %2600 = vmatpush.msra.mxu0 %v2506
        %2601 = vmatpush.msra.mxu0 %v2505
        %2602 = vmatmul.f32.gmra.mxu0 %v2442
        %v2603 = vpop.f32.mrf.mxu0
        %v2604 = vadd.f32 %v2539, %v2603
        %2605 = vmatmul.f32.gmra.mxu0 %v2445
        %v2606 = vpop.f32.mrf.mxu0
        %v2607 = vadd.f32 %v2542, %v2606
        %2608 = vmatmul.f32.gmra.mxu0 %v2448
        %v2609 = vpop.f32.mrf.mxu0
        %v2610 = vadd.f32 %v2545, %v2609
        %2611 = vmatmul.f32.gmra.mxu0 %v2451
        %v2612 = vpop.f32.mrf.mxu0
        %v2613 = vadd.f32 %v2548, %v2612
        %2614 = vmatmul.f32.gmra.mxu0 %v2454
        %v2615 = vpop.f32.mrf.mxu0
        %v2616 = vadd.f32 %v2551, %v2615
        %2617 = vmatmul.f32.gmra.mxu0 %v2457
        %v2618 = vpop.f32.mrf.mxu0
        %v2619 = vadd.f32 %v2554, %v2618
        %2620 = vmatmul.f32.gmra.mxu0 %v2460
        %v2621 = vpop.f32.mrf.mxu0
        %v2622 = vadd.f32 %v2557, %v2621
        %2623 = vmatmul.f32.gmra.mxu0 %v2463
        %v2624 = vpop.f32.mrf.mxu0
        %v2625 = vadd.f32 %v2560, %v2624
        %2626 = vmatmul.f32.gmra.mxu0 %v2466
        %v2627 = vpop.f32.mrf.mxu0
        %v2628 = vadd.f32 %v2563, %v2627
        %2629 = vmatmul.f32.gmra.mxu0 %v2469
        %v2630 = vpop.f32.mrf.mxu0
        %v2631 = vadd.f32 %v2566, %v2630
        %2632 = vmatmul.f32.gmra.mxu0 %v2472
        %v2633 = vpop.f32.mrf.mxu0
        %v2634 = vadd.f32 %v2569, %v2633
        %2635 = vmatmul.f32.gmra.mxu0 %v2475
        %v2636 = vpop.f32.mrf.mxu0
        %v2637 = vadd.f32 %v2572, %v2636
        %2638 = vmatmul.f32.gmra.mxu0 %v2478
        %v2639 = vpop.f32.mrf.mxu0
        %v2640 = vadd.f32 %v2575, %v2639
        %2641 = vmatmul.f32.gmra.mxu0 %v2481
        %v2642 = vpop.f32.mrf.mxu0
        %v2643 = vadd.f32 %v2578, %v2642
        %2644 = vmatmul.f32.gmra.mxu0 %v2484
        %v2645 = vpop.f32.mrf.mxu0
        %v2646 = vadd.f32 %v2581, %v2645
        %2647 = vmatmul.f32.gmra.mxu0 %v2487
        %v2648 = vpop.f32.mrf.mxu0
        %v2649 = vadd.f32 %v2584, %v2648
        %2650 = vdwg.mxu0
        %2651 = vst [vmem:[%s420] sm:$0xff] %v2604
        %2652 = vst [vmem:[%s420 + $0x8] sm:$0xff] %v2607
        %2653 = vst [vmem:[%s420 + $0x10] sm:$0xff] %v2610
        %2654 = vst [vmem:[%s420 + $0x18] sm:$0xff] %v2613
        %2655 = vst [vmem:[%s420 + $0x20] sm:$0xff] %v2616
        %2656 = vst [vmem:[%s420 + $0x28] sm:$0xff] %v2619
        %2657 = vst [vmem:[%s420 + $0x30] sm:$0xff] %v2622
        %2658 = vst [vmem:[%s420 + $0x38] sm:$0xff] %v2625
        %2659 = vst [vmem:[%s420 + $0x40] sm:$0xff] %v2628
        %2660 = vst [vmem:[%s420 + $0x48] sm:$0xff] %v2631
        %2661 = vst [vmem:[%s420 + $0x50] sm:$0xff] %v2634
        %2662 = vst [vmem:[%s420 + $0x58] sm:$0xff] %v2637
        %2663 = vst [vmem:[%s420 + $0x60] sm:$0xff] %v2640
        %2664 = vst [vmem:[%s420 + $0x68] sm:$0xff] %v2643
        %2665 = vst [vmem:[%s420 + $0x70] sm:$0xff] %v2646
        %2666 = vst [vmem:[%s420 + $0x78] sm:$0xff] %v2649
        %s2667 = sand.u32 %s198, 1
        %s2668 = scalar_lea.sflag [#allocation4], %s2667
        %s2669 = sand.u32 %s198, 1
        %s2670 = smul.addr %s2669, 128
        %s2671 = scalar_lea.vmem [#allocation11], %s2670
        %s2672 = sand.u32 %s224, 1
        %s2673 = scalar_lea.sflag [#allocation13], %s2672
        %s2674 = sand.u32 %s224, 1
        %s2675 = smul.addr %s2674, 512
        %s2676 = scalar_lea.vmem [#allocation12], %s2675
        // Predicated region
        $region69: #{tpu_custom_call.1} parent=47 // pred_check
          %p2677 = pneg %p208
        $region70: #{tpu_custom_call.1} parent=47 // pred_check_branch
          %2679 = sbr.rel (%p2677) target = $region72
        $region71: #{tpu_custom_call.1} parent=47 // pred_region
          %2681 = vsyncadd %s2668, 0
          %s2682 = smul.addr %s33, 16
          %s2683 = smul.addr %s2682, 8
          %s2684 = scalar_lea.hbm %s7, %s2683
          %s2685 = sshll.u32 %s2671, 4
          %s2686 = int_to_ptr.vmem [resolvable:$true] %s2685
          %s2687 = sshll.u32 %s2684, 4
          %s2688 = int_to_ptr.hbm [resolvable:$true] %s2687
          %2693 = dma.vmem_to_hbm [thread:$0]  %s2686, 2048, %s2688, %s2668, 128, 128, 8
        $region72: #{tpu_custom_call.1} parent=47 // pred_fallthru
          _
        // Predicated region
        $region73: #{tpu_custom_call.1} parent=47 // pred_check
          %p2694 = pneg %p234
        $region74: #{tpu_custom_call.1} parent=47 // pred_check_branch
          %2696 = sbr.rel (%p2694) target = $region76
        $region75: #{tpu_custom_call.1} parent=47 // pred_region
          %2698 = vsyncadd %s2673, 0
          %s2699 = smul.addr %s33, 64
          %s2700 = smul.addr %s2699, 8
          %s2701 = scalar_lea.hbm %s8, %s2700
          %s2702 = sshll.u32 %s2676, 4
          %s2703 = int_to_ptr.vmem [resolvable:$true] %s2702
          %s2704 = sshll.u32 %s2701, 4
          %s2705 = int_to_ptr.hbm [resolvable:$true] %s2704
          %2710 = dma.vmem_to_hbm [thread:$0]  %s2703, 8192, %s2705, %s2673, 128, 128, 8
        $region76: #{tpu_custom_call.1} parent=47 // pred_fallthru
          _
      $region48: #{tpu_custom_call.1} parent=5 // pred_fallthru
        _
      %p2711 = scmp.le.s32.totalorder 2, %s28
      // Predicated region
      $region77: #{tpu_custom_call.1} parent=5 // pred_check
        %p2712 = pneg %p2711
      $region78: #{tpu_custom_call.1} parent=5 // pred_check_branch
        %2714 = sbr.rel (%p2712) target = $region80
      $region79: #{tpu_custom_call.1} parent=5 // pred_region
        %s2715 = ssub.s32 %s28, 2
        // Predicated region
        $region81: #{tpu_custom_call.1} parent=79 // pred_check
          %p2716 = pneg %p214
        $region82: #{tpu_custom_call.1} parent=79 // pred_check_branch
          %2718 = sbr.rel (%p2716) target = $region84
        $region83: #{tpu_custom_call.1} parent=79 // pred_region
          %s2719 = sand.u32 %s199, 1
          %s2720 = scalar_lea.sflag [#allocation4], %s2719
          %s2721 = sand.u32 %s199, 1
          %s2722 = smul.addr %s2721, 128
          %s2723 = scalar_lea.vmem [#allocation11], %s2722
          %2725 = dma.done %s2720, 2048
        $region84: #{tpu_custom_call.1} parent=79 // pred_fallthru
          _
        // Predicated region
        $region85: #{tpu_custom_call.1} parent=79 // pred_check
          %p2726 = pneg %p240
        $region86: #{tpu_custom_call.1} parent=79 // pred_check_branch
          %2728 = sbr.rel (%p2726) target = $region88
        $region87: #{tpu_custom_call.1} parent=79 // pred_region
          %s2729 = sand.u32 %s225, 1
          %s2730 = scalar_lea.sflag [#allocation13], %s2729
          %s2731 = sand.u32 %s225, 1
          %s2732 = smul.addr %s2731, 512
          %s2733 = scalar_lea.vmem [#allocation12], %s2732
          %2735 = dma.done %s2730, 8192
        $region88: #{tpu_custom_call.1} parent=79 // pred_fallthru
          _
      $region80: #{tpu_custom_call.1} parent=5 // pred_fallthru
        _
    $region6: #{tpu_custom_call.1} parent=1 // loop_footer
      %s32 = sadd.s32 1, %s28
    $region7: #{tpu_custom_call.1} parent=1 // loop_footer_branch
      %27 = sbr.rel target = $region3
    $region8: #{tpu_custom_call.1} parent=1 // loop_exit
      _
    %2736 = vsyncpa [#allocation3], 1
    %s2737 = scalar_lea.sflag [#allocation3], 1
    %2738 = vsyncpa %s2737, 1
    %2739 = vsyncpa [#allocation6], 1
    %s2740 = scalar_lea.sflag [#allocation6], 1
    %2741 = vsyncpa %s2740, 1
    %2742 = vsyncpa [#allocation9], 1
    %2743 = vsyncpa [#allocation4], 1
    %s2744 = scalar_lea.sflag [#allocation4], 1
    %2745 = vsyncpa %s2744, 1
    %2746 = vsyncpa [#allocation13], 1
    %s2747 = scalar_lea.sflag [#allocation13], 1
    %2748 = vsyncpa %s2747, 1

</llo_original>
